<compile_context>
chip_gen: v7x
topology: tpu7x:2x2x1
jax: 0.10.0
libtpu: 0.0.40
codegen_flags: <defaults>
</compile_context>

<pallas_src>
import jax
import jax.numpy as jnp
from jax import lax
from jax.experimental import pallas as pl
from jax.experimental.pallas import tpu as pltpu


_POS = ((0, 0), (0, 1), (1, 0), (1, 1))   # pool positions (py, px)
_TAP = ((0, 0), (0, 1), (1, 0), (1, 1))   # conv taps (dy, dx); tap index = 2*dy + dx


def _pick_tco(cout):
    """Cout tile: full if small, else the largest multiple-of-8 divisor <= 256."""
    for t in (256, 128, 64, 32, 16, 8):
        if cout >= t and cout % t == 0:
            return t
    return cout


def _make_kernel(C, B, Hp, Wp):
    K = 4 * C
    WB = Wp * B

    def kernel(q_ref, w_ref, b_ref, o_ref, a_ref):
        """One grid step = one Cout tile over all pooled locations.

        q_ref : (4, Hq, C, Wq*B) bf16  parity planes, Q[2r+c, m, ci, k*B+b] = x[ci, b, 2m+r, 2k+c]
        w_ref : (TCO, K)         bf16  conv weights, BN scale folded, K ordered (dy, dx, ci)
        b_ref : (TCO, 1)         f32   folded BN bias
        o_ref : (TCO, Hp*Wp*B)   bf16/f32  pooled output, n = (ph*Wp + pw)*B + b
        a_ref : (K, 4*Wp*B)      bf16  scratch: per-row im2col, 4 pool positions along lanes
        """
        w = w_ref[...]
        bias = b_ref[...]

        # Static unroll over pooled rows (Hp is small for this network).
        # TODO(synk): for large Hp convert this loop into a halo'd grid axis / fori_loop.
        for ph in range(Hp):
            # Gather the 16 taps (4 pool positions x 4 conv taps) into the scratch so a
            # single MXU dot covers the whole row (weights pushed once, one MRF drain).
            for p, (py, px) in enumerate(_POS):
                for tap, (dy, dx) in enumerate(_TAP):
                    s, t = py + dy, px + dx
                    plane = 2 * (s % 2) + (t % 2)
                    row = ph + s // 2
                    c0 = (t // 2) * B
                    a_ref[tap * C:(tap + 1) * C, p * WB:(p + 1) * WB] = (
                        q_ref[plane, row, :, c0:c0 + WB])

            y4 = jnp.dot(w, a_ref[...], preferred_element_type=jnp.float32)  # (TCO, 4*WB)

            # max over the 4 lane-contiguous pool-position slabs; bias (per-channel) and
            # ReLU commute with the max, so apply them once afterwards (f32 VPU math).
            y = y4[:, 0:WB]
            for p in range(1, 4):
                y = jnp.maximum(y, y4[:, p * WB:(p + 1) * WB])
            o_ref[:, ph * WB:(ph + 1) * WB] = jnp.maximum(y + bias, 0.0).astype(o_ref.dtype)

    return kernel


def conv_batch_maxpool_layer(x_chwb, w_eff, bias, *, out_dtype=jnp.bfloat16):
    """One ConvBatchMaxPool block.

    x_chwb : (C, H, W, B) channel-major activations (bf16).
    w_eff  : (Cout, 4*C)  bf16 conv weights with BN scale folded, columns (dy, dx, ci).
    bias   : (Cout,)      f32 folded BN bias.
    Returns (Cout, Hp, Wp, B) in `out_dtype`.
    """
    C, H, W, B = x_chwb.shape
    Cout, K = w_eff.shape
    assert K == 4 * C
    Hp, Wp = (H - 1) // 2, (W - 1) // 2          # conv k=2 s=1 valid, then pool 2/2 floor
    Hq, Wq = Hp + 1, Wp + 1
    N = Hp * Wp * B
    WB = Wp * B

    # Parity re-pack (single XLA relayout pass, ~same byte count as x — replaces the old
    # ~4x im2col materialization):  Q[2r+c, m, ci, k*B+b] = x[ci, 2m+r, 2k+c, b]
    xb = x_chwb.astype(jnp.bfloat16)
    xp = jnp.pad(xb, ((0, 0), (0, 2 * Hq - H), (0, 2 * Wq - W), (0, 0)))
    q = xp.reshape(C, Hq, 2, Wq, 2, B)
    q = jnp.transpose(q, (2, 4, 1, 0, 3, 5)).reshape(4, Hq, C, Wq * B)

    TCO = _pick_tco(Cout)
    kernel = _make_kernel(C, B, Hp, Wp)

    out = pl.pallas_call(
        kernel,
        out_shape=jax.ShapeDtypeStruct((Cout, N), out_dtype),
        grid_spec=pltpu.PrefetchScalarGridSpec(
            num_scalar_prefetch=0,
            grid=(Cout // TCO,),
            in_specs=[
                # Parity planes: constant index_map -> fetched once, resident across Cout tiles.
                pl.BlockSpec((4, Hq, C, Wq * B), lambda j: (0, 0, 0, 0)),
                pl.BlockSpec((TCO, K), lambda j: (j, 0)),
                pl.BlockSpec((TCO, 1), lambda j: (j, 0)),
            ],
            out_specs=pl.BlockSpec((TCO, N), lambda j: (j, 0)),
            scratch_shapes=[pltpu.VMEM((K, 4 * WB), jnp.bfloat16)],
        ),
        compiler_params=pltpu.CompilerParams(
            dimension_semantics=("parallel",),
            vmem_limit_bytes=32 * 1024 * 1024,
        ),
    )(q, w_eff, bias.reshape(Cout, 1))

    return out.reshape(Cout, Hp, Wp, B)


def network_with_xblock(x_nchw, params):
    # NCHW -> channel-major (C, H, W, B) bf16, exactly once (no per-layer round trip).
    x = jnp.transpose(x_nchw, (1, 2, 3, 0)).astype(jnp.bfloat16)
    n_layers = len(params)
    for li, (w_eff, bias) in enumerate(params):
        last = li == n_layers - 1
        x = conv_batch_maxpool_layer(
            x, w_eff, bias, out_dtype=jnp.float32 if last else jnp.bfloat16)
    # channel-major -> NCHW once at the end.
    return jnp.transpose(x, (3, 0, 1, 2)).astype(jnp.float32)


def init_params(key, in_channels, extractor_depth):
    """Random eval-mode params; BN scale folded into the conv weight, bias kept f32."""
    params = []
    c = in_channels
    for _ in range(extractor_depth):
        cout = 2 * c
        key, k1, k2, k3, k4, k5 = jax.random.split(key, 6)
        # PyTorch conv weight layout (Cout, Cin, kh, kw)
        w_pt = jax.random.normal(k1, (cout, c, 2, 2), jnp.float32) * (2.0 / (4 * c)) ** 0.5
        gamma = 1.0 + 0.1 * jax.random.normal(k2, (cout,), jnp.float32)
        beta = 0.1 * jax.random.normal(k3, (cout,), jnp.float32)
        running_mean = 0.1 * jax.random.normal(k4, (cout,), jnp.float32)
        running_var = jnp.abs(jax.random.normal(k5, (cout,), jnp.float32)) + 0.5
        eps = 1e-5
        scale = gamma / jnp.sqrt(running_var + eps)
        bias = beta - scale * running_mean
        # fold BN scale; reorder to (Cout, dy, dx, Cin) -> (Cout, 4*Cin), cast bf16
        w_eff = (w_pt * scale[:, None, None, None]).transpose(0, 2, 3, 1).reshape(cout, 4 * c)
        params.append((w_eff.astype(jnp.bfloat16), bias))
        c = cout
    return params


def _layer_ref(x_nchw, w_eff, bias):
    """Pure-JAX reference for one block (same bf16 input/weight rounding as the kernel)."""
    B, Cin, H, W = x_nchw.shape
    Cout = w_eff.shape[0]
    xb = x_nchw.astype(jnp.bfloat16).astype(jnp.float32)
    w = w_eff.astype(jnp.float32).reshape(Cout, 2, 2, Cin)   # (o, dy, dx, ci)
    Ho, Wo = H - 1, W - 1
    y = jnp.zeros((B, Cout, Ho, Wo), jnp.float32)
    for dy in range(2):
        for dx in range(2):
            y = y + jnp.einsum('bchw,oc->bohw',
                               xb[:, :, dy:dy + Ho, dx:dx + Wo], w[:, dy, dx, :],
                               precision=lax.Precision.HIGHEST)
    y = jnp.maximum(y + bias[None, :, None, None], 0.0)
    Hp, Wp = Ho // 2, Wo // 2
    y = y[:, :, :2 * Hp, :2 * Wp].reshape(B, Cout, Hp, 2, Wp, 2).max(axis=(3, 5))
    return y


if __name__ == "__main__":
    in_channels, extractor_depth = 4, 2
    B, H, W = 2, 16, 16

    key = jax.random.PRNGKey(0)
    key, kx = jax.random.split(key)
    x = jax.random.normal(kx, (B, in_channels, H, W), jnp.float32)
    params = init_params(key, in_channels, extractor_depth)

    net = jax.jit(network_with_xblock)
    out = jax.block_until_ready(net(x, params))

    # pure-JAX reference check (mirror the kernel's bf16 activation handoff between layers)
    ref = x
    for li, (w_eff, b) in enumerate(params):
        ref = _layer_ref(ref, w_eff, b)
        if li != len(params) - 1:
            ref = ref.astype(jnp.bfloat16).astype(jnp.float32)

    assert out.shape == ref.shape == (B, in_channels * 2 ** extractor_depth, 3, 3), out.shape
    err = float(jnp.max(jnp.abs(out - ref)))
    assert jnp.allclose(out, ref, rtol=1e-2, atol=1e-2), err
    print("KERNEL_OK")
</pallas_src>

<mosaic_0001>
module attributes {stable_mosaic.version = 11 : i64} {
  func.func @kernel(%arg0: i32, %arg1: memref<4x8x4x16xbf16, #tpu.memory_space<vmem>>, %arg2: memref<8x16xbf16, #tpu.memory_space<vmem>>, %arg3: memref<8x1xf32, #tpu.memory_space<vmem>>, %arg4: memref<8x98xbf16, #tpu.memory_space<vmem>>, %arg5: memref<16x56xbf16, #tpu.memory_space<vmem>>) attributes {dimension_semantics = [#tpu.dimension_semantics<parallel>], iteration_bounds = array<i64: 1>, scalar_prefetch = 0 : i64, scratch_operands = 1 : i64, tpu.core_type = #tpu.core_type<tc>, window_params = [{pipeline_mode = #tpu.pipeline_mode<synchronous>, transform_indices = @transform_0, window_bounds = array<i64: 4, 8, 4, 16>}, {transform_indices = @transform_1, window_bounds = array<i64: 8, 16>}, {transform_indices = @transform_2, window_bounds = array<i64: 8, 1>}, {transform_indices = @transform_3, window_bounds = array<i64: 8, 98>}]} {
    %c0 = arith.constant 0 : index
    %c0_0 = arith.constant 0 : index
    %0 = vector.load %arg2[%c0, %c0_0] : memref<8x16xbf16, #tpu.memory_space<vmem>>, vector<8x16xbf16>
    %c0_1 = arith.constant 0 : index
    %c0_2 = arith.constant 0 : index
    %1 = vector.load %arg3[%c0_1, %c0_2] : memref<8x1xf32, #tpu.memory_space<vmem>>, vector<8x1xf32>
    %c0_3 = arith.constant 0 : index
    %c0_4 = arith.constant 0 : index
    %c0_5 = arith.constant 0 : index
    %c0_6 = arith.constant 0 : index
    %2 = vector.load %arg1[%c0_3, %c0_4, %c0_5, %c0_6] : memref<4x8x4x16xbf16, #tpu.memory_space<vmem>>, vector<1x1x4x14xbf16>
    %3 = vector.shape_cast %2 : vector<1x1x4x14xbf16> to vector<4x14xbf16>
    %c0_7 = arith.constant 0 : index
    %c0_8 = arith.constant 0 : index
    %4 = vector.load %arg5[%c0_7, %c0_8] : memref<16x56xbf16, #tpu.memory_space<vmem>>, vector<4x14xbf16>
    tpu.vector_store %arg5[%c0_7, %c0_8], %3 {strides = array<i32>} : memref<16x56xbf16, #tpu.memory_space<vmem>>, vector<4x14xbf16>,
    %c1 = arith.constant 1 : index
    %c0_9 = arith.constant 0 : index
    %c0_10 = arith.constant 0 : index
    %c0_11 = arith.constant 0 : index
    %5 = vector.load %arg1[%c1, %c0_9, %c0_10, %c0_11] : memref<4x8x4x16xbf16, #tpu.memory_space<vmem>>, vector<1x1x4x14xbf16>
    %6 = vector.shape_cast %5 : vector<1x1x4x14xbf16> to vector<4x14xbf16>
    %c4 = arith.constant 4 : index
    %c0_12 = arith.constant 0 : index
    %7 = vector.load %arg5[%c4, %c0_12] : memref<16x56xbf16, #tpu.memory_space<vmem>>, vector<4x14xbf16>
    tpu.vector_store %arg5[%c4, %c0_12], %6 {strides = array<i32>} : memref<16x56xbf16, #tpu.memory_space<vmem>>, vector<4x14xbf16>,
    %c2 = arith.constant 2 : index
    %c0_13 = arith.constant 0 : index
    %c0_14 = arith.constant 0 : index
    %c0_15 = arith.constant 0 : index
    %8 = vector.load %arg1[%c2, %c0_13, %c0_14, %c0_15] : memref<4x8x4x16xbf16, #tpu.memory_space<vmem>>, vector<1x1x4x14xbf16>
    %9 = vector.shape_cast %8 : vector<1x1x4x14xbf16> to vector<4x14xbf16>
    %c8 = arith.constant 8 : index
    %c0_16 = arith.constant 0 : index
    %10 = vector.load %arg5[%c8, %c0_16] : memref<16x56xbf16, #tpu.memory_space<vmem>>, vector<4x14xbf16>
    tpu.vector_store %arg5[%c8, %c0_16], %9 {strides = array<i32>} : memref<16x56xbf16, #tpu.memory_space<vmem>>, vector<4x14xbf16>,
    %c3 = arith.constant 3 : index
    %c0_17 = arith.constant 0 : index
    %c0_18 = arith.constant 0 : index
    %c0_19 = arith.constant 0 : index
    %11 = vector.load %arg1[%c3, %c0_17, %c0_18, %c0_19] : memref<4x8x4x16xbf16, #tpu.memory_space<vmem>>, vector<1x1x4x14xbf16>
    %12 = vector.shape_cast %11 : vector<1x1x4x14xbf16> to vector<4x14xbf16>
    %c12 = arith.constant 12 : index
    %c0_20 = arith.constant 0 : index
    %13 = vector.load %arg5[%c12, %c0_20] : memref<16x56xbf16, #tpu.memory_space<vmem>>, vector<4x14xbf16>
    tpu.vector_store %arg5[%c12, %c0_20], %12 {strides = array<i32>} : memref<16x56xbf16, #tpu.memory_space<vmem>>, vector<4x14xbf16>,
    %c1_21 = arith.constant 1 : index
    %c0_22 = arith.constant 0 : index
    %c0_23 = arith.constant 0 : index
    %c0_24 = arith.constant 0 : index
    %14 = vector.load %arg1[%c1_21, %c0_22, %c0_23, %c0_24] : memref<4x8x4x16xbf16, #tpu.memory_space<vmem>>, vector<1x1x4x14xbf16>
    %15 = vector.shape_cast %14 : vector<1x1x4x14xbf16> to vector<4x14xbf16>
    %c0_25 = arith.constant 0 : index
    %c14 = arith.constant 14 : index
    %16 = vector.load %arg5[%c0_25, %c14] : memref<16x56xbf16, #tpu.memory_space<vmem>>, vector<4x14xbf16>
    tpu.vector_store %arg5[%c0_25, %c14], %15 {strides = array<i32>} : memref<16x56xbf16, #tpu.memory_space<vmem>>, vector<4x14xbf16>,
    %c0_26 = arith.constant 0 : index
    %c0_27 = arith.constant 0 : index
    %c0_28 = arith.constant 0 : index
    %c2_29 = arith.constant 2 : index
    %17 = vector.load %arg1[%c0_26, %c0_27, %c0_28, %c2_29] : memref<4x8x4x16xbf16, #tpu.memory_space<vmem>>, vector<1x1x4x14xbf16>
    %18 = vector.shape_cast %17 : vector<1x1x4x14xbf16> to vector<4x14xbf16>
    %c4_30 = arith.constant 4 : index
    %c14_31 = arith.constant 14 : index
    %19 = vector.load %arg5[%c4_30, %c14_31] : memref<16x56xbf16, #tpu.memory_space<vmem>>, vector<4x14xbf16>
    tpu.vector_store %arg5[%c4_30, %c14_31], %18 {strides = array<i32>} : memref<16x56xbf16, #tpu.memory_space<vmem>>, vector<4x14xbf16>,
    %c3_32 = arith.constant 3 : index
    %c0_33 = arith.constant 0 : index
    %c0_34 = arith.constant 0 : index
    %c0_35 = arith.constant 0 : index
    %20 = vector.load %arg1[%c3_32, %c0_33, %c0_34, %c0_35] : memref<4x8x4x16xbf16, #tpu.memory_space<vmem>>, vector<1x1x4x14xbf16>
    %21 = vector.shape_cast %20 : vector<1x1x4x14xbf16> to vector<4x14xbf16>
    %c8_36 = arith.constant 8 : index
    %c14_37 = arith.constant 14 : index
    %22 = vector.load %arg5[%c8_36, %c14_37] : memref<16x56xbf16, #tpu.memory_space<vmem>>, vector<4x14xbf16>
    tpu.vector_store %arg5[%c8_36, %c14_37], %21 {strides = array<i32>} : memref<16x56xbf16, #tpu.memory_space<vmem>>, vector<4x14xbf16>,
    %c2_38 = arith.constant 2 : index
    %c0_39 = arith.constant 0 : index
    %c0_40 = arith.constant 0 : index
    %c2_41 = arith.constant 2 : index
    %23 = vector.load %arg1[%c2_38, %c0_39, %c0_40, %c2_41] : memref<4x8x4x16xbf16, #tpu.memory_space<vmem>>, vector<1x1x4x14xbf16>
    %24 = vector.shape_cast %23 : vector<1x1x4x14xbf16> to vector<4x14xbf16>
    %c12_42 = arith.constant 12 : index
    %c14_43 = arith.constant 14 : index
    %25 = vector.load %arg5[%c12_42, %c14_43] : memref<16x56xbf16, #tpu.memory_space<vmem>>, vector<4x14xbf16>
    tpu.vector_store %arg5[%c12_42, %c14_43], %24 {strides = array<i32>} : memref<16x56xbf16, #tpu.memory_space<vmem>>, vector<4x14xbf16>,
    %c2_44 = arith.constant 2 : index
    %c0_45 = arith.constant 0 : index
    %c0_46 = arith.constant 0 : index
    %c0_47 = arith.constant 0 : index
    %26 = vector.load %arg1[%c2_44, %c0_45, %c0_46, %c0_47] : memref<4x8x4x16xbf16, #tpu.memory_space<vmem>>, vector<1x1x4x14xbf16>
    %27 = vector.shape_cast %26 : vector<1x1x4x14xbf16> to vector<4x14xbf16>
    %c0_48 = arith.constant 0 : index
    %c28 = arith.constant 28 : index
    %28 = vector.load %arg5[%c0_48, %c28] : memref<16x56xbf16, #tpu.memory_space<vmem>>, vector<4x14xbf16>
    tpu.vector_store %arg5[%c0_48, %c28], %27 {strides = array<i32>} : memref<16x56xbf16, #tpu.memory_space<vmem>>, vector<4x14xbf16>,
    %c3_49 = arith.constant 3 : index
    %c0_50 = arith.constant 0 : index
    %c0_51 = arith.constant 0 : index
    %c0_52 = arith.constant 0 : index
    %29 = vector.load %arg1[%c3_49, %c0_50, %c0_51, %c0_52] : memref<4x8x4x16xbf16, #tpu.memory_space<vmem>>, vector<1x1x4x14xbf16>
    %30 = vector.shape_cast %29 : vector<1x1x4x14xbf16> to vector<4x14xbf16>
    %c4_53 = arith.constant 4 : index
    %c28_54 = arith.constant 28 : index
    %31 = vector.load %arg5[%c4_53, %c28_54] : memref<16x56xbf16, #tpu.memory_space<vmem>>, vector<4x14xbf16>
    tpu.vector_store %arg5[%c4_53, %c28_54], %30 {strides = array<i32>} : memref<16x56xbf16, #tpu.memory_space<vmem>>, vector<4x14xbf16>,
    %c0_55 = arith.constant 0 : index
    %c1_56 = arith.constant 1 : index
    %c0_57 = arith.constant 0 : index
    %c0_58 = arith.constant 0 : index
    %32 = vector.load %arg1[%c0_55, %c1_56, %c0_57, %c0_58] : memref<4x8x4x16xbf16, #tpu.memory_space<vmem>>, vector<1x1x4x14xbf16>
    %33 = vector.shape_cast %32 : vector<1x1x4x14xbf16> to vector<4x14xbf16>
    %c8_59 = arith.constant 8 : index
    %c28_60 = arith.constant 28 : index
    %34 = vector.load %arg5[%c8_59, %c28_60] : memref<16x56xbf16, #tpu.memory_space<vmem>>, vector<4x14xbf16>
    tpu.vector_store %arg5[%c8_59, %c28_60], %33 {strides = array<i32>} : memref<16x56xbf16, #tpu.memory_space<vmem>>, vector<4x14xbf16>,
    %c1_61 = arith.constant 1 : index
    %c1_62 = arith.constant 1 : index
    %c0_63 = arith.constant 0 : index
    %c0_64 = arith.constant 0 : index
    %35 = vector.load %arg1[%c1_61, %c1_62, %c0_63, %c0_64] : memref<4x8x4x16xbf16, #tpu.memory_space<vmem>>, vector<1x1x4x14xbf16>
    %36 = vector.shape_cast %35 : vector<1x1x4x14xbf16> to vector<4x14xbf16>
    %c12_65 = arith.constant 12 : index
    %c28_66 = arith.constant 28 : index
    %37 = vector.load %arg5[%c12_65, %c28_66] : memref<16x56xbf16, #tpu.memory_space<vmem>>, vector<4x14xbf16>
    tpu.vector_store %arg5[%c12_65, %c28_66], %36 {strides = array<i32>} : memref<16x56xbf16, #tpu.memory_space<vmem>>, vector<4x14xbf16>,
    %c3_67 = arith.constant 3 : index
    %c0_68 = arith.constant 0 : index
    %c0_69 = arith.constant 0 : index
    %c0_70 = arith.constant 0 : index
    %38 = vector.load %arg1[%c3_67, %c0_68, %c0_69, %c0_70] : memref<4x8x4x16xbf16, #tpu.memory_space<vmem>>, vector<1x1x4x14xbf16>
    %39 = vector.shape_cast %38 : vector<1x1x4x14xbf16> to vector<4x14xbf16>
    %c0_71 = arith.constant 0 : index
    %c42 = arith.constant 42 : index
    %40 = vector.load %arg5[%c0_71, %c42] : memref<16x56xbf16, #tpu.memory_space<vmem>>, vector<4x14xbf16>
    tpu.vector_store %arg5[%c0_71, %c42], %39 {strides = array<i32>} : memref<16x56xbf16, #tpu.memory_space<vmem>>, vector<4x14xbf16>,
    %c2_72 = arith.constant 2 : index
    %c0_73 = arith.constant 0 : index
    %c0_74 = arith.constant 0 : index
    %c2_75 = arith.constant 2 : index
    %41 = vector.load %arg1[%c2_72, %c0_73, %c0_74, %c2_75] : memref<4x8x4x16xbf16, #tpu.memory_space<vmem>>, vector<1x1x4x14xbf16>
    %42 = vector.shape_cast %41 : vector<1x1x4x14xbf16> to vector<4x14xbf16>
    %c4_76 = arith.constant 4 : index
    %c42_77 = arith.constant 42 : index
    %43 = vector.load %arg5[%c4_76, %c42_77] : memref<16x56xbf16, #tpu.memory_space<vmem>>, vector<4x14xbf16>
    tpu.vector_store %arg5[%c4_76, %c42_77], %42 {strides = array<i32>} : memref<16x56xbf16, #tpu.memory_space<vmem>>, vector<4x14xbf16>,
    %c1_78 = arith.constant 1 : index
    %c1_79 = arith.constant 1 : index
    %c0_80 = arith.constant 0 : index
    %c0_81 = arith.constant 0 : index
    %44 = vector.load %arg1[%c1_78, %c1_79, %c0_80, %c0_81] : memref<4x8x4x16xbf16, #tpu.memory_space<vmem>>, vector<1x1x4x14xbf16>
    %45 = vector.shape_cast %44 : vector<1x1x4x14xbf16> to vector<4x14xbf16>
    %c8_82 = arith.constant 8 : index
    %c42_83 = arith.constant 42 : index
    %46 = vector.load %arg5[%c8_82, %c42_83] : memref<16x56xbf16, #tpu.memory_space<vmem>>, vector<4x14xbf16>
    tpu.vector_store %arg5[%c8_82, %c42_83], %45 {strides = array<i32>} : memref<16x56xbf16, #tpu.memory_space<vmem>>, vector<4x14xbf16>,
    %c0_84 = arith.constant 0 : index
    %c1_85 = arith.constant 1 : index
    %c0_86 = arith.constant 0 : index
    %c2_87 = arith.constant 2 : index
    %47 = vector.load %arg1[%c0_84, %c1_85, %c0_86, %c2_87] : memref<4x8x4x16xbf16, #tpu.memory_space<vmem>>, vector<1x1x4x14xbf16>
    %48 = vector.shape_cast %47 : vector<1x1x4x14xbf16> to vector<4x14xbf16>
    %c12_88 = arith.constant 12 : index
    %c42_89 = arith.constant 42 : index
    %49 = vector.load %arg5[%c12_88, %c42_89] : memref<16x56xbf16, #tpu.memory_space<vmem>>, vector<4x14xbf16>
    tpu.vector_store %arg5[%c12_88, %c42_89], %48 {strides = array<i32>} : memref<16x56xbf16, #tpu.memory_space<vmem>>, vector<4x14xbf16>,
    %c0_90 = arith.constant 0 : index
    %c0_91 = arith.constant 0 : index
    %50 = vector.load %arg5[%c0_90, %c0_91] : memref<16x56xbf16, #tpu.memory_space<vmem>>, vector<16x56xbf16>
    %cst = arith.constant dense<0.000000e+00> : vector<8x56xf32>
    %51 = tpu.matmul %0, %50, %cst {dimension_numbers = #tpu.dot_dimension_numbers<[1], [0], [0], [1], [0, 0, 1, 1], [], []>} : vector<8x16xbf16>, vector<16x56xbf16>, vector<8x56xf32> -> vector<8x56xf32>
    %52 = vector.extract_strided_slice %51 {offsets = [0, 0], sizes = [8, 14], strides = [1, 1]} : vector<8x56xf32> to vector<8x14xf32>
    %53 = vector.extract_strided_slice %51 {offsets = [0, 14], sizes = [8, 14], strides = [1, 1]} : vector<8x56xf32> to vector<8x14xf32>
    %54 = arith.maximumf %52, %53 : vector<8x14xf32>
    %55 = vector.extract_strided_slice %51 {offsets = [0, 28], sizes = [8, 14], strides = [1, 1]} : vector<8x56xf32> to vector<8x14xf32>
    %56 = arith.maximumf %54, %55 : vector<8x14xf32>
    %57 = vector.extract_strided_slice %51 {offsets = [0, 42], sizes = [8, 14], strides = [1, 1]} : vector<8x56xf32> to vector<8x14xf32>
    %58 = arith.maximumf %56, %57 : vector<8x14xf32>
    %59 = vector.broadcast %1 : vector<8x1xf32> to vector<8x14xf32>
    %60 = arith.addf %58, %59 : vector<8x14xf32>
    %cst_92 = arith.constant 0.000000e+00 : f32
    %61 = vector.broadcast %cst_92 : f32 to vector<8x14xf32>
    %62 = arith.maximumf %60, %61 : vector<8x14xf32>
    %63 = arith.truncf %62 : vector<8x14xf32> to vector<8x14xbf16>
    %c0_93 = arith.constant 0 : index
    %c0_94 = arith.constant 0 : index
    %64 = vector.load %arg4[%c0_93, %c0_94] : memref<8x98xbf16, #tpu.memory_space<vmem>>, vector<8x14xbf16>
    tpu.vector_store %arg4[%c0_93, %c0_94], %63 {strides = array<i32>} : memref<8x98xbf16, #tpu.memory_space<vmem>>, vector<8x14xbf16>,
    %c0_95 = arith.constant 0 : index
    %c1_96 = arith.constant 1 : index
    %c0_97 = arith.constant 0 : index
    %c0_98 = arith.constant 0 : index
    %65 = vector.load %arg1[%c0_95, %c1_96, %c0_97, %c0_98] : memref<4x8x4x16xbf16, #tpu.memory_space<vmem>>, vector<1x1x4x14xbf16>
    %66 = vector.shape_cast %65 : vector<1x1x4x14xbf16> to vector<4x14xbf16>
    %c0_99 = arith.constant 0 : index
    %c0_100 = arith.constant 0 : index
    %67 = vector.load %arg5[%c0_99, %c0_100] : memref<16x56xbf16, #tpu.memory_space<vmem>>, vector<4x14xbf16>
    tpu.vector_store %arg5[%c0_99, %c0_100], %66 {strides = array<i32>} : memref<16x56xbf16, #tpu.memory_space<vmem>>, vector<4x14xbf16>,
    %c1_101 = arith.constant 1 : index
    %c1_102 = arith.constant 1 : index
    %c0_103 = arith.constant 0 : index
    %c0_104 = arith.constant 0 : index
    %68 = vector.load %arg1[%c1_101, %c1_102, %c0_103, %c0_104] : memref<4x8x4x16xbf16, #tpu.memory_space<vmem>>, vector<1x1x4x14xbf16>
    %69 = vector.shape_cast %68 : vector<1x1x4x14xbf16> to vector<4x14xbf16>
    %c4_105 = arith.constant 4 : index
    %c0_106 = arith.constant 0 : index
    %70 = vector.load %arg5[%c4_105, %c0_106] : memref<16x56xbf16, #tpu.memory_space<vmem>>, vector<4x14xbf16>
    tpu.vector_store %arg5[%c4_105, %c0_106], %69 {strides = array<i32>} : memref<16x56xbf16, #tpu.memory_space<vmem>>, vector<4x14xbf16>,
    %c2_107 = arith.constant 2 : index
    %c1_108 = arith.constant 1 : index
    %c0_109 = arith.constant 0 : index
    %c0_110 = arith.constant 0 : index
    %71 = vector.load %arg1[%c2_107, %c1_108, %c0_109, %c0_110] : memref<4x8x4x16xbf16, #tpu.memory_space<vmem>>, vector<1x1x4x14xbf16>
    %72 = vector.shape_cast %71 : vector<1x1x4x14xbf16> to vector<4x14xbf16>
    %c8_111 = arith.constant 8 : index
    %c0_112 = arith.constant 0 : index
    %73 = vector.load %arg5[%c8_111, %c0_112] : memref<16x56xbf16, #tpu.memory_space<vmem>>, vector<4x14xbf16>
    tpu.vector_store %arg5[%c8_111, %c0_112], %72 {strides = array<i32>} : memref<16x56xbf16, #tpu.memory_space<vmem>>, vector<4x14xbf16>,
    %c3_113 = arith.constant 3 : index
    %c1_114 = arith.constant 1 : index
    %c0_115 = arith.constant 0 : index
    %c0_116 = arith.constant 0 : index
    %74 = vector.load %arg1[%c3_113, %c1_114, %c0_115, %c0_116] : memref<4x8x4x16xbf16, #tpu.memory_space<vmem>>, vector<1x1x4x14xbf16>
    %75 = vector.shape_cast %74 : vector<1x1x4x14xbf16> to vector<4x14xbf16>
    %c12_117 = arith.constant 12 : index
    %c0_118 = arith.constant 0 : index
    %76 = vector.load %arg5[%c12_117, %c0_118] : memref<16x56xbf16, #tpu.memory_space<vmem>>, vector<4x14xbf16>
    tpu.vector_store %arg5[%c12_117, %c0_118], %75 {strides = array<i32>} : memref<16x56xbf16, #tpu.memory_space<vmem>>, vector<4x14xbf16>,
    %c1_119 = arith.constant 1 : index
    %c1_120 = arith.constant 1 : index
    %c0_121 = arith.constant 0 : index
    %c0_122 = arith.constant 0 : index
    %77 = vector.load %arg1[%c1_119, %c1_120, %c0_121, %c0_122] : memref<4x8x4x16xbf16, #tpu.memory_space<vmem>>, vector<1x1x4x14xbf16>
    %78 = vector.shape_cast %77 : vector<1x1x4x14xbf16> to vector<4x14xbf16>
    %c0_123 = arith.constant 0 : index
    %c14_124 = arith.constant 14 : index
    %79 = vector.load %arg5[%c0_123, %c14_124] : memref<16x56xbf16, #tpu.memory_space<vmem>>, vector<4x14xbf16>
    tpu.vector_store %arg5[%c0_123, %c14_124], %78 {strides = array<i32>} : memref<16x56xbf16, #tpu.memory_space<vmem>>, vector<4x14xbf16>,
    %c0_125 = arith.constant 0 : index
    %c1_126 = arith.constant 1 : index
    %c0_127 = arith.constant 0 : index
    %c2_128 = arith.constant 2 : index
    %80 = vector.load %arg1[%c0_125, %c1_126, %c0_127, %c2_128] : memref<4x8x4x16xbf16, #tpu.memory_space<vmem>>, vector<1x1x4x14xbf16>
    %81 = vector.shape_cast %80 : vector<1x1x4x14xbf16> to vector<4x14xbf16>
    %c4_129 = arith.constant 4 : index
    %c14_130 = arith.constant 14 : index
    %82 = vector.load %arg5[%c4_129, %c14_130] : memref<16x56xbf16, #tpu.memory_space<vmem>>, vector<4x14xbf16>
    tpu.vector_store %arg5[%c4_129, %c14_130], %81 {strides = array<i32>} : memref<16x56xbf16, #tpu.memory_space<vmem>>, vector<4x14xbf16>,
    %c3_131 = arith.constant 3 : index
    %c1_132 = arith.constant 1 : index
    %c0_133 = arith.constant 0 : index
    %c0_134 = arith.constant 0 : index
    %83 = vector.load %arg1[%c3_131, %c1_132, %c0_133, %c0_134] : memref<4x8x4x16xbf16, #tpu.memory_space<vmem>>, vector<1x1x4x14xbf16>
    %84 = vector.shape_cast %83 : vector<1x1x4x14xbf16> to vector<4x14xbf16>
    %c8_135 = arith.constant 8 : index
    %c14_136 = arith.constant 14 : index
    %85 = vector.load %arg5[%c8_135, %c14_136] : memref<16x56xbf16, #tpu.memory_space<vmem>>, vector<4x14xbf16>
    tpu.vector_store %arg5[%c8_135, %c14_136], %84 {strides = array<i32>} : memref<16x56xbf16, #tpu.memory_space<vmem>>, vector<4x14xbf16>,
    %c2_137 = arith.constant 2 : index
    %c1_138 = arith.constant 1 : index
    %c0_139 = arith.constant 0 : index
    %c2_140 = arith.constant 2 : index
    %86 = vector.load %arg1[%c2_137, %c1_138, %c0_139, %c2_140] : memref<4x8x4x16xbf16, #tpu.memory_space<vmem>>, vector<1x1x4x14xbf16>
    %87 = vector.shape_cast %86 : vector<1x1x4x14xbf16> to vector<4x14xbf16>
    %c12_141 = arith.constant 12 : index
    %c14_142 = arith.constant 14 : index
    %88 = vector.load %arg5[%c12_141, %c14_142] : memref<16x56xbf16, #tpu.memory_space<vmem>>, vector<4x14xbf16>
    tpu.vector_store %arg5[%c12_141, %c14_142], %87 {strides = array<i32>} : memref<16x56xbf16, #tpu.memory_space<vmem>>, vector<4x14xbf16>,
    %c2_143 = arith.constant 2 : index
    %c1_144 = arith.constant 1 : index
    %c0_145 = arith.constant 0 : index
    %c0_146 = arith.constant 0 : index
    %89 = vector.load %arg1[%c2_143, %c1_144, %c0_145, %c0_146] : memref<4x8x4x16xbf16, #tpu.memory_space<vmem>>, vector<1x1x4x14xbf16>
    %90 = vector.shape_cast %89 : vector<1x1x4x14xbf16> to vector<4x14xbf16>
    %c0_147 = arith.constant 0 : index
    %c28_148 = arith.constant 28 : index
    %91 = vector.load %arg5[%c0_147, %c28_148] : memref<16x56xbf16, #tpu.memory_space<vmem>>, vector<4x14xbf16>
    tpu.vector_store %arg5[%c0_147, %c28_148], %90 {strides = array<i32>} : memref<16x56xbf16, #tpu.memory_space<vmem>>, vector<4x14xbf16>,
    %c3_149 = arith.constant 3 : index
    %c1_150 = arith.constant 1 : index
    %c0_151 = arith.constant 0 : index
    %c0_152 = arith.constant 0 : index
    %92 = vector.load %arg1[%c3_149, %c1_150, %c0_151, %c0_152] : memref<4x8x4x16xbf16, #tpu.memory_space<vmem>>, vector<1x1x4x14xbf16>
    %93 = vector.shape_cast %92 : vector<1x1x4x14xbf16> to vector<4x14xbf16>
    %c4_153 = arith.constant 4 : index
    %c28_154 = arith.constant 28 : index
    %94 = vector.load %arg5[%c4_153, %c28_154] : memref<16x56xbf16, #tpu.memory_space<vmem>>, vector<4x14xbf16>
    tpu.vector_store %arg5[%c4_153, %c28_154], %93 {strides = array<i32>} : memref<16x56xbf16, #tpu.memory_space<vmem>>, vector<4x14xbf16>,
    %c0_155 = arith.constant 0 : index
    %c2_156 = arith.constant 2 : index
    %c0_157 = arith.constant 0 : index
    %c0_158 = arith.constant 0 : index
    %95 = vector.load %arg1[%c0_155, %c2_156, %c0_157, %c0_158] : memref<4x8x4x16xbf16, #tpu.memory_space<vmem>>, vector<1x1x4x14xbf16>
    %96 = vector.shape_cast %95 : vector<1x1x4x14xbf16> to vector<4x14xbf16>
    %c8_159 = arith.constant 8 : index
    %c28_160 = arith.constant 28 : index
    %97 = vector.load %arg5[%c8_159, %c28_160] : memref<16x56xbf16, #tpu.memory_space<vmem>>, vector<4x14xbf16>
    tpu.vector_store %arg5[%c8_159, %c28_160], %96 {strides = array<i32>} : memref<16x56xbf16, #tpu.memory_space<vmem>>, vector<4x14xbf16>,
    %c1_161 = arith.constant 1 : index
    %c2_162 = arith.constant 2 : index
    %c0_163 = arith.constant 0 : index
    %c0_164 = arith.constant 0 : index
    %98 = vector.load %arg1[%c1_161, %c2_162, %c0_163, %c0_164] : memref<4x8x4x16xbf16, #tpu.memory_space<vmem>>, vector<1x1x4x14xbf16>
    %99 = vector.shape_cast %98 : vector<1x1x4x14xbf16> to vector<4x14xbf16>
    %c12_165 = arith.constant 12 : index
    %c28_166 = arith.constant 28 : index
    %100 = vector.load %arg5[%c12_165, %c28_166] : memref<16x56xbf16, #tpu.memory_space<vmem>>, vector<4x14xbf16>
    tpu.vector_store %arg5[%c12_165, %c28_166], %99 {strides = array<i32>} : memref<16x56xbf16, #tpu.memory_space<vmem>>, vector<4x14xbf16>,
    %c3_167 = arith.constant 3 : index
    %c1_168 = arith.constant 1 : index
    %c0_169 = arith.constant 0 : index
    %c0_170 = arith.constant 0 : index
    %101 = vector.load %arg1[%c3_167, %c1_168, %c0_169, %c0_170] : memref<4x8x4x16xbf16, #tpu.memory_space<vmem>>, vector<1x1x4x14xbf16>
    %102 = vector.shape_cast %101 : vector<1x1x4x14xbf16> to vector<4x14xbf16>
    %c0_171 = arith.constant 0 : index
    %c42_172 = arith.constant 42 : index
    %103 = vector.load %arg5[%c0_171, %c42_172] : memref<16x56xbf16, #tpu.memory_space<vmem>>, vector<4x14xbf16>
    tpu.vector_store %arg5[%c0_171, %c42_172], %102 {strides = array<i32>} : memref<16x56xbf16, #tpu.memory_space<vmem>>, vector<4x14xbf16>,
    %c2_173 = arith.constant 2 : index
    %c1_174 = arith.constant 1 : index
    %c0_175 = arith.constant 0 : index
    %c2_176 = arith.constant 2 : index
    %104 = vector.load %arg1[%c2_173, %c1_174, %c0_175, %c2_176] : memref<4x8x4x16xbf16, #tpu.memory_space<vmem>>, vector<1x1x4x14xbf16>
    %105 = vector.shape_cast %104 : vector<1x1x4x14xbf16> to vector<4x14xbf16>
    %c4_177 = arith.constant 4 : index
    %c42_178 = arith.constant 42 : index
    %106 = vector.load %arg5[%c4_177, %c42_178] : memref<16x56xbf16, #tpu.memory_space<vmem>>, vector<4x14xbf16>
    tpu.vector_store %arg5[%c4_177, %c42_178], %105 {strides = array<i32>} : memref<16x56xbf16, #tpu.memory_space<vmem>>, vector<4x14xbf16>,
    %c1_179 = arith.constant 1 : index
    %c2_180 = arith.constant 2 : index
    %c0_181 = arith.constant 0 : index
    %c0_182 = arith.constant 0 : index
    %107 = vector.load %arg1[%c1_179, %c2_180, %c0_181, %c0_182] : memref<4x8x4x16xbf16, #tpu.memory_space<vmem>>, vector<1x1x4x14xbf16>
    %108 = vector.shape_cast %107 : vector<1x1x4x14xbf16> to vector<4x14xbf16>
    %c8_183 = arith.constant 8 : index
    %c42_184 = arith.constant 42 : index
    %109 = vector.load %arg5[%c8_183, %c42_184] : memref<16x56xbf16, #tpu.memory_space<vmem>>, vector<4x14xbf16>
    tpu.vector_store %arg5[%c8_183, %c42_184], %108 {strides = array<i32>} : memref<16x56xbf16, #tpu.memory_space<vmem>>, vector<4x14xbf16>,
    %c0_185 = arith.constant 0 : index
    %c2_186 = arith.constant 2 : index
    %c0_187 = arith.constant 0 : index
    %c2_188 = arith.constant 2 : index
    %110 = vector.load %arg1[%c0_185, %c2_186, %c0_187, %c2_188] : memref<4x8x4x16xbf16, #tpu.memory_space<vmem>>, vector<1x1x4x14xbf16>
    %111 = vector.shape_cast %110 : vector<1x1x4x14xbf16> to vector<4x14xbf16>
    %c12_189 = arith.constant 12 : index
    %c42_190 = arith.constant 42 : index
    %112 = vector.load %arg5[%c12_189, %c42_190] : memref<16x56xbf16, #tpu.memory_space<vmem>>, vector<4x14xbf16>
    tpu.vector_store %arg5[%c12_189, %c42_190], %111 {strides = array<i32>} : memref<16x56xbf16, #tpu.memory_space<vmem>>, vector<4x14xbf16>,
    %c0_191 = arith.constant 0 : index
    %c0_192 = arith.constant 0 : index
    %113 = vector.load %arg5[%c0_191, %c0_192] : memref<16x56xbf16, #tpu.memory_space<vmem>>, vector<16x56xbf16>
    %cst_193 = arith.constant dense<0.000000e+00> : vector<8x56xf32>
    %114 = tpu.matmul %0, %113, %cst_193 {dimension_numbers = #tpu.dot_dimension_numbers<[1], [0], [0], [1], [0, 0, 1, 1], [], []>} : vector<8x16xbf16>, vector<16x56xbf16>, vector<8x56xf32> -> vector<8x56xf32>
    %115 = vector.extract_strided_slice %114 {offsets = [0, 0], sizes = [8, 14], strides = [1, 1]} : vector<8x56xf32> to vector<8x14xf32>
    %116 = vector.extract_strided_slice %114 {offsets = [0, 14], sizes = [8, 14], strides = [1, 1]} : vector<8x56xf32> to vector<8x14xf32>
    %117 = arith.maximumf %115, %116 : vector<8x14xf32>
    %118 = vector.extract_strided_slice %114 {offsets = [0, 28], sizes = [8, 14], strides = [1, 1]} : vector<8x56xf32> to vector<8x14xf32>
    %119 = arith.maximumf %117, %118 : vector<8x14xf32>
    %120 = vector.extract_strided_slice %114 {offsets = [0, 42], sizes = [8, 14], strides = [1, 1]} : vector<8x56xf32> to vector<8x14xf32>
    %121 = arith.maximumf %119, %120 : vector<8x14xf32>
    %122 = vector.broadcast %1 : vector<8x1xf32> to vector<8x14xf32>
    %123 = arith.addf %121, %122 : vector<8x14xf32>
    %cst_194 = arith.constant 0.000000e+00 : f32
    %124 = vector.broadcast %cst_194 : f32 to vector<8x14xf32>
    %125 = arith.maximumf %123, %124 : vector<8x14xf32>
    %126 = arith.truncf %125 : vector<8x14xf32> to vector<8x14xbf16>
    %c0_195 = arith.constant 0 : index
    %c14_196 = arith.constant 14 : index
    %127 = vector.load %arg4[%c0_195, %c14_196] : memref<8x98xbf16, #tpu.memory_space<vmem>>, vector<8x14xbf16>
    tpu.vector_store %arg4[%c0_195, %c14_196], %126 {strides = array<i32>} : memref<8x98xbf16, #tpu.memory_space<vmem>>, vector<8x14xbf16>,
    %c0_197 = arith.constant 0 : index
    %c2_198 = arith.constant 2 : index
    %c0_199 = arith.constant 0 : index
    %c0_200 = arith.constant 0 : index
    %128 = vector.load %arg1[%c0_197, %c2_198, %c0_199, %c0_200] : memref<4x8x4x16xbf16, #tpu.memory_space<vmem>>, vector<1x1x4x14xbf16>
    %129 = vector.shape_cast %128 : vector<1x1x4x14xbf16> to vector<4x14xbf16>
    %c0_201 = arith.constant 0 : index
    %c0_202 = arith.constant 0 : index
    %130 = vector.load %arg5[%c0_201, %c0_202] : memref<16x56xbf16, #tpu.memory_space<vmem>>, vector<4x14xbf16>
    tpu.vector_store %arg5[%c0_201, %c0_202], %129 {strides = array<i32>} : memref<16x56xbf16, #tpu.memory_space<vmem>>, vector<4x14xbf16>,
    %c1_203 = arith.constant 1 : index
    %c2_204 = arith.constant 2 : index
    %c0_205 = arith.constant 0 : index
    %c0_206 = arith.constant 0 : index
    %131 = vector.load %arg1[%c1_203, %c2_204, %c0_205, %c0_206] : memref<4x8x4x16xbf16, #tpu.memory_space<vmem>>, vector<1x1x4x14xbf16>
    %132 = vector.shape_cast %131 : vector<1x1x4x14xbf16> to vector<4x14xbf16>
    %c4_207 = arith.constant 4 : index
    %c0_208 = arith.constant 0 : index
    %133 = vector.load %arg5[%c4_207, %c0_208] : memref<16x56xbf16, #tpu.memory_space<vmem>>, vector<4x14xbf16>
    tpu.vector_store %arg5[%c4_207, %c0_208], %132 {strides = array<i32>} : memref<16x56xbf16, #tpu.memory_space<vmem>>, vector<4x14xbf16>,
    %c2_209 = arith.constant 2 : index
    %c2_210 = arith.constant 2 : index
    %c0_211 = arith.constant 0 : index
    %c0_212 = arith.constant 0 : index
    %134 = vector.load %arg1[%c2_209, %c2_210, %c0_211, %c0_212] : memref<4x8x4x16xbf16, #tpu.memory_space<vmem>>, vector<1x1x4x14xbf16>
    %135 = vector.shape_cast %134 : vector<1x1x4x14xbf16> to vector<4x14xbf16>
    %c8_213 = arith.constant 8 : index
    %c0_214 = arith.constant 0 : index
    %136 = vector.load %arg5[%c8_213, %c0_214] : memref<16x56xbf16, #tpu.memory_space<vmem>>, vector<4x14xbf16>
    tpu.vector_store %arg5[%c8_213, %c0_214], %135 {strides = array<i32>} : memref<16x56xbf16, #tpu.memory_space<vmem>>, vector<4x14xbf16>,
    %c3_215 = arith.constant 3 : index
    %c2_216 = arith.constant 2 : index
    %c0_217 = arith.constant 0 : index
    %c0_218 = arith.constant 0 : index
    %137 = vector.load %arg1[%c3_215, %c2_216, %c0_217, %c0_218] : memref<4x8x4x16xbf16, #tpu.memory_space<vmem>>, vector<1x1x4x14xbf16>
    %138 = vector.shape_cast %137 : vector<1x1x4x14xbf16> to vector<4x14xbf16>
    %c12_219 = arith.constant 12 : index
    %c0_220 = arith.constant 0 : index
    %139 = vector.load %arg5[%c12_219, %c0_220] : memref<16x56xbf16, #tpu.memory_space<vmem>>, vector<4x14xbf16>
    tpu.vector_store %arg5[%c12_219, %c0_220], %138 {strides = array<i32>} : memref<16x56xbf16, #tpu.memory_space<vmem>>, vector<4x14xbf16>,
    %c1_221 = arith.constant 1 : index
    %c2_222 = arith.constant 2 : index
    %c0_223 = arith.constant 0 : index
    %c0_224 = arith.constant 0 : index
    %140 = vector.load %arg1[%c1_221, %c2_222, %c0_223, %c0_224] : memref<4x8x4x16xbf16, #tpu.memory_space<vmem>>, vector<1x1x4x14xbf16>
    %141 = vector.shape_cast %140 : vector<1x1x4x14xbf16> to vector<4x14xbf16>
    %c0_225 = arith.constant 0 : index
    %c14_226 = arith.constant 14 : index
    %142 = vector.load %arg5[%c0_225, %c14_226] : memref<16x56xbf16, #tpu.memory_space<vmem>>, vector<4x14xbf16>
    tpu.vector_store %arg5[%c0_225, %c14_226], %141 {strides = array<i32>} : memref<16x56xbf16, #tpu.memory_space<vmem>>, vector<4x14xbf16>,
    %c0_227 = arith.constant 0 : index
    %c2_228 = arith.constant 2 : index
    %c0_229 = arith.constant 0 : index
    %c2_230 = arith.constant 2 : index
    %143 = vector.load %arg1[%c0_227, %c2_228, %c0_229, %c2_230] : memref<4x8x4x16xbf16, #tpu.memory_space<vmem>>, vector<1x1x4x14xbf16>
    %144 = vector.shape_cast %143 : vector<1x1x4x14xbf16> to vector<4x14xbf16>
    %c4_231 = arith.constant 4 : index
    %c14_232 = arith.constant 14 : index
    %145 = vector.load %arg5[%c4_231, %c14_232] : memref<16x56xbf16, #tpu.memory_space<vmem>>, vector<4x14xbf16>
    tpu.vector_store %arg5[%c4_231, %c14_232], %144 {strides = array<i32>} : memref<16x56xbf16, #tpu.memory_space<vmem>>, vector<4x14xbf16>,
    %c3_233 = arith.constant 3 : index
    %c2_234 = arith.constant 2 : index
    %c0_235 = arith.constant 0 : index
    %c0_236 = arith.constant 0 : index
    %146 = vector.load %arg1[%c3_233, %c2_234, %c0_235, %c0_236] : memref<4x8x4x16xbf16, #tpu.memory_space<vmem>>, vector<1x1x4x14xbf16>
    %147 = vector.shape_cast %146 : vector<1x1x4x14xbf16> to vector<4x14xbf16>
    %c8_237 = arith.constant 8 : index
    %c14_238 = arith.constant 14 : index
    %148 = vector.load %arg5[%c8_237, %c14_238] : memref<16x56xbf16, #tpu.memory_space<vmem>>, vector<4x14xbf16>
    tpu.vector_store %arg5[%c8_237, %c14_238], %147 {strides = array<i32>} : memref<16x56xbf16, #tpu.memory_space<vmem>>, vector<4x14xbf16>,
    %c2_239 = arith.constant 2 : index
    %c2_240 = arith.constant 2 : index
    %c0_241 = arith.constant 0 : index
    %c2_242 = arith.constant 2 : index
    %149 = vector.load %arg1[%c2_239, %c2_240, %c0_241, %c2_242] : memref<4x8x4x16xbf16, #tpu.memory_space<vmem>>, vector<1x1x4x14xbf16>
    %150 = vector.shape_cast %149 : vector<1x1x4x14xbf16> to vector<4x14xbf16>
    %c12_243 = arith.constant 12 : index
    %c14_244 = arith.constant 14 : index
    %151 = vector.load %arg5[%c12_243, %c14_244] : memref<16x56xbf16, #tpu.memory_space<vmem>>, vector<4x14xbf16>
    tpu.vector_store %arg5[%c12_243, %c14_244], %150 {strides = array<i32>} : memref<16x56xbf16, #tpu.memory_space<vmem>>, vector<4x14xbf16>,
    %c2_245 = arith.constant 2 : index
    %c2_246 = arith.constant 2 : index
    %c0_247 = arith.constant 0 : index
    %c0_248 = arith.constant 0 : index
    %152 = vector.load %arg1[%c2_245, %c2_246, %c0_247, %c0_248] : memref<4x8x4x16xbf16, #tpu.memory_space<vmem>>, vector<1x1x4x14xbf16>
    %153 = vector.shape_cast %152 : vector<1x1x4x14xbf16> to vector<4x14xbf16>
    %c0_249 = arith.constant 0 : index
    %c28_250 = arith.constant 28 : index
    %154 = vector.load %arg5[%c0_249, %c28_250] : memref<16x56xbf16, #tpu.memory_space<vmem>>, vector<4x14xbf16>
    tpu.vector_store %arg5[%c0_249, %c28_250], %153 {strides = array<i32>} : memref<16x56xbf16, #tpu.memory_space<vmem>>, vector<4x14xbf16>,
    %c3_251 = arith.constant 3 : index
    %c2_252 = arith.constant 2 : index
    %c0_253 = arith.constant 0 : index
    %c0_254 = arith.constant 0 : index
    %155 = vector.load %arg1[%c3_251, %c2_252, %c0_253, %c0_254] : memref<4x8x4x16xbf16, #tpu.memory_space<vmem>>, vector<1x1x4x14xbf16>
    %156 = vector.shape_cast %155 : vector<1x1x4x14xbf16> to vector<4x14xbf16>
    %c4_255 = arith.constant 4 : index
    %c28_256 = arith.constant 28 : index
    %157 = vector.load %arg5[%c4_255, %c28_256] : memref<16x56xbf16, #tpu.memory_space<vmem>>, vector<4x14xbf16>
    tpu.vector_store %arg5[%c4_255, %c28_256], %156 {strides = array<i32>} : memref<16x56xbf16, #tpu.memory_space<vmem>>, vector<4x14xbf16>,
    %c0_257 = arith.constant 0 : index
    %c3_258 = arith.constant 3 : index
    %c0_259 = arith.constant 0 : index
    %c0_260 = arith.constant 0 : index
    %158 = vector.load %arg1[%c0_257, %c3_258, %c0_259, %c0_260] : memref<4x8x4x16xbf16, #tpu.memory_space<vmem>>, vector<1x1x4x14xbf16>
    %159 = vector.shape_cast %158 : vector<1x1x4x14xbf16> to vector<4x14xbf16>
    %c8_261 = arith.constant 8 : index
    %c28_262 = arith.constant 28 : index
    %160 = vector.load %arg5[%c8_261, %c28_262] : memref<16x56xbf16, #tpu.memory_space<vmem>>, vector<4x14xbf16>
    tpu.vector_store %arg5[%c8_261, %c28_262], %159 {strides = array<i32>} : memref<16x56xbf16, #tpu.memory_space<vmem>>, vector<4x14xbf16>,
    %c1_263 = arith.constant 1 : index
    %c3_264 = arith.constant 3 : index
    %c0_265 = arith.constant 0 : index
    %c0_266 = arith.constant 0 : index
    %161 = vector.load %arg1[%c1_263, %c3_264, %c0_265, %c0_266] : memref<4x8x4x16xbf16, #tpu.memory_space<vmem>>, vector<1x1x4x14xbf16>
    %162 = vector.shape_cast %161 : vector<1x1x4x14xbf16> to vector<4x14xbf16>
    %c12_267 = arith.constant 12 : index
    %c28_268 = arith.constant 28 : index
    %163 = vector.load %arg5[%c12_267, %c28_268] : memref<16x56xbf16, #tpu.memory_space<vmem>>, vector<4x14xbf16>
    tpu.vector_store %arg5[%c12_267, %c28_268], %162 {strides = array<i32>} : memref<16x56xbf16, #tpu.memory_space<vmem>>, vector<4x14xbf16>,
    %c3_269 = arith.constant 3 : index
    %c2_270 = arith.constant 2 : index
    %c0_271 = arith.constant 0 : index
    %c0_272 = arith.constant 0 : index
    %164 = vector.load %arg1[%c3_269, %c2_270, %c0_271, %c0_272] : memref<4x8x4x16xbf16, #tpu.memory_space<vmem>>, vector<1x1x4x14xbf16>
    %165 = vector.shape_cast %164 : vector<1x1x4x14xbf16> to vector<4x14xbf16>
    %c0_273 = arith.constant 0 : index
    %c42_274 = arith.constant 42 : index
    %166 = vector.load %arg5[%c0_273, %c42_274] : memref<16x56xbf16, #tpu.memory_space<vmem>>, vector<4x14xbf16>
    tpu.vector_store %arg5[%c0_273, %c42_274], %165 {strides = array<i32>} : memref<16x56xbf16, #tpu.memory_space<vmem>>, vector<4x14xbf16>,
    %c2_275 = arith.constant 2 : index
    %c2_276 = arith.constant 2 : index
    %c0_277 = arith.constant 0 : index
    %c2_278 = arith.constant 2 : index
    %167 = vector.load %arg1[%c2_275, %c2_276, %c0_277, %c2_278] : memref<4x8x4x16xbf16, #tpu.memory_space<vmem>>, vector<1x1x4x14xbf16>
    %168 = vector.shape_cast %167 : vector<1x1x4x14xbf16> to vector<4x14xbf16>
    %c4_279 = arith.constant 4 : index
    %c42_280 = arith.constant 42 : index
    %169 = vector.load %arg5[%c4_279, %c42_280] : memref<16x56xbf16, #tpu.memory_space<vmem>>, vector<4x14xbf16>
    tpu.vector_store %arg5[%c4_279, %c42_280], %168 {strides = array<i32>} : memref<16x56xbf16, #tpu.memory_space<vmem>>, vector<4x14xbf16>,
    %c1_281 = arith.constant 1 : index
    %c3_282 = arith.constant 3 : index
    %c0_283 = arith.constant 0 : index
    %c0_284 = arith.constant 0 : index
    %170 = vector.load %arg1[%c1_281, %c3_282, %c0_283, %c0_284] : memref<4x8x4x16xbf16, #tpu.memory_space<vmem>>, vector<1x1x4x14xbf16>
    %171 = vector.shape_cast %170 : vector<1x1x4x14xbf16> to vector<4x14xbf16>
    %c8_285 = arith.constant 8 : index
    %c42_286 = arith.constant 42 : index
    %172 = vector.load %arg5[%c8_285, %c42_286] : memref<16x56xbf16, #tpu.memory_space<vmem>>, vector<4x14xbf16>
    tpu.vector_store %arg5[%c8_285, %c42_286], %171 {strides = array<i32>} : memref<16x56xbf16, #tpu.memory_space<vmem>>, vector<4x14xbf16>,
    %c0_287 = arith.constant 0 : index
    %c3_288 = arith.constant 3 : index
    %c0_289 = arith.constant 0 : index
    %c2_290 = arith.constant 2 : index
    %173 = vector.load %arg1[%c0_287, %c3_288, %c0_289, %c2_290] : memref<4x8x4x16xbf16, #tpu.memory_space<vmem>>, vector<1x1x4x14xbf16>
    %174 = vector.shape_cast %173 : vector<1x1x4x14xbf16> to vector<4x14xbf16>
    %c12_291 = arith.constant 12 : index
    %c42_292 = arith.constant 42 : index
    %175 = vector.load %arg5[%c12_291, %c42_292] : memref<16x56xbf16, #tpu.memory_space<vmem>>, vector<4x14xbf16>
    tpu.vector_store %arg5[%c12_291, %c42_292], %174 {strides = array<i32>} : memref<16x56xbf16, #tpu.memory_space<vmem>>, vector<4x14xbf16>,
    %c0_293 = arith.constant 0 : index
    %c0_294 = arith.constant 0 : index
    %176 = vector.load %arg5[%c0_293, %c0_294] : memref<16x56xbf16, #tpu.memory_space<vmem>>, vector<16x56xbf16>
    %cst_295 = arith.constant dense<0.000000e+00> : vector<8x56xf32>
    %177 = tpu.matmul %0, %176, %cst_295 {dimension_numbers = #tpu.dot_dimension_numbers<[1], [0], [0], [1], [0, 0, 1, 1], [], []>} : vector<8x16xbf16>, vector<16x56xbf16>, vector<8x56xf32> -> vector<8x56xf32>
    %178 = vector.extract_strided_slice %177 {offsets = [0, 0], sizes = [8, 14], strides = [1, 1]} : vector<8x56xf32> to vector<8x14xf32>
    %179 = vector.extract_strided_slice %177 {offsets = [0, 14], sizes = [8, 14], strides = [1, 1]} : vector<8x56xf32> to vector<8x14xf32>
    %180 = arith.maximumf %178, %179 : vector<8x14xf32>
    %181 = vector.extract_strided_slice %177 {offsets = [0, 28], sizes = [8, 14], strides = [1, 1]} : vector<8x56xf32> to vector<8x14xf32>
    %182 = arith.maximumf %180, %181 : vector<8x14xf32>
    %183 = vector.extract_strided_slice %177 {offsets = [0, 42], sizes = [8, 14], strides = [1, 1]} : vector<8x56xf32> to vector<8x14xf32>
    %184 = arith.maximumf %182, %183 : vector<8x14xf32>
    %185 = vector.broadcast %1 : vector<8x1xf32> to vector<8x14xf32>
    %186 = arith.addf %184, %185 : vector<8x14xf32>
    %cst_296 = arith.constant 0.000000e+00 : f32
    %187 = vector.broadcast %cst_296 : f32 to vector<8x14xf32>
    %188 = arith.maximumf %186, %187 : vector<8x14xf32>
    %189 = arith.truncf %188 : vector<8x14xf32> to vector<8x14xbf16>
    %c0_297 = arith.constant 0 : index
    %c28_298 = arith.constant 28 : index
    %190 = vector.load %arg4[%c0_297, %c28_298] : memref<8x98xbf16, #tpu.memory_space<vmem>>, vector<8x14xbf16>
    tpu.vector_store %arg4[%c0_297, %c28_298], %189 {strides = array<i32>} : memref<8x98xbf16, #tpu.memory_space<vmem>>, vector<8x14xbf16>,
    %c0_299 = arith.constant 0 : index
    %c3_300 = arith.constant 3 : index
    %c0_301 = arith.constant 0 : index
    %c0_302 = arith.constant 0 : index
    %191 = vector.load %arg1[%c0_299, %c3_300, %c0_301, %c0_302] : memref<4x8x4x16xbf16, #tpu.memory_space<vmem>>, vector<1x1x4x14xbf16>
    %192 = vector.shape_cast %191 : vector<1x1x4x14xbf16> to vector<4x14xbf16>
    %c0_303 = arith.constant 0 : index
    %c0_304 = arith.constant 0 : index
    %193 = vector.load %arg5[%c0_303, %c0_304] : memref<16x56xbf16, #tpu.memory_space<vmem>>, vector<4x14xbf16>
    tpu.vector_store %arg5[%c0_303, %c0_304], %192 {strides = array<i32>} : memref<16x56xbf16, #tpu.memory_space<vmem>>, vector<4x14xbf16>,
    %c1_305 = arith.constant 1 : index
    %c3_306 = arith.constant 3 : index
    %c0_307 = arith.constant 0 : index
    %c0_308 = arith.constant 0 : index
    %194 = vector.load %arg1[%c1_305, %c3_306, %c0_307, %c0_308] : memref<4x8x4x16xbf16, #tpu.memory_space<vmem>>, vector<1x1x4x14xbf16>
    %195 = vector.shape_cast %194 : vector<1x1x4x14xbf16> to vector<4x14xbf16>
    %c4_309 = arith.constant 4 : index
    %c0_310 = arith.constant 0 : index
    %196 = vector.load %arg5[%c4_309, %c0_310] : memref<16x56xbf16, #tpu.memory_space<vmem>>, vector<4x14xbf16>
    tpu.vector_store %arg5[%c4_309, %c0_310], %195 {strides = array<i32>} : memref<16x56xbf16, #tpu.memory_space<vmem>>, vector<4x14xbf16>,
    %c2_311 = arith.constant 2 : index
    %c3_312 = arith.constant 3 : index
    %c0_313 = arith.constant 0 : index
    %c0_314 = arith.constant 0 : index
    %197 = vector.load %arg1[%c2_311, %c3_312, %c0_313, %c0_314] : memref<4x8x4x16xbf16, #tpu.memory_space<vmem>>, vector<1x1x4x14xbf16>
    %198 = vector.shape_cast %197 : vector<1x1x4x14xbf16> to vector<4x14xbf16>
    %c8_315 = arith.constant 8 : index
    %c0_316 = arith.constant 0 : index
    %199 = vector.load %arg5[%c8_315, %c0_316] : memref<16x56xbf16, #tpu.memory_space<vmem>>, vector<4x14xbf16>
    tpu.vector_store %arg5[%c8_315, %c0_316], %198 {strides = array<i32>} : memref<16x56xbf16, #tpu.memory_space<vmem>>, vector<4x14xbf16>,
    %c3_317 = arith.constant 3 : index
    %c3_318 = arith.constant 3 : index
    %c0_319 = arith.constant 0 : index
    %c0_320 = arith.constant 0 : index
    %200 = vector.load %arg1[%c3_317, %c3_318, %c0_319, %c0_320] : memref<4x8x4x16xbf16, #tpu.memory_space<vmem>>, vector<1x1x4x14xbf16>
    %201 = vector.shape_cast %200 : vector<1x1x4x14xbf16> to vector<4x14xbf16>
    %c12_321 = arith.constant 12 : index
    %c0_322 = arith.constant 0 : index
    %202 = vector.load %arg5[%c12_321, %c0_322] : memref<16x56xbf16, #tpu.memory_space<vmem>>, vector<4x14xbf16>
    tpu.vector_store %arg5[%c12_321, %c0_322], %201 {strides = array<i32>} : memref<16x56xbf16, #tpu.memory_space<vmem>>, vector<4x14xbf16>,
    %c1_323 = arith.constant 1 : index
    %c3_324 = arith.constant 3 : index
    %c0_325 = arith.constant 0 : index
    %c0_326 = arith.constant 0 : index
    %203 = vector.load %arg1[%c1_323, %c3_324, %c0_325, %c0_326] : memref<4x8x4x16xbf16, #tpu.memory_space<vmem>>, vector<1x1x4x14xbf16>
    %204 = vector.shape_cast %203 : vector<1x1x4x14xbf16> to vector<4x14xbf16>
    %c0_327 = arith.constant 0 : index
    %c14_328 = arith.constant 14 : index
    %205 = vector.load %arg5[%c0_327, %c14_328] : memref<16x56xbf16, #tpu.memory_space<vmem>>, vector<4x14xbf16>
    tpu.vector_store %arg5[%c0_327, %c14_328], %204 {strides = array<i32>} : memref<16x56xbf16, #tpu.memory_space<vmem>>, vector<4x14xbf16>,
    %c0_329 = arith.constant 0 : index
    %c3_330 = arith.constant 3 : index
    %c0_331 = arith.constant 0 : index
    %c2_332 = arith.constant 2 : index
    %206 = vector.load %arg1[%c0_329, %c3_330, %c0_331, %c2_332] : memref<4x8x4x16xbf16, #tpu.memory_space<vmem>>, vector<1x1x4x14xbf16>
    %207 = vector.shape_cast %206 : vector<1x1x4x14xbf16> to vector<4x14xbf16>
    %c4_333 = arith.constant 4 : index
    %c14_334 = arith.constant 14 : index
    %208 = vector.load %arg5[%c4_333, %c14_334] : memref<16x56xbf16, #tpu.memory_space<vmem>>, vector<4x14xbf16>
    tpu.vector_store %arg5[%c4_333, %c14_334], %207 {strides = array<i32>} : memref<16x56xbf16, #tpu.memory_space<vmem>>, vector<4x14xbf16>,
    %c3_335 = arith.constant 3 : index
    %c3_336 = arith.constant 3 : index
    %c0_337 = arith.constant 0 : index
    %c0_338 = arith.constant 0 : index
    %209 = vector.load %arg1[%c3_335, %c3_336, %c0_337, %c0_338] : memref<4x8x4x16xbf16, #tpu.memory_space<vmem>>, vector<1x1x4x14xbf16>
    %210 = vector.shape_cast %209 : vector<1x1x4x14xbf16> to vector<4x14xbf16>
    %c8_339 = arith.constant 8 : index
    %c14_340 = arith.constant 14 : index
    %211 = vector.load %arg5[%c8_339, %c14_340] : memref<16x56xbf16, #tpu.memory_space<vmem>>, vector<4x14xbf16>
    tpu.vector_store %arg5[%c8_339, %c14_340], %210 {strides = array<i32>} : memref<16x56xbf16, #tpu.memory_space<vmem>>, vector<4x14xbf16>,
    %c2_341 = arith.constant 2 : index
    %c3_342 = arith.constant 3 : index
    %c0_343 = arith.constant 0 : index
    %c2_344 = arith.constant 2 : index
    %212 = vector.load %arg1[%c2_341, %c3_342, %c0_343, %c2_344] : memref<4x8x4x16xbf16, #tpu.memory_space<vmem>>, vector<1x1x4x14xbf16>
    %213 = vector.shape_cast %212 : vector<1x1x4x14xbf16> to vector<4x14xbf16>
    %c12_345 = arith.constant 12 : index
    %c14_346 = arith.constant 14 : index
    %214 = vector.load %arg5[%c12_345, %c14_346] : memref<16x56xbf16, #tpu.memory_space<vmem>>, vector<4x14xbf16>
    tpu.vector_store %arg5[%c12_345, %c14_346], %213 {strides = array<i32>} : memref<16x56xbf16, #tpu.memory_space<vmem>>, vector<4x14xbf16>,
    %c2_347 = arith.constant 2 : index
    %c3_348 = arith.constant 3 : index
    %c0_349 = arith.constant 0 : index
    %c0_350 = arith.constant 0 : index
    %215 = vector.load %arg1[%c2_347, %c3_348, %c0_349, %c0_350] : memref<4x8x4x16xbf16, #tpu.memory_space<vmem>>, vector<1x1x4x14xbf16>
    %216 = vector.shape_cast %215 : vector<1x1x4x14xbf16> to vector<4x14xbf16>
    %c0_351 = arith.constant 0 : index
    %c28_352 = arith.constant 28 : index
    %217 = vector.load %arg5[%c0_351, %c28_352] : memref<16x56xbf16, #tpu.memory_space<vmem>>, vector<4x14xbf16>
    tpu.vector_store %arg5[%c0_351, %c28_352], %216 {strides = array<i32>} : memref<16x56xbf16, #tpu.memory_space<vmem>>, vector<4x14xbf16>,
    %c3_353 = arith.constant 3 : index
    %c3_354 = arith.constant 3 : index
    %c0_355 = arith.constant 0 : index
    %c0_356 = arith.constant 0 : index
    %218 = vector.load %arg1[%c3_353, %c3_354, %c0_355, %c0_356] : memref<4x8x4x16xbf16, #tpu.memory_space<vmem>>, vector<1x1x4x14xbf16>
    %219 = vector.shape_cast %218 : vector<1x1x4x14xbf16> to vector<4x14xbf16>
    %c4_357 = arith.constant 4 : index
    %c28_358 = arith.constant 28 : index
    %220 = vector.load %arg5[%c4_357, %c28_358] : memref<16x56xbf16, #tpu.memory_space<vmem>>, vector<4x14xbf16>
    tpu.vector_store %arg5[%c4_357, %c28_358], %219 {strides = array<i32>} : memref<16x56xbf16, #tpu.memory_space<vmem>>, vector<4x14xbf16>,
    %c0_359 = arith.constant 0 : index
    %c4_360 = arith.constant 4 : index
    %c0_361 = arith.constant 0 : index
    %c0_362 = arith.constant 0 : index
    %221 = vector.load %arg1[%c0_359, %c4_360, %c0_361, %c0_362] : memref<4x8x4x16xbf16, #tpu.memory_space<vmem>>, vector<1x1x4x14xbf16>
    %222 = vector.shape_cast %221 : vector<1x1x4x14xbf16> to vector<4x14xbf16>
    %c8_363 = arith.constant 8 : index
    %c28_364 = arith.constant 28 : index
    %223 = vector.load %arg5[%c8_363, %c28_364] : memref<16x56xbf16, #tpu.memory_space<vmem>>, vector<4x14xbf16>
    tpu.vector_store %arg5[%c8_363, %c28_364], %222 {strides = array<i32>} : memref<16x56xbf16, #tpu.memory_space<vmem>>, vector<4x14xbf16>,
    %c1_365 = arith.constant 1 : index
    %c4_366 = arith.constant 4 : index
    %c0_367 = arith.constant 0 : index
    %c0_368 = arith.constant 0 : index
    %224 = vector.load %arg1[%c1_365, %c4_366, %c0_367, %c0_368] : memref<4x8x4x16xbf16, #tpu.memory_space<vmem>>, vector<1x1x4x14xbf16>
    %225 = vector.shape_cast %224 : vector<1x1x4x14xbf16> to vector<4x14xbf16>
    %c12_369 = arith.constant 12 : index
    %c28_370 = arith.constant 28 : index
    %226 = vector.load %arg5[%c12_369, %c28_370] : memref<16x56xbf16, #tpu.memory_space<vmem>>, vector<4x14xbf16>
    tpu.vector_store %arg5[%c12_369, %c28_370], %225 {strides = array<i32>} : memref<16x56xbf16, #tpu.memory_space<vmem>>, vector<4x14xbf16>,
    %c3_371 = arith.constant 3 : index
    %c3_372 = arith.constant 3 : index
    %c0_373 = arith.constant 0 : index
    %c0_374 = arith.constant 0 : index
    %227 = vector.load %arg1[%c3_371, %c3_372, %c0_373, %c0_374] : memref<4x8x4x16xbf16, #tpu.memory_space<vmem>>, vector<1x1x4x14xbf16>
    %228 = vector.shape_cast %227 : vector<1x1x4x14xbf16> to vector<4x14xbf16>
    %c0_375 = arith.constant 0 : index
    %c42_376 = arith.constant 42 : index
    %229 = vector.load %arg5[%c0_375, %c42_376] : memref<16x56xbf16, #tpu.memory_space<vmem>>, vector<4x14xbf16>
    tpu.vector_store %arg5[%c0_375, %c42_376], %228 {strides = array<i32>} : memref<16x56xbf16, #tpu.memory_space<vmem>>, vector<4x14xbf16>,
    %c2_377 = arith.constant 2 : index
    %c3_378 = arith.constant 3 : index
    %c0_379 = arith.constant 0 : index
    %c2_380 = arith.constant 2 : index
    %230 = vector.load %arg1[%c2_377, %c3_378, %c0_379, %c2_380] : memref<4x8x4x16xbf16, #tpu.memory_space<vmem>>, vector<1x1x4x14xbf16>
    %231 = vector.shape_cast %230 : vector<1x1x4x14xbf16> to vector<4x14xbf16>
    %c4_381 = arith.constant 4 : index
    %c42_382 = arith.constant 42 : index
    %232 = vector.load %arg5[%c4_381, %c42_382] : memref<16x56xbf16, #tpu.memory_space<vmem>>, vector<4x14xbf16>
    tpu.vector_store %arg5[%c4_381, %c42_382], %231 {strides = array<i32>} : memref<16x56xbf16, #tpu.memory_space<vmem>>, vector<4x14xbf16>,
    %c1_383 = arith.constant 1 : index
    %c4_384 = arith.constant 4 : index
    %c0_385 = arith.constant 0 : index
    %c0_386 = arith.constant 0 : index
    %233 = vector.load %arg1[%c1_383, %c4_384, %c0_385, %c0_386] : memref<4x8x4x16xbf16, #tpu.memory_space<vmem>>, vector<1x1x4x14xbf16>
    %234 = vector.shape_cast %233 : vector<1x1x4x14xbf16> to vector<4x14xbf16>
    %c8_387 = arith.constant 8 : index
    %c42_388 = arith.constant 42 : index
    %235 = vector.load %arg5[%c8_387, %c42_388] : memref<16x56xbf16, #tpu.memory_space<vmem>>, vector<4x14xbf16>
    tpu.vector_store %arg5[%c8_387, %c42_388], %234 {strides = array<i32>} : memref<16x56xbf16, #tpu.memory_space<vmem>>, vector<4x14xbf16>,
    %c0_389 = arith.constant 0 : index
    %c4_390 = arith.constant 4 : index
    %c0_391 = arith.constant 0 : index
    %c2_392 = arith.constant 2 : index
    %236 = vector.load %arg1[%c0_389, %c4_390, %c0_391, %c2_392] : memref<4x8x4x16xbf16, #tpu.memory_space<vmem>>, vector<1x1x4x14xbf16>
    %237 = vector.shape_cast %236 : vector<1x1x4x14xbf16> to vector<4x14xbf16>
    %c12_393 = arith.constant 12 : index
    %c42_394 = arith.constant 42 : index
    %238 = vector.load %arg5[%c12_393, %c42_394] : memref<16x56xbf16, #tpu.memory_space<vmem>>, vector<4x14xbf16>
    tpu.vector_store %arg5[%c12_393, %c42_394], %237 {strides = array<i32>} : memref<16x56xbf16, #tpu.memory_space<vmem>>, vector<4x14xbf16>,
    %c0_395 = arith.constant 0 : index
    %c0_396 = arith.constant 0 : index
    %239 = vector.load %arg5[%c0_395, %c0_396] : memref<16x56xbf16, #tpu.memory_space<vmem>>, vector<16x56xbf16>
    %cst_397 = arith.constant dense<0.000000e+00> : vector<8x56xf32>
    %240 = tpu.matmul %0, %239, %cst_397 {dimension_numbers = #tpu.dot_dimension_numbers<[1], [0], [0], [1], [0, 0, 1, 1], [], []>} : vector<8x16xbf16>, vector<16x56xbf16>, vector<8x56xf32> -> vector<8x56xf32>
    %241 = vector.extract_strided_slice %240 {offsets = [0, 0], sizes = [8, 14], strides = [1, 1]} : vector<8x56xf32> to vector<8x14xf32>
    %242 = vector.extract_strided_slice %240 {offsets = [0, 14], sizes = [8, 14], strides = [1, 1]} : vector<8x56xf32> to vector<8x14xf32>
    %243 = arith.maximumf %241, %242 : vector<8x14xf32>
    %244 = vector.extract_strided_slice %240 {offsets = [0, 28], sizes = [8, 14], strides = [1, 1]} : vector<8x56xf32> to vector<8x14xf32>
    %245 = arith.maximumf %243, %244 : vector<8x14xf32>
    %246 = vector.extract_strided_slice %240 {offsets = [0, 42], sizes = [8, 14], strides = [1, 1]} : vector<8x56xf32> to vector<8x14xf32>
    %247 = arith.maximumf %245, %246 : vector<8x14xf32>
    %248 = vector.broadcast %1 : vector<8x1xf32> to vector<8x14xf32>
    %249 = arith.addf %247, %248 : vector<8x14xf32>
    %cst_398 = arith.constant 0.000000e+00 : f32
    %250 = vector.broadcast %cst_398 : f32 to vector<8x14xf32>
    %251 = arith.maximumf %249, %250 : vector<8x14xf32>
    %252 = arith.truncf %251 : vector<8x14xf32> to vector<8x14xbf16>
    %c0_399 = arith.constant 0 : index
    %c42_400 = arith.constant 42 : index
    %253 = vector.load %arg4[%c0_399, %c42_400] : memref<8x98xbf16, #tpu.memory_space<vmem>>, vector<8x14xbf16>
    tpu.vector_store %arg4[%c0_399, %c42_400], %252 {strides = array<i32>} : memref<8x98xbf16, #tpu.memory_space<vmem>>, vector<8x14xbf16>,
    %c0_401 = arith.constant 0 : index
    %c4_402 = arith.constant 4 : index
    %c0_403 = arith.constant 0 : index
    %c0_404 = arith.constant 0 : index
    %254 = vector.load %arg1[%c0_401, %c4_402, %c0_403, %c0_404] : memref<4x8x4x16xbf16, #tpu.memory_space<vmem>>, vector<1x1x4x14xbf16>
    %255 = vector.shape_cast %254 : vector<1x1x4x14xbf16> to vector<4x14xbf16>
    %c0_405 = arith.constant 0 : index
    %c0_406 = arith.constant 0 : index
    %256 = vector.load %arg5[%c0_405, %c0_406] : memref<16x56xbf16, #tpu.memory_space<vmem>>, vector<4x14xbf16>
    tpu.vector_store %arg5[%c0_405, %c0_406], %255 {strides = array<i32>} : memref<16x56xbf16, #tpu.memory_space<vmem>>, vector<4x14xbf16>,
    %c1_407 = arith.constant 1 : index
    %c4_408 = arith.constant 4 : index
    %c0_409 = arith.constant 0 : index
    %c0_410 = arith.constant 0 : index
    %257 = vector.load %arg1[%c1_407, %c4_408, %c0_409, %c0_410] : memref<4x8x4x16xbf16, #tpu.memory_space<vmem>>, vector<1x1x4x14xbf16>
    %258 = vector.shape_cast %257 : vector<1x1x4x14xbf16> to vector<4x14xbf16>
    %c4_411 = arith.constant 4 : index
    %c0_412 = arith.constant 0 : index
    %259 = vector.load %arg5[%c4_411, %c0_412] : memref<16x56xbf16, #tpu.memory_space<vmem>>, vector<4x14xbf16>
    tpu.vector_store %arg5[%c4_411, %c0_412], %258 {strides = array<i32>} : memref<16x56xbf16, #tpu.memory_space<vmem>>, vector<4x14xbf16>,
    %c2_413 = arith.constant 2 : index
    %c4_414 = arith.constant 4 : index
    %c0_415 = arith.constant 0 : index
    %c0_416 = arith.constant 0 : index
    %260 = vector.load %arg1[%c2_413, %c4_414, %c0_415, %c0_416] : memref<4x8x4x16xbf16, #tpu.memory_space<vmem>>, vector<1x1x4x14xbf16>
    %261 = vector.shape_cast %260 : vector<1x1x4x14xbf16> to vector<4x14xbf16>
    %c8_417 = arith.constant 8 : index
    %c0_418 = arith.constant 0 : index
    %262 = vector.load %arg5[%c8_417, %c0_418] : memref<16x56xbf16, #tpu.memory_space<vmem>>, vector<4x14xbf16>
    tpu.vector_store %arg5[%c8_417, %c0_418], %261 {strides = array<i32>} : memref<16x56xbf16, #tpu.memory_space<vmem>>, vector<4x14xbf16>,
    %c3_419 = arith.constant 3 : index
    %c4_420 = arith.constant 4 : index
    %c0_421 = arith.constant 0 : index
    %c0_422 = arith.constant 0 : index
    %263 = vector.load %arg1[%c3_419, %c4_420, %c0_421, %c0_422] : memref<4x8x4x16xbf16, #tpu.memory_space<vmem>>, vector<1x1x4x14xbf16>
    %264 = vector.shape_cast %263 : vector<1x1x4x14xbf16> to vector<4x14xbf16>
    %c12_423 = arith.constant 12 : index
    %c0_424 = arith.constant 0 : index
    %265 = vector.load %arg5[%c12_423, %c0_424] : memref<16x56xbf16, #tpu.memory_space<vmem>>, vector<4x14xbf16>
    tpu.vector_store %arg5[%c12_423, %c0_424], %264 {strides = array<i32>} : memref<16x56xbf16, #tpu.memory_space<vmem>>, vector<4x14xbf16>,
    %c1_425 = arith.constant 1 : index
    %c4_426 = arith.constant 4 : index
    %c0_427 = arith.constant 0 : index
    %c0_428 = arith.constant 0 : index
    %266 = vector.load %arg1[%c1_425, %c4_426, %c0_427, %c0_428] : memref<4x8x4x16xbf16, #tpu.memory_space<vmem>>, vector<1x1x4x14xbf16>
    %267 = vector.shape_cast %266 : vector<1x1x4x14xbf16> to vector<4x14xbf16>
    %c0_429 = arith.constant 0 : index
    %c14_430 = arith.constant 14 : index
    %268 = vector.load %arg5[%c0_429, %c14_430] : memref<16x56xbf16, #tpu.memory_space<vmem>>, vector<4x14xbf16>
    tpu.vector_store %arg5[%c0_429, %c14_430], %267 {strides = array<i32>} : memref<16x56xbf16, #tpu.memory_space<vmem>>, vector<4x14xbf16>,
    %c0_431 = arith.constant 0 : index
    %c4_432 = arith.constant 4 : index
    %c0_433 = arith.constant 0 : index
    %c2_434 = arith.constant 2 : index
    %269 = vector.load %arg1[%c0_431, %c4_432, %c0_433, %c2_434] : memref<4x8x4x16xbf16, #tpu.memory_space<vmem>>, vector<1x1x4x14xbf16>
    %270 = vector.shape_cast %269 : vector<1x1x4x14xbf16> to vector<4x14xbf16>
    %c4_435 = arith.constant 4 : index
    %c14_436 = arith.constant 14 : index
    %271 = vector.load %arg5[%c4_435, %c14_436] : memref<16x56xbf16, #tpu.memory_space<vmem>>, vector<4x14xbf16>
    tpu.vector_store %arg5[%c4_435, %c14_436], %270 {strides = array<i32>} : memref<16x56xbf16, #tpu.memory_space<vmem>>, vector<4x14xbf16>,
    %c3_437 = arith.constant 3 : index
    %c4_438 = arith.constant 4 : index
    %c0_439 = arith.constant 0 : index
    %c0_440 = arith.constant 0 : index
    %272 = vector.load %arg1[%c3_437, %c4_438, %c0_439, %c0_440] : memref<4x8x4x16xbf16, #tpu.memory_space<vmem>>, vector<1x1x4x14xbf16>
    %273 = vector.shape_cast %272 : vector<1x1x4x14xbf16> to vector<4x14xbf16>
    %c8_441 = arith.constant 8 : index
    %c14_442 = arith.constant 14 : index
    %274 = vector.load %arg5[%c8_441, %c14_442] : memref<16x56xbf16, #tpu.memory_space<vmem>>, vector<4x14xbf16>
    tpu.vector_store %arg5[%c8_441, %c14_442], %273 {strides = array<i32>} : memref<16x56xbf16, #tpu.memory_space<vmem>>, vector<4x14xbf16>,
    %c2_443 = arith.constant 2 : index
    %c4_444 = arith.constant 4 : index
    %c0_445 = arith.constant 0 : index
    %c2_446 = arith.constant 2 : index
    %275 = vector.load %arg1[%c2_443, %c4_444, %c0_445, %c2_446] : memref<4x8x4x16xbf16, #tpu.memory_space<vmem>>, vector<1x1x4x14xbf16>
    %276 = vector.shape_cast %275 : vector<1x1x4x14xbf16> to vector<4x14xbf16>
    %c12_447 = arith.constant 12 : index
    %c14_448 = arith.constant 14 : index
    %277 = vector.load %arg5[%c12_447, %c14_448] : memref<16x56xbf16, #tpu.memory_space<vmem>>, vector<4x14xbf16>
    tpu.vector_store %arg5[%c12_447, %c14_448], %276 {strides = array<i32>} : memref<16x56xbf16, #tpu.memory_space<vmem>>, vector<4x14xbf16>,
    %c2_449 = arith.constant 2 : index
    %c4_450 = arith.constant 4 : index
    %c0_451 = arith.constant 0 : index
    %c0_452 = arith.constant 0 : index
    %278 = vector.load %arg1[%c2_449, %c4_450, %c0_451, %c0_452] : memref<4x8x4x16xbf16, #tpu.memory_space<vmem>>, vector<1x1x4x14xbf16>
    %279 = vector.shape_cast %278 : vector<1x1x4x14xbf16> to vector<4x14xbf16>
    %c0_453 = arith.constant 0 : index
    %c28_454 = arith.constant 28 : index
    %280 = vector.load %arg5[%c0_453, %c28_454] : memref<16x56xbf16, #tpu.memory_space<vmem>>, vector<4x14xbf16>
    tpu.vector_store %arg5[%c0_453, %c28_454], %279 {strides = array<i32>} : memref<16x56xbf16, #tpu.memory_space<vmem>>, vector<4x14xbf16>,
    %c3_455 = arith.constant 3 : index
    %c4_456 = arith.constant 4 : index
    %c0_457 = arith.constant 0 : index
    %c0_458 = arith.constant 0 : index
    %281 = vector.load %arg1[%c3_455, %c4_456, %c0_457, %c0_458] : memref<4x8x4x16xbf16, #tpu.memory_space<vmem>>, vector<1x1x4x14xbf16>
    %282 = vector.shape_cast %281 : vector<1x1x4x14xbf16> to vector<4x14xbf16>
    %c4_459 = arith.constant 4 : index
    %c28_460 = arith.constant 28 : index
    %283 = vector.load %arg5[%c4_459, %c28_460] : memref<16x56xbf16, #tpu.memory_space<vmem>>, vector<4x14xbf16>
    tpu.vector_store %arg5[%c4_459, %c28_460], %282 {strides = array<i32>} : memref<16x56xbf16, #tpu.memory_space<vmem>>, vector<4x14xbf16>,
    %c0_461 = arith.constant 0 : index
    %c5 = arith.constant 5 : index
    %c0_462 = arith.constant 0 : index
    %c0_463 = arith.constant 0 : index
    %284 = vector.load %arg1[%c0_461, %c5, %c0_462, %c0_463] : memref<4x8x4x16xbf16, #tpu.memory_space<vmem>>, vector<1x1x4x14xbf16>
    %285 = vector.shape_cast %284 : vector<1x1x4x14xbf16> to vector<4x14xbf16>
    %c8_464 = arith.constant 8 : index
    %c28_465 = arith.constant 28 : index
    %286 = vector.load %arg5[%c8_464, %c28_465] : memref<16x56xbf16, #tpu.memory_space<vmem>>, vector<4x14xbf16>
    tpu.vector_store %arg5[%c8_464, %c28_465], %285 {strides = array<i32>} : memref<16x56xbf16, #tpu.memory_space<vmem>>, vector<4x14xbf16>,
    %c1_466 = arith.constant 1 : index
    %c5_467 = arith.constant 5 : index
    %c0_468 = arith.constant 0 : index
    %c0_469 = arith.constant 0 : index
    %287 = vector.load %arg1[%c1_466, %c5_467, %c0_468, %c0_469] : memref<4x8x4x16xbf16, #tpu.memory_space<vmem>>, vector<1x1x4x14xbf16>
    %288 = vector.shape_cast %287 : vector<1x1x4x14xbf16> to vector<4x14xbf16>
    %c12_470 = arith.constant 12 : index
    %c28_471 = arith.constant 28 : index
    %289 = vector.load %arg5[%c12_470, %c28_471] : memref<16x56xbf16, #tpu.memory_space<vmem>>, vector<4x14xbf16>
    tpu.vector_store %arg5[%c12_470, %c28_471], %288 {strides = array<i32>} : memref<16x56xbf16, #tpu.memory_space<vmem>>, vector<4x14xbf16>,
    %c3_472 = arith.constant 3 : index
    %c4_473 = arith.constant 4 : index
    %c0_474 = arith.constant 0 : index
    %c0_475 = arith.constant 0 : index
    %290 = vector.load %arg1[%c3_472, %c4_473, %c0_474, %c0_475] : memref<4x8x4x16xbf16, #tpu.memory_space<vmem>>, vector<1x1x4x14xbf16>
    %291 = vector.shape_cast %290 : vector<1x1x4x14xbf16> to vector<4x14xbf16>
    %c0_476 = arith.constant 0 : index
    %c42_477 = arith.constant 42 : index
    %292 = vector.load %arg5[%c0_476, %c42_477] : memref<16x56xbf16, #tpu.memory_space<vmem>>, vector<4x14xbf16>
    tpu.vector_store %arg5[%c0_476, %c42_477], %291 {strides = array<i32>} : memref<16x56xbf16, #tpu.memory_space<vmem>>, vector<4x14xbf16>,
    %c2_478 = arith.constant 2 : index
    %c4_479 = arith.constant 4 : index
    %c0_480 = arith.constant 0 : index
    %c2_481 = arith.constant 2 : index
    %293 = vector.load %arg1[%c2_478, %c4_479, %c0_480, %c2_481] : memref<4x8x4x16xbf16, #tpu.memory_space<vmem>>, vector<1x1x4x14xbf16>
    %294 = vector.shape_cast %293 : vector<1x1x4x14xbf16> to vector<4x14xbf16>
    %c4_482 = arith.constant 4 : index
    %c42_483 = arith.constant 42 : index
    %295 = vector.load %arg5[%c4_482, %c42_483] : memref<16x56xbf16, #tpu.memory_space<vmem>>, vector<4x14xbf16>
    tpu.vector_store %arg5[%c4_482, %c42_483], %294 {strides = array<i32>} : memref<16x56xbf16, #tpu.memory_space<vmem>>, vector<4x14xbf16>,
    %c1_484 = arith.constant 1 : index
    %c5_485 = arith.constant 5 : index
    %c0_486 = arith.constant 0 : index
    %c0_487 = arith.constant 0 : index
    %296 = vector.load %arg1[%c1_484, %c5_485, %c0_486, %c0_487] : memref<4x8x4x16xbf16, #tpu.memory_space<vmem>>, vector<1x1x4x14xbf16>
    %297 = vector.shape_cast %296 : vector<1x1x4x14xbf16> to vector<4x14xbf16>
    %c8_488 = arith.constant 8 : index
    %c42_489 = arith.constant 42 : index
    %298 = vector.load %arg5[%c8_488, %c42_489] : memref<16x56xbf16, #tpu.memory_space<vmem>>, vector<4x14xbf16>
    tpu.vector_store %arg5[%c8_488, %c42_489], %297 {strides = array<i32>} : memref<16x56xbf16, #tpu.memory_space<vmem>>, vector<4x14xbf16>,
    %c0_490 = arith.constant 0 : index
    %c5_491 = arith.constant 5 : index
    %c0_492 = arith.constant 0 : index
    %c2_493 = arith.constant 2 : index
    %299 = vector.load %arg1[%c0_490, %c5_491, %c0_492, %c2_493] : memref<4x8x4x16xbf16, #tpu.memory_space<vmem>>, vector<1x1x4x14xbf16>
    %300 = vector.shape_cast %299 : vector<1x1x4x14xbf16> to vector<4x14xbf16>
    %c12_494 = arith.constant 12 : index
    %c42_495 = arith.constant 42 : index
    %301 = vector.load %arg5[%c12_494, %c42_495] : memref<16x56xbf16, #tpu.memory_space<vmem>>, vector<4x14xbf16>
    tpu.vector_store %arg5[%c12_494, %c42_495], %300 {strides = array<i32>} : memref<16x56xbf16, #tpu.memory_space<vmem>>, vector<4x14xbf16>,
    %c0_496 = arith.constant 0 : index
    %c0_497 = arith.constant 0 : index
    %302 = vector.load %arg5[%c0_496, %c0_497] : memref<16x56xbf16, #tpu.memory_space<vmem>>, vector<16x56xbf16>
    %cst_498 = arith.constant dense<0.000000e+00> : vector<8x56xf32>
    %303 = tpu.matmul %0, %302, %cst_498 {dimension_numbers = #tpu.dot_dimension_numbers<[1], [0], [0], [1], [0, 0, 1, 1], [], []>} : vector<8x16xbf16>, vector<16x56xbf16>, vector<8x56xf32> -> vector<8x56xf32>
    %304 = vector.extract_strided_slice %303 {offsets = [0, 0], sizes = [8, 14], strides = [1, 1]} : vector<8x56xf32> to vector<8x14xf32>
    %305 = vector.extract_strided_slice %303 {offsets = [0, 14], sizes = [8, 14], strides = [1, 1]} : vector<8x56xf32> to vector<8x14xf32>
    %306 = arith.maximumf %304, %305 : vector<8x14xf32>
    %307 = vector.extract_strided_slice %303 {offsets = [0, 28], sizes = [8, 14], strides = [1, 1]} : vector<8x56xf32> to vector<8x14xf32>
    %308 = arith.maximumf %306, %307 : vector<8x14xf32>
    %309 = vector.extract_strided_slice %303 {offsets = [0, 42], sizes = [8, 14], strides = [1, 1]} : vector<8x56xf32> to vector<8x14xf32>
    %310 = arith.maximumf %308, %309 : vector<8x14xf32>
    %311 = vector.broadcast %1 : vector<8x1xf32> to vector<8x14xf32>
    %312 = arith.addf %310, %311 : vector<8x14xf32>
    %cst_499 = arith.constant 0.000000e+00 : f32
    %313 = vector.broadcast %cst_499 : f32 to vector<8x14xf32>
    %314 = arith.maximumf %312, %313 : vector<8x14xf32>
    %315 = arith.truncf %314 : vector<8x14xf32> to vector<8x14xbf16>
    %c0_500 = arith.constant 0 : index
    %c56 = arith.constant 56 : index
    %316 = vector.load %arg4[%c0_500, %c56] : memref<8x98xbf16, #tpu.memory_space<vmem>>, vector<8x14xbf16>
    tpu.vector_store %arg4[%c0_500, %c56], %315 {strides = array<i32>} : memref<8x98xbf16, #tpu.memory_space<vmem>>, vector<8x14xbf16>,
    %c0_501 = arith.constant 0 : index
    %c5_502 = arith.constant 5 : index
    %c0_503 = arith.constant 0 : index
    %c0_504 = arith.constant 0 : index
    %317 = vector.load %arg1[%c0_501, %c5_502, %c0_503, %c0_504] : memref<4x8x4x16xbf16, #tpu.memory_space<vmem>>, vector<1x1x4x14xbf16>
    %318 = vector.shape_cast %317 : vector<1x1x4x14xbf16> to vector<4x14xbf16>
    %c0_505 = arith.constant 0 : index
    %c0_506 = arith.constant 0 : index
    %319 = vector.load %arg5[%c0_505, %c0_506] : memref<16x56xbf16, #tpu.memory_space<vmem>>, vector<4x14xbf16>
    tpu.vector_store %arg5[%c0_505, %c0_506], %318 {strides = array<i32>} : memref<16x56xbf16, #tpu.memory_space<vmem>>, vector<4x14xbf16>,
    %c1_507 = arith.constant 1 : index
    %c5_508 = arith.constant 5 : index
    %c0_509 = arith.constant 0 : index
    %c0_510 = arith.constant 0 : index
    %320 = vector.load %arg1[%c1_507, %c5_508, %c0_509, %c0_510] : memref<4x8x4x16xbf16, #tpu.memory_space<vmem>>, vector<1x1x4x14xbf16>
    %321 = vector.shape_cast %320 : vector<1x1x4x14xbf16> to vector<4x14xbf16>
    %c4_511 = arith.constant 4 : index
    %c0_512 = arith.constant 0 : index
    %322 = vector.load %arg5[%c4_511, %c0_512] : memref<16x56xbf16, #tpu.memory_space<vmem>>, vector<4x14xbf16>
    tpu.vector_store %arg5[%c4_511, %c0_512], %321 {strides = array<i32>} : memref<16x56xbf16, #tpu.memory_space<vmem>>, vector<4x14xbf16>,
    %c2_513 = arith.constant 2 : index
    %c5_514 = arith.constant 5 : index
    %c0_515 = arith.constant 0 : index
    %c0_516 = arith.constant 0 : index
    %323 = vector.load %arg1[%c2_513, %c5_514, %c0_515, %c0_516] : memref<4x8x4x16xbf16, #tpu.memory_space<vmem>>, vector<1x1x4x14xbf16>
    %324 = vector.shape_cast %323 : vector<1x1x4x14xbf16> to vector<4x14xbf16>
    %c8_517 = arith.constant 8 : index
    %c0_518 = arith.constant 0 : index
    %325 = vector.load %arg5[%c8_517, %c0_518] : memref<16x56xbf16, #tpu.memory_space<vmem>>, vector<4x14xbf16>
    tpu.vector_store %arg5[%c8_517, %c0_518], %324 {strides = array<i32>} : memref<16x56xbf16, #tpu.memory_space<vmem>>, vector<4x14xbf16>,
    %c3_519 = arith.constant 3 : index
    %c5_520 = arith.constant 5 : index
    %c0_521 = arith.constant 0 : index
    %c0_522 = arith.constant 0 : index
    %326 = vector.load %arg1[%c3_519, %c5_520, %c0_521, %c0_522] : memref<4x8x4x16xbf16, #tpu.memory_space<vmem>>, vector<1x1x4x14xbf16>
    %327 = vector.shape_cast %326 : vector<1x1x4x14xbf16> to vector<4x14xbf16>
    %c12_523 = arith.constant 12 : index
    %c0_524 = arith.constant 0 : index
    %328 = vector.load %arg5[%c12_523, %c0_524] : memref<16x56xbf16, #tpu.memory_space<vmem>>, vector<4x14xbf16>
    tpu.vector_store %arg5[%c12_523, %c0_524], %327 {strides = array<i32>} : memref<16x56xbf16, #tpu.memory_space<vmem>>, vector<4x14xbf16>,
    %c1_525 = arith.constant 1 : index
    %c5_526 = arith.constant 5 : index
    %c0_527 = arith.constant 0 : index
    %c0_528 = arith.constant 0 : index
    %329 = vector.load %arg1[%c1_525, %c5_526, %c0_527, %c0_528] : memref<4x8x4x16xbf16, #tpu.memory_space<vmem>>, vector<1x1x4x14xbf16>
    %330 = vector.shape_cast %329 : vector<1x1x4x14xbf16> to vector<4x14xbf16>
    %c0_529 = arith.constant 0 : index
    %c14_530 = arith.constant 14 : index
    %331 = vector.load %arg5[%c0_529, %c14_530] : memref<16x56xbf16, #tpu.memory_space<vmem>>, vector<4x14xbf16>
    tpu.vector_store %arg5[%c0_529, %c14_530], %330 {strides = array<i32>} : memref<16x56xbf16, #tpu.memory_space<vmem>>, vector<4x14xbf16>,
    %c0_531 = arith.constant 0 : index
    %c5_532 = arith.constant 5 : index
    %c0_533 = arith.constant 0 : index
    %c2_534 = arith.constant 2 : index
    %332 = vector.load %arg1[%c0_531, %c5_532, %c0_533, %c2_534] : memref<4x8x4x16xbf16, #tpu.memory_space<vmem>>, vector<1x1x4x14xbf16>
    %333 = vector.shape_cast %332 : vector<1x1x4x14xbf16> to vector<4x14xbf16>
    %c4_535 = arith.constant 4 : index
    %c14_536 = arith.constant 14 : index
    %334 = vector.load %arg5[%c4_535, %c14_536] : memref<16x56xbf16, #tpu.memory_space<vmem>>, vector<4x14xbf16>
    tpu.vector_store %arg5[%c4_535, %c14_536], %333 {strides = array<i32>} : memref<16x56xbf16, #tpu.memory_space<vmem>>, vector<4x14xbf16>,
    %c3_537 = arith.constant 3 : index
    %c5_538 = arith.constant 5 : index
    %c0_539 = arith.constant 0 : index
    %c0_540 = arith.constant 0 : index
    %335 = vector.load %arg1[%c3_537, %c5_538, %c0_539, %c0_540] : memref<4x8x4x16xbf16, #tpu.memory_space<vmem>>, vector<1x1x4x14xbf16>
    %336 = vector.shape_cast %335 : vector<1x1x4x14xbf16> to vector<4x14xbf16>
    %c8_541 = arith.constant 8 : index
    %c14_542 = arith.constant 14 : index
    %337 = vector.load %arg5[%c8_541, %c14_542] : memref<16x56xbf16, #tpu.memory_space<vmem>>, vector<4x14xbf16>
    tpu.vector_store %arg5[%c8_541, %c14_542], %336 {strides = array<i32>} : memref<16x56xbf16, #tpu.memory_space<vmem>>, vector<4x14xbf16>,
    %c2_543 = arith.constant 2 : index
    %c5_544 = arith.constant 5 : index
    %c0_545 = arith.constant 0 : index
    %c2_546 = arith.constant 2 : index
    %338 = vector.load %arg1[%c2_543, %c5_544, %c0_545, %c2_546] : memref<4x8x4x16xbf16, #tpu.memory_space<vmem>>, vector<1x1x4x14xbf16>
    %339 = vector.shape_cast %338 : vector<1x1x4x14xbf16> to vector<4x14xbf16>
    %c12_547 = arith.constant 12 : index
    %c14_548 = arith.constant 14 : index
    %340 = vector.load %arg5[%c12_547, %c14_548] : memref<16x56xbf16, #tpu.memory_space<vmem>>, vector<4x14xbf16>
    tpu.vector_store %arg5[%c12_547, %c14_548], %339 {strides = array<i32>} : memref<16x56xbf16, #tpu.memory_space<vmem>>, vector<4x14xbf16>,
    %c2_549 = arith.constant 2 : index
    %c5_550 = arith.constant 5 : index
    %c0_551 = arith.constant 0 : index
    %c0_552 = arith.constant 0 : index
    %341 = vector.load %arg1[%c2_549, %c5_550, %c0_551, %c0_552] : memref<4x8x4x16xbf16, #tpu.memory_space<vmem>>, vector<1x1x4x14xbf16>
    %342 = vector.shape_cast %341 : vector<1x1x4x14xbf16> to vector<4x14xbf16>
    %c0_553 = arith.constant 0 : index
    %c28_554 = arith.constant 28 : index
    %343 = vector.load %arg5[%c0_553, %c28_554] : memref<16x56xbf16, #tpu.memory_space<vmem>>, vector<4x14xbf16>
    tpu.vector_store %arg5[%c0_553, %c28_554], %342 {strides = array<i32>} : memref<16x56xbf16, #tpu.memory_space<vmem>>, vector<4x14xbf16>,
    %c3_555 = arith.constant 3 : index
    %c5_556 = arith.constant 5 : index
    %c0_557 = arith.constant 0 : index
    %c0_558 = arith.constant 0 : index
    %344 = vector.load %arg1[%c3_555, %c5_556, %c0_557, %c0_558] : memref<4x8x4x16xbf16, #tpu.memory_space<vmem>>, vector<1x1x4x14xbf16>
    %345 = vector.shape_cast %344 : vector<1x1x4x14xbf16> to vector<4x14xbf16>
    %c4_559 = arith.constant 4 : index
    %c28_560 = arith.constant 28 : index
    %346 = vector.load %arg5[%c4_559, %c28_560] : memref<16x56xbf16, #tpu.memory_space<vmem>>, vector<4x14xbf16>
    tpu.vector_store %arg5[%c4_559, %c28_560], %345 {strides = array<i32>} : memref<16x56xbf16, #tpu.memory_space<vmem>>, vector<4x14xbf16>,
    %c0_561 = arith.constant 0 : index
    %c6 = arith.constant 6 : index
    %c0_562 = arith.constant 0 : index
    %c0_563 = arith.constant 0 : index
    %347 = vector.load %arg1[%c0_561, %c6, %c0_562, %c0_563] : memref<4x8x4x16xbf16, #tpu.memory_space<vmem>>, vector<1x1x4x14xbf16>
    %348 = vector.shape_cast %347 : vector<1x1x4x14xbf16> to vector<4x14xbf16>
    %c8_564 = arith.constant 8 : index
    %c28_565 = arith.constant 28 : index
    %349 = vector.load %arg5[%c8_564, %c28_565] : memref<16x56xbf16, #tpu.memory_space<vmem>>, vector<4x14xbf16>
    tpu.vector_store %arg5[%c8_564, %c28_565], %348 {strides = array<i32>} : memref<16x56xbf16, #tpu.memory_space<vmem>>, vector<4x14xbf16>,
    %c1_566 = arith.constant 1 : index
    %c6_567 = arith.constant 6 : index
    %c0_568 = arith.constant 0 : index
    %c0_569 = arith.constant 0 : index
    %350 = vector.load %arg1[%c1_566, %c6_567, %c0_568, %c0_569] : memref<4x8x4x16xbf16, #tpu.memory_space<vmem>>, vector<1x1x4x14xbf16>
    %351 = vector.shape_cast %350 : vector<1x1x4x14xbf16> to vector<4x14xbf16>
    %c12_570 = arith.constant 12 : index
    %c28_571 = arith.constant 28 : index
    %352 = vector.load %arg5[%c12_570, %c28_571] : memref<16x56xbf16, #tpu.memory_space<vmem>>, vector<4x14xbf16>
    tpu.vector_store %arg5[%c12_570, %c28_571], %351 {strides = array<i32>} : memref<16x56xbf16, #tpu.memory_space<vmem>>, vector<4x14xbf16>,
    %c3_572 = arith.constant 3 : index
    %c5_573 = arith.constant 5 : index
    %c0_574 = arith.constant 0 : index
    %c0_575 = arith.constant 0 : index
    %353 = vector.load %arg1[%c3_572, %c5_573, %c0_574, %c0_575] : memref<4x8x4x16xbf16, #tpu.memory_space<vmem>>, vector<1x1x4x14xbf16>
    %354 = vector.shape_cast %353 : vector<1x1x4x14xbf16> to vector<4x14xbf16>
    %c0_576 = arith.constant 0 : index
    %c42_577 = arith.constant 42 : index
    %355 = vector.load %arg5[%c0_576, %c42_577] : memref<16x56xbf16, #tpu.memory_space<vmem>>, vector<4x14xbf16>
    tpu.vector_store %arg5[%c0_576, %c42_577], %354 {strides = array<i32>} : memref<16x56xbf16, #tpu.memory_space<vmem>>, vector<4x14xbf16>,
    %c2_578 = arith.constant 2 : index
    %c5_579 = arith.constant 5 : index
    %c0_580 = arith.constant 0 : index
    %c2_581 = arith.constant 2 : index
    %356 = vector.load %arg1[%c2_578, %c5_579, %c0_580, %c2_581] : memref<4x8x4x16xbf16, #tpu.memory_space<vmem>>, vector<1x1x4x14xbf16>
    %357 = vector.shape_cast %356 : vector<1x1x4x14xbf16> to vector<4x14xbf16>
    %c4_582 = arith.constant 4 : index
    %c42_583 = arith.constant 42 : index
    %358 = vector.load %arg5[%c4_582, %c42_583] : memref<16x56xbf16, #tpu.memory_space<vmem>>, vector<4x14xbf16>
    tpu.vector_store %arg5[%c4_582, %c42_583], %357 {strides = array<i32>} : memref<16x56xbf16, #tpu.memory_space<vmem>>, vector<4x14xbf16>,
    %c1_584 = arith.constant 1 : index
    %c6_585 = arith.constant 6 : index
    %c0_586 = arith.constant 0 : index
    %c0_587 = arith.constant 0 : index
    %359 = vector.load %arg1[%c1_584, %c6_585, %c0_586, %c0_587] : memref<4x8x4x16xbf16, #tpu.memory_space<vmem>>, vector<1x1x4x14xbf16>
    %360 = vector.shape_cast %359 : vector<1x1x4x14xbf16> to vector<4x14xbf16>
    %c8_588 = arith.constant 8 : index
    %c42_589 = arith.constant 42 : index
    %361 = vector.load %arg5[%c8_588, %c42_589] : memref<16x56xbf16, #tpu.memory_space<vmem>>, vector<4x14xbf16>
    tpu.vector_store %arg5[%c8_588, %c42_589], %360 {strides = array<i32>} : memref<16x56xbf16, #tpu.memory_space<vmem>>, vector<4x14xbf16>,
    %c0_590 = arith.constant 0 : index
    %c6_591 = arith.constant 6 : index
    %c0_592 = arith.constant 0 : index
    %c2_593 = arith.constant 2 : index
    %362 = vector.load %arg1[%c0_590, %c6_591, %c0_592, %c2_593] : memref<4x8x4x16xbf16, #tpu.memory_space<vmem>>, vector<1x1x4x14xbf16>
    %363 = vector.shape_cast %362 : vector<1x1x4x14xbf16> to vector<4x14xbf16>
    %c12_594 = arith.constant 12 : index
    %c42_595 = arith.constant 42 : index
    %364 = vector.load %arg5[%c12_594, %c42_595] : memref<16x56xbf16, #tpu.memory_space<vmem>>, vector<4x14xbf16>
    tpu.vector_store %arg5[%c12_594, %c42_595], %363 {strides = array<i32>} : memref<16x56xbf16, #tpu.memory_space<vmem>>, vector<4x14xbf16>,
    %c0_596 = arith.constant 0 : index
    %c0_597 = arith.constant 0 : index
    %365 = vector.load %arg5[%c0_596, %c0_597] : memref<16x56xbf16, #tpu.memory_space<vmem>>, vector<16x56xbf16>
    %cst_598 = arith.constant dense<0.000000e+00> : vector<8x56xf32>
    %366 = tpu.matmul %0, %365, %cst_598 {dimension_numbers = #tpu.dot_dimension_numbers<[1], [0], [0], [1], [0, 0, 1, 1], [], []>} : vector<8x16xbf16>, vector<16x56xbf16>, vector<8x56xf32> -> vector<8x56xf32>
    %367 = vector.extract_strided_slice %366 {offsets = [0, 0], sizes = [8, 14], strides = [1, 1]} : vector<8x56xf32> to vector<8x14xf32>
    %368 = vector.extract_strided_slice %366 {offsets = [0, 14], sizes = [8, 14], strides = [1, 1]} : vector<8x56xf32> to vector<8x14xf32>
    %369 = arith.maximumf %367, %368 : vector<8x14xf32>
    %370 = vector.extract_strided_slice %366 {offsets = [0, 28], sizes = [8, 14], strides = [1, 1]} : vector<8x56xf32> to vector<8x14xf32>
    %371 = arith.maximumf %369, %370 : vector<8x14xf32>
    %372 = vector.extract_strided_slice %366 {offsets = [0, 42], sizes = [8, 14], strides = [1, 1]} : vector<8x56xf32> to vector<8x14xf32>
    %373 = arith.maximumf %371, %372 : vector<8x14xf32>
    %374 = vector.broadcast %1 : vector<8x1xf32> to vector<8x14xf32>
    %375 = arith.addf %373, %374 : vector<8x14xf32>
    %cst_599 = arith.constant 0.000000e+00 : f32
    %376 = vector.broadcast %cst_599 : f32 to vector<8x14xf32>
    %377 = arith.maximumf %375, %376 : vector<8x14xf32>
    %378 = arith.truncf %377 : vector<8x14xf32> to vector<8x14xbf16>
    %c0_600 = arith.constant 0 : index
    %c70 = arith.constant 70 : index
    %379 = vector.load %arg4[%c0_600, %c70] : memref<8x98xbf16, #tpu.memory_space<vmem>>, vector<8x14xbf16>
    tpu.vector_store %arg4[%c0_600, %c70], %378 {strides = array<i32>} : memref<8x98xbf16, #tpu.memory_space<vmem>>, vector<8x14xbf16>,
    %c0_601 = arith.constant 0 : index
    %c6_602 = arith.constant 6 : index
    %c0_603 = arith.constant 0 : index
    %c0_604 = arith.constant 0 : index
    %380 = vector.load %arg1[%c0_601, %c6_602, %c0_603, %c0_604] : memref<4x8x4x16xbf16, #tpu.memory_space<vmem>>, vector<1x1x4x14xbf16>
    %381 = vector.shape_cast %380 : vector<1x1x4x14xbf16> to vector<4x14xbf16>
    %c0_605 = arith.constant 0 : index
    %c0_606 = arith.constant 0 : index
    %382 = vector.load %arg5[%c0_605, %c0_606] : memref<16x56xbf16, #tpu.memory_space<vmem>>, vector<4x14xbf16>
    tpu.vector_store %arg5[%c0_605, %c0_606], %381 {strides = array<i32>} : memref<16x56xbf16, #tpu.memory_space<vmem>>, vector<4x14xbf16>,
    %c1_607 = arith.constant 1 : index
    %c6_608 = arith.constant 6 : index
    %c0_609 = arith.constant 0 : index
    %c0_610 = arith.constant 0 : index
    %383 = vector.load %arg1[%c1_607, %c6_608, %c0_609, %c0_610] : memref<4x8x4x16xbf16, #tpu.memory_space<vmem>>, vector<1x1x4x14xbf16>
    %384 = vector.shape_cast %383 : vector<1x1x4x14xbf16> to vector<4x14xbf16>
    %c4_611 = arith.constant 4 : index
    %c0_612 = arith.constant 0 : index
    %385 = vector.load %arg5[%c4_611, %c0_612] : memref<16x56xbf16, #tpu.memory_space<vmem>>, vector<4x14xbf16>
    tpu.vector_store %arg5[%c4_611, %c0_612], %384 {strides = array<i32>} : memref<16x56xbf16, #tpu.memory_space<vmem>>, vector<4x14xbf16>,
    %c2_613 = arith.constant 2 : index
    %c6_614 = arith.constant 6 : index
    %c0_615 = arith.constant 0 : index
    %c0_616 = arith.constant 0 : index
    %386 = vector.load %arg1[%c2_613, %c6_614, %c0_615, %c0_616] : memref<4x8x4x16xbf16, #tpu.memory_space<vmem>>, vector<1x1x4x14xbf16>
    %387 = vector.shape_cast %386 : vector<1x1x4x14xbf16> to vector<4x14xbf16>
    %c8_617 = arith.constant 8 : index
    %c0_618 = arith.constant 0 : index
    %388 = vector.load %arg5[%c8_617, %c0_618] : memref<16x56xbf16, #tpu.memory_space<vmem>>, vector<4x14xbf16>
    tpu.vector_store %arg5[%c8_617, %c0_618], %387 {strides = array<i32>} : memref<16x56xbf16, #tpu.memory_space<vmem>>, vector<4x14xbf16>,
    %c3_619 = arith.constant 3 : index
    %c6_620 = arith.constant 6 : index
    %c0_621 = arith.constant 0 : index
    %c0_622 = arith.constant 0 : index
    %389 = vector.load %arg1[%c3_619, %c6_620, %c0_621, %c0_622] : memref<4x8x4x16xbf16, #tpu.memory_space<vmem>>, vector<1x1x4x14xbf16>
    %390 = vector.shape_cast %389 : vector<1x1x4x14xbf16> to vector<4x14xbf16>
    %c12_623 = arith.constant 12 : index
    %c0_624 = arith.constant 0 : index
    %391 = vector.load %arg5[%c12_623, %c0_624] : memref<16x56xbf16, #tpu.memory_space<vmem>>, vector<4x14xbf16>
    tpu.vector_store %arg5[%c12_623, %c0_624], %390 {strides = array<i32>} : memref<16x56xbf16, #tpu.memory_space<vmem>>, vector<4x14xbf16>,
    %c1_625 = arith.constant 1 : index
    %c6_626 = arith.constant 6 : index
    %c0_627 = arith.constant 0 : index
    %c0_628 = arith.constant 0 : index
    %392 = vector.load %arg1[%c1_625, %c6_626, %c0_627, %c0_628] : memref<4x8x4x16xbf16, #tpu.memory_space<vmem>>, vector<1x1x4x14xbf16>
    %393 = vector.shape_cast %392 : vector<1x1x4x14xbf16> to vector<4x14xbf16>
    %c0_629 = arith.constant 0 : index
    %c14_630 = arith.constant 14 : index
    %394 = vector.load %arg5[%c0_629, %c14_630] : memref<16x56xbf16, #tpu.memory_space<vmem>>, vector<4x14xbf16>
    tpu.vector_store %arg5[%c0_629, %c14_630], %393 {strides = array<i32>} : memref<16x56xbf16, #tpu.memory_space<vmem>>, vector<4x14xbf16>,
    %c0_631 = arith.constant 0 : index
    %c6_632 = arith.constant 6 : index
    %c0_633 = arith.constant 0 : index
    %c2_634 = arith.constant 2 : index
    %395 = vector.load %arg1[%c0_631, %c6_632, %c0_633, %c2_634] : memref<4x8x4x16xbf16, #tpu.memory_space<vmem>>, vector<1x1x4x14xbf16>
    %396 = vector.shape_cast %395 : vector<1x1x4x14xbf16> to vector<4x14xbf16>
    %c4_635 = arith.constant 4 : index
    %c14_636 = arith.constant 14 : index
    %397 = vector.load %arg5[%c4_635, %c14_636] : memref<16x56xbf16, #tpu.memory_space<vmem>>, vector<4x14xbf16>
    tpu.vector_store %arg5[%c4_635, %c14_636], %396 {strides = array<i32>} : memref<16x56xbf16, #tpu.memory_space<vmem>>, vector<4x14xbf16>,
    %c3_637 = arith.constant 3 : index
    %c6_638 = arith.constant 6 : index
    %c0_639 = arith.constant 0 : index
    %c0_640 = arith.constant 0 : index
    %398 = vector.load %arg1[%c3_637, %c6_638, %c0_639, %c0_640] : memref<4x8x4x16xbf16, #tpu.memory_space<vmem>>, vector<1x1x4x14xbf16>
    %399 = vector.shape_cast %398 : vector<1x1x4x14xbf16> to vector<4x14xbf16>
    %c8_641 = arith.constant 8 : index
    %c14_642 = arith.constant 14 : index
    %400 = vector.load %arg5[%c8_641, %c14_642] : memref<16x56xbf16, #tpu.memory_space<vmem>>, vector<4x14xbf16>
    tpu.vector_store %arg5[%c8_641, %c14_642], %399 {strides = array<i32>} : memref<16x56xbf16, #tpu.memory_space<vmem>>, vector<4x14xbf16>,
    %c2_643 = arith.constant 2 : index
    %c6_644 = arith.constant 6 : index
    %c0_645 = arith.constant 0 : index
    %c2_646 = arith.constant 2 : index
    %401 = vector.load %arg1[%c2_643, %c6_644, %c0_645, %c2_646] : memref<4x8x4x16xbf16, #tpu.memory_space<vmem>>, vector<1x1x4x14xbf16>
    %402 = vector.shape_cast %401 : vector<1x1x4x14xbf16> to vector<4x14xbf16>
    %c12_647 = arith.constant 12 : index
    %c14_648 = arith.constant 14 : index
    %403 = vector.load %arg5[%c12_647, %c14_648] : memref<16x56xbf16, #tpu.memory_space<vmem>>, vector<4x14xbf16>
    tpu.vector_store %arg5[%c12_647, %c14_648], %402 {strides = array<i32>} : memref<16x56xbf16, #tpu.memory_space<vmem>>, vector<4x14xbf16>,
    %c2_649 = arith.constant 2 : index
    %c6_650 = arith.constant 6 : index
    %c0_651 = arith.constant 0 : index
    %c0_652 = arith.constant 0 : index
    %404 = vector.load %arg1[%c2_649, %c6_650, %c0_651, %c0_652] : memref<4x8x4x16xbf16, #tpu.memory_space<vmem>>, vector<1x1x4x14xbf16>
    %405 = vector.shape_cast %404 : vector<1x1x4x14xbf16> to vector<4x14xbf16>
    %c0_653 = arith.constant 0 : index
    %c28_654 = arith.constant 28 : index
    %406 = vector.load %arg5[%c0_653, %c28_654] : memref<16x56xbf16, #tpu.memory_space<vmem>>, vector<4x14xbf16>
    tpu.vector_store %arg5[%c0_653, %c28_654], %405 {strides = array<i32>} : memref<16x56xbf16, #tpu.memory_space<vmem>>, vector<4x14xbf16>,
    %c3_655 = arith.constant 3 : index
    %c6_656 = arith.constant 6 : index
    %c0_657 = arith.constant 0 : index
    %c0_658 = arith.constant 0 : index
    %407 = vector.load %arg1[%c3_655, %c6_656, %c0_657, %c0_658] : memref<4x8x4x16xbf16, #tpu.memory_space<vmem>>, vector<1x1x4x14xbf16>
    %408 = vector.shape_cast %407 : vector<1x1x4x14xbf16> to vector<4x14xbf16>
    %c4_659 = arith.constant 4 : index
    %c28_660 = arith.constant 28 : index
    %409 = vector.load %arg5[%c4_659, %c28_660] : memref<16x56xbf16, #tpu.memory_space<vmem>>, vector<4x14xbf16>
    tpu.vector_store %arg5[%c4_659, %c28_660], %408 {strides = array<i32>} : memref<16x56xbf16, #tpu.memory_space<vmem>>, vector<4x14xbf16>,
    %c0_661 = arith.constant 0 : index
    %c7 = arith.constant 7 : index
    %c0_662 = arith.constant 0 : index
    %c0_663 = arith.constant 0 : index
    %410 = vector.load %arg1[%c0_661, %c7, %c0_662, %c0_663] : memref<4x8x4x16xbf16, #tpu.memory_space<vmem>>, vector<1x1x4x14xbf16>
    %411 = vector.shape_cast %410 : vector<1x1x4x14xbf16> to vector<4x14xbf16>
    %c8_664 = arith.constant 8 : index
    %c28_665 = arith.constant 28 : index
    %412 = vector.load %arg5[%c8_664, %c28_665] : memref<16x56xbf16, #tpu.memory_space<vmem>>, vector<4x14xbf16>
    tpu.vector_store %arg5[%c8_664, %c28_665], %411 {strides = array<i32>} : memref<16x56xbf16, #tpu.memory_space<vmem>>, vector<4x14xbf16>,
    %c1_666 = arith.constant 1 : index
    %c7_667 = arith.constant 7 : index
    %c0_668 = arith.constant 0 : index
    %c0_669 = arith.constant 0 : index
    %413 = vector.load %arg1[%c1_666, %c7_667, %c0_668, %c0_669] : memref<4x8x4x16xbf16, #tpu.memory_space<vmem>>, vector<1x1x4x14xbf16>
    %414 = vector.shape_cast %413 : vector<1x1x4x14xbf16> to vector<4x14xbf16>
    %c12_670 = arith.constant 12 : index
    %c28_671 = arith.constant 28 : index
    %415 = vector.load %arg5[%c12_670, %c28_671] : memref<16x56xbf16, #tpu.memory_space<vmem>>, vector<4x14xbf16>
    tpu.vector_store %arg5[%c12_670, %c28_671], %414 {strides = array<i32>} : memref<16x56xbf16, #tpu.memory_space<vmem>>, vector<4x14xbf16>,
    %c3_672 = arith.constant 3 : index
    %c6_673 = arith.constant 6 : index
    %c0_674 = arith.constant 0 : index
    %c0_675 = arith.constant 0 : index
    %416 = vector.load %arg1[%c3_672, %c6_673, %c0_674, %c0_675] : memref<4x8x4x16xbf16, #tpu.memory_space<vmem>>, vector<1x1x4x14xbf16>
    %417 = vector.shape_cast %416 : vector<1x1x4x14xbf16> to vector<4x14xbf16>
    %c0_676 = arith.constant 0 : index
    %c42_677 = arith.constant 42 : index
    %418 = vector.load %arg5[%c0_676, %c42_677] : memref<16x56xbf16, #tpu.memory_space<vmem>>, vector<4x14xbf16>
    tpu.vector_store %arg5[%c0_676, %c42_677], %417 {strides = array<i32>} : memref<16x56xbf16, #tpu.memory_space<vmem>>, vector<4x14xbf16>,
    %c2_678 = arith.constant 2 : index
    %c6_679 = arith.constant 6 : index
    %c0_680 = arith.constant 0 : index
    %c2_681 = arith.constant 2 : index
    %419 = vector.load %arg1[%c2_678, %c6_679, %c0_680, %c2_681] : memref<4x8x4x16xbf16, #tpu.memory_space<vmem>>, vector<1x1x4x14xbf16>
    %420 = vector.shape_cast %419 : vector<1x1x4x14xbf16> to vector<4x14xbf16>
    %c4_682 = arith.constant 4 : index
    %c42_683 = arith.constant 42 : index
    %421 = vector.load %arg5[%c4_682, %c42_683] : memref<16x56xbf16, #tpu.memory_space<vmem>>, vector<4x14xbf16>
    tpu.vector_store %arg5[%c4_682, %c42_683], %420 {strides = array<i32>} : memref<16x56xbf16, #tpu.memory_space<vmem>>, vector<4x14xbf16>,
    %c1_684 = arith.constant 1 : index
    %c7_685 = arith.constant 7 : index
    %c0_686 = arith.constant 0 : index
    %c0_687 = arith.constant 0 : index
    %422 = vector.load %arg1[%c1_684, %c7_685, %c0_686, %c0_687] : memref<4x8x4x16xbf16, #tpu.memory_space<vmem>>, vector<1x1x4x14xbf16>
    %423 = vector.shape_cast %422 : vector<1x1x4x14xbf16> to vector<4x14xbf16>
    %c8_688 = arith.constant 8 : index
    %c42_689 = arith.constant 42 : index
    %424 = vector.load %arg5[%c8_688, %c42_689] : memref<16x56xbf16, #tpu.memory_space<vmem>>, vector<4x14xbf16>
    tpu.vector_store %arg5[%c8_688, %c42_689], %423 {strides = array<i32>} : memref<16x56xbf16, #tpu.memory_space<vmem>>, vector<4x14xbf16>,
    %c0_690 = arith.constant 0 : index
    %c7_691 = arith.constant 7 : index
    %c0_692 = arith.constant 0 : index
    %c2_693 = arith.constant 2 : index
    %425 = vector.load %arg1[%c0_690, %c7_691, %c0_692, %c2_693] : memref<4x8x4x16xbf16, #tpu.memory_space<vmem>>, vector<1x1x4x14xbf16>
    %426 = vector.shape_cast %425 : vector<1x1x4x14xbf16> to vector<4x14xbf16>
    %c12_694 = arith.constant 12 : index
    %c42_695 = arith.constant 42 : index
    %427 = vector.load %arg5[%c12_694, %c42_695] : memref<16x56xbf16, #tpu.memory_space<vmem>>, vector<4x14xbf16>
    tpu.vector_store %arg5[%c12_694, %c42_695], %426 {strides = array<i32>} : memref<16x56xbf16, #tpu.memory_space<vmem>>, vector<4x14xbf16>,
    %c0_696 = arith.constant 0 : index
    %c0_697 = arith.constant 0 : index
    %428 = vector.load %arg5[%c0_696, %c0_697] : memref<16x56xbf16, #tpu.memory_space<vmem>>, vector<16x56xbf16>
    %cst_698 = arith.constant dense<0.000000e+00> : vector<8x56xf32>
    %429 = tpu.matmul %0, %428, %cst_698 {dimension_numbers = #tpu.dot_dimension_numbers<[1], [0], [0], [1], [0, 0, 1, 1], [], []>} : vector<8x16xbf16>, vector<16x56xbf16>, vector<8x56xf32> -> vector<8x56xf32>
    %430 = vector.extract_strided_slice %429 {offsets = [0, 0], sizes = [8, 14], strides = [1, 1]} : vector<8x56xf32> to vector<8x14xf32>
    %431 = vector.extract_strided_slice %429 {offsets = [0, 14], sizes = [8, 14], strides = [1, 1]} : vector<8x56xf32> to vector<8x14xf32>
    %432 = arith.maximumf %430, %431 : vector<8x14xf32>
    %433 = vector.extract_strided_slice %429 {offsets = [0, 28], sizes = [8, 14], strides = [1, 1]} : vector<8x56xf32> to vector<8x14xf32>
    %434 = arith.maximumf %432, %433 : vector<8x14xf32>
    %435 = vector.extract_strided_slice %429 {offsets = [0, 42], sizes = [8, 14], strides = [1, 1]} : vector<8x56xf32> to vector<8x14xf32>
    %436 = arith.maximumf %434, %435 : vector<8x14xf32>
    %437 = vector.broadcast %1 : vector<8x1xf32> to vector<8x14xf32>
    %438 = arith.addf %436, %437 : vector<8x14xf32>
    %cst_699 = arith.constant 0.000000e+00 : f32
    %439 = vector.broadcast %cst_699 : f32 to vector<8x14xf32>
    %440 = arith.maximumf %438, %439 : vector<8x14xf32>
    %441 = arith.truncf %440 : vector<8x14xf32> to vector<8x14xbf16>
    %c0_700 = arith.constant 0 : index
    %c84 = arith.constant 84 : index
    %442 = vector.load %arg4[%c0_700, %c84] : memref<8x98xbf16, #tpu.memory_space<vmem>>, vector<8x14xbf16>
    tpu.vector_store %arg4[%c0_700, %c84], %441 {strides = array<i32>} : memref<8x98xbf16, #tpu.memory_space<vmem>>, vector<8x14xbf16>,
    return
  }
  func.func @transform_0(%arg0: i32) -> (i32, i32, i32, i32) {
    %c0_i32 = arith.constant 0 : i32
    %c0_i32_0 = arith.constant 0 : i32
    %c0_i32_1 = arith.constant 0 : i32
    %c0_i32_2 = arith.constant 0 : i32
    %c0_i32_3 = arith.constant 0 : i32
    return %c0_i32, %c0_i32_0, %c0_i32_1, %c0_i32_2 : i32, i32, i32, i32
  }
  func.func @transform_1(%arg0: i32) -> (i32, i32) {
    %c0_i32 = arith.constant 0 : i32
    %c0_i32_0 = arith.constant 0 : i32
    return %arg0, %c0_i32 : i32, i32
  }
  func.func @transform_2(%arg0: i32) -> (i32, i32) {
    %c0_i32 = arith.constant 0 : i32
    %c0_i32_0 = arith.constant 0 : i32
    return %arg0, %c0_i32 : i32, i32
  }
  func.func @transform_3(%arg0: i32) -> (i32, i32) {
    %c0_i32 = arith.constant 0 : i32
    %c0_i32_0 = arith.constant 0 : i32
    return %arg0, %c0_i32 : i32, i32
  }
}

module attributes {stable_mosaic.version = 11 : i64} {
  func.func @kernel(%arg0: i32, %arg1: memref<4x4x8x8xbf16, #tpu.memory_space<vmem>>, %arg2: memref<16x32xbf16, #tpu.memory_space<vmem>>, %arg3: memref<16x1xf32, #tpu.memory_space<vmem>>, %arg4: memref<16x18xf32, #tpu.memory_space<vmem>>, %arg5: memref<32x24xbf16, #tpu.memory_space<vmem>>) attributes {dimension_semantics = [#tpu.dimension_semantics<parallel>], iteration_bounds = array<i64: 1>, scalar_prefetch = 0 : i64, scratch_operands = 1 : i64, tpu.core_type = #tpu.core_type<tc>, window_params = [{pipeline_mode = #tpu.pipeline_mode<synchronous>, transform_indices = @transform_0, window_bounds = array<i64: 4, 4, 8, 8>}, {transform_indices = @transform_1, window_bounds = array<i64: 16, 32>}, {transform_indices = @transform_2, window_bounds = array<i64: 16, 1>}, {transform_indices = @transform_3, window_bounds = array<i64: 16, 18>}]} {
    %c0 = arith.constant 0 : index
    %c0_0 = arith.constant 0 : index
    %0 = vector.load %arg2[%c0, %c0_0] : memref<16x32xbf16, #tpu.memory_space<vmem>>, vector<16x32xbf16>
    %c0_1 = arith.constant 0 : index
    %c0_2 = arith.constant 0 : index
    %1 = vector.load %arg3[%c0_1, %c0_2] : memref<16x1xf32, #tpu.memory_space<vmem>>, vector<16x1xf32>
    %c0_3 = arith.constant 0 : index
    %c0_4 = arith.constant 0 : index
    %c0_5 = arith.constant 0 : index
    %c0_6 = arith.constant 0 : index
    %2 = vector.load %arg1[%c0_3, %c0_4, %c0_5, %c0_6] : memref<4x4x8x8xbf16, #tpu.memory_space<vmem>>, vector<1x1x8x6xbf16>
    %3 = vector.shape_cast %2 : vector<1x1x8x6xbf16> to vector<8x6xbf16>
    %c0_7 = arith.constant 0 : index
    %c0_8 = arith.constant 0 : index
    %4 = vector.load %arg5[%c0_7, %c0_8] : memref<32x24xbf16, #tpu.memory_space<vmem>>, vector<8x6xbf16>
    tpu.vector_store %arg5[%c0_7, %c0_8], %3 {strides = array<i32>} : memref<32x24xbf16, #tpu.memory_space<vmem>>, vector<8x6xbf16>,
    %c1 = arith.constant 1 : index
    %c0_9 = arith.constant 0 : index
    %c0_10 = arith.constant 0 : index
    %c0_11 = arith.constant 0 : index
    %5 = vector.load %arg1[%c1, %c0_9, %c0_10, %c0_11] : memref<4x4x8x8xbf16, #tpu.memory_space<vmem>>, vector<1x1x8x6xbf16>
    %6 = vector.shape_cast %5 : vector<1x1x8x6xbf16> to vector<8x6xbf16>
    %c8 = arith.constant 8 : index
    %c0_12 = arith.constant 0 : index
    %7 = vector.load %arg5[%c8, %c0_12] : memref<32x24xbf16, #tpu.memory_space<vmem>>, vector<8x6xbf16>
    tpu.vector_store %arg5[%c8, %c0_12], %6 {strides = array<i32>} : memref<32x24xbf16, #tpu.memory_space<vmem>>, vector<8x6xbf16>,
    %c2 = arith.constant 2 : index
    %c0_13 = arith.constant 0 : index
    %c0_14 = arith.constant 0 : index
    %c0_15 = arith.constant 0 : index
    %8 = vector.load %arg1[%c2, %c0_13, %c0_14, %c0_15] : memref<4x4x8x8xbf16, #tpu.memory_space<vmem>>, vector<1x1x8x6xbf16>
    %9 = vector.shape_cast %8 : vector<1x1x8x6xbf16> to vector<8x6xbf16>
    %c16 = arith.constant 16 : index
    %c0_16 = arith.constant 0 : index
    %10 = vector.load %arg5[%c16, %c0_16] : memref<32x24xbf16, #tpu.memory_space<vmem>>, vector<8x6xbf16>
    tpu.vector_store %arg5[%c16, %c0_16], %9 {strides = array<i32>} : memref<32x24xbf16, #tpu.memory_space<vmem>>, vector<8x6xbf16>,
    %c3 = arith.constant 3 : index
    %c0_17 = arith.constant 0 : index
    %c0_18 = arith.constant 0 : index
    %c0_19 = arith.constant 0 : index
    %11 = vector.load %arg1[%c3, %c0_17, %c0_18, %c0_19] : memref<4x4x8x8xbf16, #tpu.memory_space<vmem>>, vector<1x1x8x6xbf16>
    %12 = vector.shape_cast %11 : vector<1x1x8x6xbf16> to vector<8x6xbf16>
    %c24 = arith.constant 24 : index
    %c0_20 = arith.constant 0 : index
    %13 = vector.load %arg5[%c24, %c0_20] : memref<32x24xbf16, #tpu.memory_space<vmem>>, vector<8x6xbf16>
    tpu.vector_store %arg5[%c24, %c0_20], %12 {strides = array<i32>} : memref<32x24xbf16, #tpu.memory_space<vmem>>, vector<8x6xbf16>,
    %c1_21 = arith.constant 1 : index
    %c0_22 = arith.constant 0 : index
    %c0_23 = arith.constant 0 : index
    %c0_24 = arith.constant 0 : index
    %14 = vector.load %arg1[%c1_21, %c0_22, %c0_23, %c0_24] : memref<4x4x8x8xbf16, #tpu.memory_space<vmem>>, vector<1x1x8x6xbf16>
    %15 = vector.shape_cast %14 : vector<1x1x8x6xbf16> to vector<8x6xbf16>
    %c0_25 = arith.constant 0 : index
    %c6 = arith.constant 6 : index
    %16 = vector.load %arg5[%c0_25, %c6] : memref<32x24xbf16, #tpu.memory_space<vmem>>, vector<8x6xbf16>
    tpu.vector_store %arg5[%c0_25, %c6], %15 {strides = array<i32>} : memref<32x24xbf16, #tpu.memory_space<vmem>>, vector<8x6xbf16>,
    %c0_26 = arith.constant 0 : index
    %c0_27 = arith.constant 0 : index
    %c0_28 = arith.constant 0 : index
    %c2_29 = arith.constant 2 : index
    %17 = vector.load %arg1[%c0_26, %c0_27, %c0_28, %c2_29] : memref<4x4x8x8xbf16, #tpu.memory_space<vmem>>, vector<1x1x8x6xbf16>
    %18 = vector.shape_cast %17 : vector<1x1x8x6xbf16> to vector<8x6xbf16>
    %c8_30 = arith.constant 8 : index
    %c6_31 = arith.constant 6 : index
    %19 = vector.load %arg5[%c8_30, %c6_31] : memref<32x24xbf16, #tpu.memory_space<vmem>>, vector<8x6xbf16>
    tpu.vector_store %arg5[%c8_30, %c6_31], %18 {strides = array<i32>} : memref<32x24xbf16, #tpu.memory_space<vmem>>, vector<8x6xbf16>,
    %c3_32 = arith.constant 3 : index
    %c0_33 = arith.constant 0 : index
    %c0_34 = arith.constant 0 : index
    %c0_35 = arith.constant 0 : index
    %20 = vector.load %arg1[%c3_32, %c0_33, %c0_34, %c0_35] : memref<4x4x8x8xbf16, #tpu.memory_space<vmem>>, vector<1x1x8x6xbf16>
    %21 = vector.shape_cast %20 : vector<1x1x8x6xbf16> to vector<8x6xbf16>
    %c16_36 = arith.constant 16 : index
    %c6_37 = arith.constant 6 : index
    %22 = vector.load %arg5[%c16_36, %c6_37] : memref<32x24xbf16, #tpu.memory_space<vmem>>, vector<8x6xbf16>
    tpu.vector_store %arg5[%c16_36, %c6_37], %21 {strides = array<i32>} : memref<32x24xbf16, #tpu.memory_space<vmem>>, vector<8x6xbf16>,
    %c2_38 = arith.constant 2 : index
    %c0_39 = arith.constant 0 : index
    %c0_40 = arith.constant 0 : index
    %c2_41 = arith.constant 2 : index
    %23 = vector.load %arg1[%c2_38, %c0_39, %c0_40, %c2_41] : memref<4x4x8x8xbf16, #tpu.memory_space<vmem>>, vector<1x1x8x6xbf16>
    %24 = vector.shape_cast %23 : vector<1x1x8x6xbf16> to vector<8x6xbf16>
    %c24_42 = arith.constant 24 : index
    %c6_43 = arith.constant 6 : index
    %25 = vector.load %arg5[%c24_42, %c6_43] : memref<32x24xbf16, #tpu.memory_space<vmem>>, vector<8x6xbf16>
    tpu.vector_store %arg5[%c24_42, %c6_43], %24 {strides = array<i32>} : memref<32x24xbf16, #tpu.memory_space<vmem>>, vector<8x6xbf16>,
    %c2_44 = arith.constant 2 : index
    %c0_45 = arith.constant 0 : index
    %c0_46 = arith.constant 0 : index
    %c0_47 = arith.constant 0 : index
    %26 = vector.load %arg1[%c2_44, %c0_45, %c0_46, %c0_47] : memref<4x4x8x8xbf16, #tpu.memory_space<vmem>>, vector<1x1x8x6xbf16>
    %27 = vector.shape_cast %26 : vector<1x1x8x6xbf16> to vector<8x6xbf16>
    %c0_48 = arith.constant 0 : index
    %c12 = arith.constant 12 : index
    %28 = vector.load %arg5[%c0_48, %c12] : memref<32x24xbf16, #tpu.memory_space<vmem>>, vector<8x6xbf16>
    tpu.vector_store %arg5[%c0_48, %c12], %27 {strides = array<i32>} : memref<32x24xbf16, #tpu.memory_space<vmem>>, vector<8x6xbf16>,
    %c3_49 = arith.constant 3 : index
    %c0_50 = arith.constant 0 : index
    %c0_51 = arith.constant 0 : index
    %c0_52 = arith.constant 0 : index
    %29 = vector.load %arg1[%c3_49, %c0_50, %c0_51, %c0_52] : memref<4x4x8x8xbf16, #tpu.memory_space<vmem>>, vector<1x1x8x6xbf16>
    %30 = vector.shape_cast %29 : vector<1x1x8x6xbf16> to vector<8x6xbf16>
    %c8_53 = arith.constant 8 : index
    %c12_54 = arith.constant 12 : index
    %31 = vector.load %arg5[%c8_53, %c12_54] : memref<32x24xbf16, #tpu.memory_space<vmem>>, vector<8x6xbf16>
    tpu.vector_store %arg5[%c8_53, %c12_54], %30 {strides = array<i32>} : memref<32x24xbf16, #tpu.memory_space<vmem>>, vector<8x6xbf16>,
    %c0_55 = arith.constant 0 : index
    %c1_56 = arith.constant 1 : index
    %c0_57 = arith.constant 0 : index
    %c0_58 = arith.constant 0 : index
    %32 = vector.load %arg1[%c0_55, %c1_56, %c0_57, %c0_58] : memref<4x4x8x8xbf16, #tpu.memory_space<vmem>>, vector<1x1x8x6xbf16>
    %33 = vector.shape_cast %32 : vector<1x1x8x6xbf16> to vector<8x6xbf16>
    %c16_59 = arith.constant 16 : index
    %c12_60 = arith.constant 12 : index
    %34 = vector.load %arg5[%c16_59, %c12_60] : memref<32x24xbf16, #tpu.memory_space<vmem>>, vector<8x6xbf16>
    tpu.vector_store %arg5[%c16_59, %c12_60], %33 {strides = array<i32>} : memref<32x24xbf16, #tpu.memory_space<vmem>>, vector<8x6xbf16>,
    %c1_61 = arith.constant 1 : index
    %c1_62 = arith.constant 1 : index
    %c0_63 = arith.constant 0 : index
    %c0_64 = arith.constant 0 : index
    %35 = vector.load %arg1[%c1_61, %c1_62, %c0_63, %c0_64] : memref<4x4x8x8xbf16, #tpu.memory_space<vmem>>, vector<1x1x8x6xbf16>
    %36 = vector.shape_cast %35 : vector<1x1x8x6xbf16> to vector<8x6xbf16>
    %c24_65 = arith.constant 24 : index
    %c12_66 = arith.constant 12 : index
    %37 = vector.load %arg5[%c24_65, %c12_66] : memref<32x24xbf16, #tpu.memory_space<vmem>>, vector<8x6xbf16>
    tpu.vector_store %arg5[%c24_65, %c12_66], %36 {strides = array<i32>} : memref<32x24xbf16, #tpu.memory_space<vmem>>, vector<8x6xbf16>,
    %c3_67 = arith.constant 3 : index
    %c0_68 = arith.constant 0 : index
    %c0_69 = arith.constant 0 : index
    %c0_70 = arith.constant 0 : index
    %38 = vector.load %arg1[%c3_67, %c0_68, %c0_69, %c0_70] : memref<4x4x8x8xbf16, #tpu.memory_space<vmem>>, vector<1x1x8x6xbf16>
    %39 = vector.shape_cast %38 : vector<1x1x8x6xbf16> to vector<8x6xbf16>
    %c0_71 = arith.constant 0 : index
    %c18 = arith.constant 18 : index
    %40 = vector.load %arg5[%c0_71, %c18] : memref<32x24xbf16, #tpu.memory_space<vmem>>, vector<8x6xbf16>
    tpu.vector_store %arg5[%c0_71, %c18], %39 {strides = array<i32>} : memref<32x24xbf16, #tpu.memory_space<vmem>>, vector<8x6xbf16>,
    %c2_72 = arith.constant 2 : index
    %c0_73 = arith.constant 0 : index
    %c0_74 = arith.constant 0 : index
    %c2_75 = arith.constant 2 : index
    %41 = vector.load %arg1[%c2_72, %c0_73, %c0_74, %c2_75] : memref<4x4x8x8xbf16, #tpu.memory_space<vmem>>, vector<1x1x8x6xbf16>
    %42 = vector.shape_cast %41 : vector<1x1x8x6xbf16> to vector<8x6xbf16>
    %c8_76 = arith.constant 8 : index
    %c18_77 = arith.constant 18 : index
    %43 = vector.load %arg5[%c8_76, %c18_77] : memref<32x24xbf16, #tpu.memory_space<vmem>>, vector<8x6xbf16>
    tpu.vector_store %arg5[%c8_76, %c18_77], %42 {strides = array<i32>} : memref<32x24xbf16, #tpu.memory_space<vmem>>, vector<8x6xbf16>,
    %c1_78 = arith.constant 1 : index
    %c1_79 = arith.constant 1 : index
    %c0_80 = arith.constant 0 : index
    %c0_81 = arith.constant 0 : index
    %44 = vector.load %arg1[%c1_78, %c1_79, %c0_80, %c0_81] : memref<4x4x8x8xbf16, #tpu.memory_space<vmem>>, vector<1x1x8x6xbf16>
    %45 = vector.shape_cast %44 : vector<1x1x8x6xbf16> to vector<8x6xbf16>
    %c16_82 = arith.constant 16 : index
    %c18_83 = arith.constant 18 : index
    %46 = vector.load %arg5[%c16_82, %c18_83] : memref<32x24xbf16, #tpu.memory_space<vmem>>, vector<8x6xbf16>
    tpu.vector_store %arg5[%c16_82, %c18_83], %45 {strides = array<i32>} : memref<32x24xbf16, #tpu.memory_space<vmem>>, vector<8x6xbf16>,
    %c0_84 = arith.constant 0 : index
    %c1_85 = arith.constant 1 : index
    %c0_86 = arith.constant 0 : index
    %c2_87 = arith.constant 2 : index
    %47 = vector.load %arg1[%c0_84, %c1_85, %c0_86, %c2_87] : memref<4x4x8x8xbf16, #tpu.memory_space<vmem>>, vector<1x1x8x6xbf16>
    %48 = vector.shape_cast %47 : vector<1x1x8x6xbf16> to vector<8x6xbf16>
    %c24_88 = arith.constant 24 : index
    %c18_89 = arith.constant 18 : index
    %49 = vector.load %arg5[%c24_88, %c18_89] : memref<32x24xbf16, #tpu.memory_space<vmem>>, vector<8x6xbf16>
    tpu.vector_store %arg5[%c24_88, %c18_89], %48 {strides = array<i32>} : memref<32x24xbf16, #tpu.memory_space<vmem>>, vector<8x6xbf16>,
    %c0_90 = arith.constant 0 : index
    %c0_91 = arith.constant 0 : index
    %50 = vector.load %arg5[%c0_90, %c0_91] : memref<32x24xbf16, #tpu.memory_space<vmem>>, vector<32x24xbf16>
    %cst = arith.constant dense<0.000000e+00> : vector<16x24xf32>
    %51 = tpu.matmul %0, %50, %cst {dimension_numbers = #tpu.dot_dimension_numbers<[1], [0], [0], [1], [0, 0, 1, 1], [], []>} : vector<16x32xbf16>, vector<32x24xbf16>, vector<16x24xf32> -> vector<16x24xf32>
    %52 = vector.extract_strided_slice %51 {offsets = [0, 0], sizes = [16, 6], strides = [1, 1]} : vector<16x24xf32> to vector<16x6xf32>
    %53 = vector.extract_strided_slice %51 {offsets = [0, 6], sizes = [16, 6], strides = [1, 1]} : vector<16x24xf32> to vector<16x6xf32>
    %54 = arith.maximumf %52, %53 : vector<16x6xf32>
    %55 = vector.extract_strided_slice %51 {offsets = [0, 12], sizes = [16, 6], strides = [1, 1]} : vector<16x24xf32> to vector<16x6xf32>
    %56 = arith.maximumf %54, %55 : vector<16x6xf32>
    %57 = vector.extract_strided_slice %51 {offsets = [0, 18], sizes = [16, 6], strides = [1, 1]} : vector<16x24xf32> to vector<16x6xf32>
    %58 = arith.maximumf %56, %57 : vector<16x6xf32>
    %59 = vector.broadcast %1 : vector<16x1xf32> to vector<16x6xf32>
    %60 = arith.addf %58, %59 : vector<16x6xf32>
    %cst_92 = arith.constant 0.000000e+00 : f32
    %61 = vector.broadcast %cst_92 : f32 to vector<16x6xf32>
    %62 = arith.maximumf %60, %61 : vector<16x6xf32>
    %c0_93 = arith.constant 0 : index
    %c0_94 = arith.constant 0 : index
    %63 = vector.load %arg4[%c0_93, %c0_94] : memref<16x18xf32, #tpu.memory_space<vmem>>, vector<16x6xf32>
    tpu.vector_store %arg4[%c0_93, %c0_94], %62 {strides = array<i32>} : memref<16x18xf32, #tpu.memory_space<vmem>>, vector<16x6xf32>,
    %c0_95 = arith.constant 0 : index
    %c1_96 = arith.constant 1 : index
    %c0_97 = arith.constant 0 : index
    %c0_98 = arith.constant 0 : index
    %64 = vector.load %arg1[%c0_95, %c1_96, %c0_97, %c0_98] : memref<4x4x8x8xbf16, #tpu.memory_space<vmem>>, vector<1x1x8x6xbf16>
    %65 = vector.shape_cast %64 : vector<1x1x8x6xbf16> to vector<8x6xbf16>
    %c0_99 = arith.constant 0 : index
    %c0_100 = arith.constant 0 : index
    %66 = vector.load %arg5[%c0_99, %c0_100] : memref<32x24xbf16, #tpu.memory_space<vmem>>, vector<8x6xbf16>
    tpu.vector_store %arg5[%c0_99, %c0_100], %65 {strides = array<i32>} : memref<32x24xbf16, #tpu.memory_space<vmem>>, vector<8x6xbf16>,
    %c1_101 = arith.constant 1 : index
    %c1_102 = arith.constant 1 : index
    %c0_103 = arith.constant 0 : index
    %c0_104 = arith.constant 0 : index
    %67 = vector.load %arg1[%c1_101, %c1_102, %c0_103, %c0_104] : memref<4x4x8x8xbf16, #tpu.memory_space<vmem>>, vector<1x1x8x6xbf16>
    %68 = vector.shape_cast %67 : vector<1x1x8x6xbf16> to vector<8x6xbf16>
    %c8_105 = arith.constant 8 : index
    %c0_106 = arith.constant 0 : index
    %69 = vector.load %arg5[%c8_105, %c0_106] : memref<32x24xbf16, #tpu.memory_space<vmem>>, vector<8x6xbf16>
    tpu.vector_store %arg5[%c8_105, %c0_106], %68 {strides = array<i32>} : memref<32x24xbf16, #tpu.memory_space<vmem>>, vector<8x6xbf16>,
    %c2_107 = arith.constant 2 : index
    %c1_108 = arith.constant 1 : index
    %c0_109 = arith.constant 0 : index
    %c0_110 = arith.constant 0 : index
    %70 = vector.load %arg1[%c2_107, %c1_108, %c0_109, %c0_110] : memref<4x4x8x8xbf16, #tpu.memory_space<vmem>>, vector<1x1x8x6xbf16>
    %71 = vector.shape_cast %70 : vector<1x1x8x6xbf16> to vector<8x6xbf16>
    %c16_111 = arith.constant 16 : index
    %c0_112 = arith.constant 0 : index
    %72 = vector.load %arg5[%c16_111, %c0_112] : memref<32x24xbf16, #tpu.memory_space<vmem>>, vector<8x6xbf16>
    tpu.vector_store %arg5[%c16_111, %c0_112], %71 {strides = array<i32>} : memref<32x24xbf16, #tpu.memory_space<vmem>>, vector<8x6xbf16>,
    %c3_113 = arith.constant 3 : index
    %c1_114 = arith.constant 1 : index
    %c0_115 = arith.constant 0 : index
    %c0_116 = arith.constant 0 : index
    %73 = vector.load %arg1[%c3_113, %c1_114, %c0_115, %c0_116] : memref<4x4x8x8xbf16, #tpu.memory_space<vmem>>, vector<1x1x8x6xbf16>
    %74 = vector.shape_cast %73 : vector<1x1x8x6xbf16> to vector<8x6xbf16>
    %c24_117 = arith.constant 24 : index
    %c0_118 = arith.constant 0 : index
    %75 = vector.load %arg5[%c24_117, %c0_118] : memref<32x24xbf16, #tpu.memory_space<vmem>>, vector<8x6xbf16>
    tpu.vector_store %arg5[%c24_117, %c0_118], %74 {strides = array<i32>} : memref<32x24xbf16, #tpu.memory_space<vmem>>, vector<8x6xbf16>,
    %c1_119 = arith.constant 1 : index
    %c1_120 = arith.constant 1 : index
    %c0_121 = arith.constant 0 : index
    %c0_122 = arith.constant 0 : index
    %76 = vector.load %arg1[%c1_119, %c1_120, %c0_121, %c0_122] : memref<4x4x8x8xbf16, #tpu.memory_space<vmem>>, vector<1x1x8x6xbf16>
    %77 = vector.shape_cast %76 : vector<1x1x8x6xbf16> to vector<8x6xbf16>
    %c0_123 = arith.constant 0 : index
    %c6_124 = arith.constant 6 : index
    %78 = vector.load %arg5[%c0_123, %c6_124] : memref<32x24xbf16, #tpu.memory_space<vmem>>, vector<8x6xbf16>
    tpu.vector_store %arg5[%c0_123, %c6_124], %77 {strides = array<i32>} : memref<32x24xbf16, #tpu.memory_space<vmem>>, vector<8x6xbf16>,
    %c0_125 = arith.constant 0 : index
    %c1_126 = arith.constant 1 : index
    %c0_127 = arith.constant 0 : index
    %c2_128 = arith.constant 2 : index
    %79 = vector.load %arg1[%c0_125, %c1_126, %c0_127, %c2_128] : memref<4x4x8x8xbf16, #tpu.memory_space<vmem>>, vector<1x1x8x6xbf16>
    %80 = vector.shape_cast %79 : vector<1x1x8x6xbf16> to vector<8x6xbf16>
    %c8_129 = arith.constant 8 : index
    %c6_130 = arith.constant 6 : index
    %81 = vector.load %arg5[%c8_129, %c6_130] : memref<32x24xbf16, #tpu.memory_space<vmem>>, vector<8x6xbf16>
    tpu.vector_store %arg5[%c8_129, %c6_130], %80 {strides = array<i32>} : memref<32x24xbf16, #tpu.memory_space<vmem>>, vector<8x6xbf16>,
    %c3_131 = arith.constant 3 : index
    %c1_132 = arith.constant 1 : index
    %c0_133 = arith.constant 0 : index
    %c0_134 = arith.constant 0 : index
    %82 = vector.load %arg1[%c3_131, %c1_132, %c0_133, %c0_134] : memref<4x4x8x8xbf16, #tpu.memory_space<vmem>>, vector<1x1x8x6xbf16>
    %83 = vector.shape_cast %82 : vector<1x1x8x6xbf16> to vector<8x6xbf16>
    %c16_135 = arith.constant 16 : index
    %c6_136 = arith.constant 6 : index
    %84 = vector.load %arg5[%c16_135, %c6_136] : memref<32x24xbf16, #tpu.memory_space<vmem>>, vector<8x6xbf16>
    tpu.vector_store %arg5[%c16_135, %c6_136], %83 {strides = array<i32>} : memref<32x24xbf16, #tpu.memory_space<vmem>>, vector<8x6xbf16>,
    %c2_137 = arith.constant 2 : index
    %c1_138 = arith.constant 1 : index
    %c0_139 = arith.constant 0 : index
    %c2_140 = arith.constant 2 : index
    %85 = vector.load %arg1[%c2_137, %c1_138, %c0_139, %c2_140] : memref<4x4x8x8xbf16, #tpu.memory_space<vmem>>, vector<1x1x8x6xbf16>
    %86 = vector.shape_cast %85 : vector<1x1x8x6xbf16> to vector<8x6xbf16>
    %c24_141 = arith.constant 24 : index
    %c6_142 = arith.constant 6 : index
    %87 = vector.load %arg5[%c24_141, %c6_142] : memref<32x24xbf16, #tpu.memory_space<vmem>>, vector<8x6xbf16>
    tpu.vector_store %arg5[%c24_141, %c6_142], %86 {strides = array<i32>} : memref<32x24xbf16, #tpu.memory_space<vmem>>, vector<8x6xbf16>,
    %c2_143 = arith.constant 2 : index
    %c1_144 = arith.constant 1 : index
    %c0_145 = arith.constant 0 : index
    %c0_146 = arith.constant 0 : index
    %88 = vector.load %arg1[%c2_143, %c1_144, %c0_145, %c0_146] : memref<4x4x8x8xbf16, #tpu.memory_space<vmem>>, vector<1x1x8x6xbf16>
    %89 = vector.shape_cast %88 : vector<1x1x8x6xbf16> to vector<8x6xbf16>
    %c0_147 = arith.constant 0 : index
    %c12_148 = arith.constant 12 : index
    %90 = vector.load %arg5[%c0_147, %c12_148] : memref<32x24xbf16, #tpu.memory_space<vmem>>, vector<8x6xbf16>
    tpu.vector_store %arg5[%c0_147, %c12_148], %89 {strides = array<i32>} : memref<32x24xbf16, #tpu.memory_space<vmem>>, vector<8x6xbf16>,
    %c3_149 = arith.constant 3 : index
    %c1_150 = arith.constant 1 : index
    %c0_151 = arith.constant 0 : index
    %c0_152 = arith.constant 0 : index
    %91 = vector.load %arg1[%c3_149, %c1_150, %c0_151, %c0_152] : memref<4x4x8x8xbf16, #tpu.memory_space<vmem>>, vector<1x1x8x6xbf16>
    %92 = vector.shape_cast %91 : vector<1x1x8x6xbf16> to vector<8x6xbf16>
    %c8_153 = arith.constant 8 : index
    %c12_154 = arith.constant 12 : index
    %93 = vector.load %arg5[%c8_153, %c12_154] : memref<32x24xbf16, #tpu.memory_space<vmem>>, vector<8x6xbf16>
    tpu.vector_store %arg5[%c8_153, %c12_154], %92 {strides = array<i32>} : memref<32x24xbf16, #tpu.memory_space<vmem>>, vector<8x6xbf16>,
    %c0_155 = arith.constant 0 : index
    %c2_156 = arith.constant 2 : index
    %c0_157 = arith.constant 0 : index
    %c0_158 = arith.constant 0 : index
    %94 = vector.load %arg1[%c0_155, %c2_156, %c0_157, %c0_158] : memref<4x4x8x8xbf16, #tpu.memory_space<vmem>>, vector<1x1x8x6xbf16>
    %95 = vector.shape_cast %94 : vector<1x1x8x6xbf16> to vector<8x6xbf16>
    %c16_159 = arith.constant 16 : index
    %c12_160 = arith.constant 12 : index
    %96 = vector.load %arg5[%c16_159, %c12_160] : memref<32x24xbf16, #tpu.memory_space<vmem>>, vector<8x6xbf16>
    tpu.vector_store %arg5[%c16_159, %c12_160], %95 {strides = array<i32>} : memref<32x24xbf16, #tpu.memory_space<vmem>>, vector<8x6xbf16>,
    %c1_161 = arith.constant 1 : index
    %c2_162 = arith.constant 2 : index
    %c0_163 = arith.constant 0 : index
    %c0_164 = arith.constant 0 : index
    %97 = vector.load %arg1[%c1_161, %c2_162, %c0_163, %c0_164] : memref<4x4x8x8xbf16, #tpu.memory_space<vmem>>, vector<1x1x8x6xbf16>
    %98 = vector.shape_cast %97 : vector<1x1x8x6xbf16> to vector<8x6xbf16>
    %c24_165 = arith.constant 24 : index
    %c12_166 = arith.constant 12 : index
    %99 = vector.load %arg5[%c24_165, %c12_166] : memref<32x24xbf16, #tpu.memory_space<vmem>>, vector<8x6xbf16>
    tpu.vector_store %arg5[%c24_165, %c12_166], %98 {strides = array<i32>} : memref<32x24xbf16, #tpu.memory_space<vmem>>, vector<8x6xbf16>,
    %c3_167 = arith.constant 3 : index
    %c1_168 = arith.constant 1 : index
    %c0_169 = arith.constant 0 : index
    %c0_170 = arith.constant 0 : index
    %100 = vector.load %arg1[%c3_167, %c1_168, %c0_169, %c0_170] : memref<4x4x8x8xbf16, #tpu.memory_space<vmem>>, vector<1x1x8x6xbf16>
    %101 = vector.shape_cast %100 : vector<1x1x8x6xbf16> to vector<8x6xbf16>
    %c0_171 = arith.constant 0 : index
    %c18_172 = arith.constant 18 : index
    %102 = vector.load %arg5[%c0_171, %c18_172] : memref<32x24xbf16, #tpu.memory_space<vmem>>, vector<8x6xbf16>
    tpu.vector_store %arg5[%c0_171, %c18_172], %101 {strides = array<i32>} : memref<32x24xbf16, #tpu.memory_space<vmem>>, vector<8x6xbf16>,
    %c2_173 = arith.constant 2 : index
    %c1_174 = arith.constant 1 : index
    %c0_175 = arith.constant 0 : index
    %c2_176 = arith.constant 2 : index
    %103 = vector.load %arg1[%c2_173, %c1_174, %c0_175, %c2_176] : memref<4x4x8x8xbf16, #tpu.memory_space<vmem>>, vector<1x1x8x6xbf16>
    %104 = vector.shape_cast %103 : vector<1x1x8x6xbf16> to vector<8x6xbf16>
    %c8_177 = arith.constant 8 : index
    %c18_178 = arith.constant 18 : index
    %105 = vector.load %arg5[%c8_177, %c18_178] : memref<32x24xbf16, #tpu.memory_space<vmem>>, vector<8x6xbf16>
    tpu.vector_store %arg5[%c8_177, %c18_178], %104 {strides = array<i32>} : memref<32x24xbf16, #tpu.memory_space<vmem>>, vector<8x6xbf16>,
    %c1_179 = arith.constant 1 : index
    %c2_180 = arith.constant 2 : index
    %c0_181 = arith.constant 0 : index
    %c0_182 = arith.constant 0 : index
    %106 = vector.load %arg1[%c1_179, %c2_180, %c0_181, %c0_182] : memref<4x4x8x8xbf16, #tpu.memory_space<vmem>>, vector<1x1x8x6xbf16>
    %107 = vector.shape_cast %106 : vector<1x1x8x6xbf16> to vector<8x6xbf16>
    %c16_183 = arith.constant 16 : index
    %c18_184 = arith.constant 18 : index
    %108 = vector.load %arg5[%c16_183, %c18_184] : memref<32x24xbf16, #tpu.memory_space<vmem>>, vector<8x6xbf16>
    tpu.vector_store %arg5[%c16_183, %c18_184], %107 {strides = array<i32>} : memref<32x24xbf16, #tpu.memory_space<vmem>>, vector<8x6xbf16>,
    %c0_185 = arith.constant 0 : index
    %c2_186 = arith.constant 2 : index
    %c0_187 = arith.constant 0 : index
    %c2_188 = arith.constant 2 : index
    %109 = vector.load %arg1[%c0_185, %c2_186, %c0_187, %c2_188] : memref<4x4x8x8xbf16, #tpu.memory_space<vmem>>, vector<1x1x8x6xbf16>
    %110 = vector.shape_cast %109 : vector<1x1x8x6xbf16> to vector<8x6xbf16>
    %c24_189 = arith.constant 24 : index
    %c18_190 = arith.constant 18 : index
    %111 = vector.load %arg5[%c24_189, %c18_190] : memref<32x24xbf16, #tpu.memory_space<vmem>>, vector<8x6xbf16>
    tpu.vector_store %arg5[%c24_189, %c18_190], %110 {strides = array<i32>} : memref<32x24xbf16, #tpu.memory_space<vmem>>, vector<8x6xbf16>,
    %c0_191 = arith.constant 0 : index
    %c0_192 = arith.constant 0 : index
    %112 = vector.load %arg5[%c0_191, %c0_192] : memref<32x24xbf16, #tpu.memory_space<vmem>>, vector<32x24xbf16>
    %cst_193 = arith.constant dense<0.000000e+00> : vector<16x24xf32>
    %113 = tpu.matmul %0, %112, %cst_193 {dimension_numbers = #tpu.dot_dimension_numbers<[1], [0], [0], [1], [0, 0, 1, 1], [], []>} : vector<16x32xbf16>, vector<32x24xbf16>, vector<16x24xf32> -> vector<16x24xf32>
    %114 = vector.extract_strided_slice %113 {offsets = [0, 0], sizes = [16, 6], strides = [1, 1]} : vector<16x24xf32> to vector<16x6xf32>
    %115 = vector.extract_strided_slice %113 {offsets = [0, 6], sizes = [16, 6], strides = [1, 1]} : vector<16x24xf32> to vector<16x6xf32>
    %116 = arith.maximumf %114, %115 : vector<16x6xf32>
    %117 = vector.extract_strided_slice %113 {offsets = [0, 12], sizes = [16, 6], strides = [1, 1]} : vector<16x24xf32> to vector<16x6xf32>
    %118 = arith.maximumf %116, %117 : vector<16x6xf32>
    %119 = vector.extract_strided_slice %113 {offsets = [0, 18], sizes = [16, 6], strides = [1, 1]} : vector<16x24xf32> to vector<16x6xf32>
    %120 = arith.maximumf %118, %119 : vector<16x6xf32>
    %121 = vector.broadcast %1 : vector<16x1xf32> to vector<16x6xf32>
    %122 = arith.addf %120, %121 : vector<16x6xf32>
    %cst_194 = arith.constant 0.000000e+00 : f32
    %123 = vector.broadcast %cst_194 : f32 to vector<16x6xf32>
    %124 = arith.maximumf %122, %123 : vector<16x6xf32>
    %c0_195 = arith.constant 0 : index
    %c6_196 = arith.constant 6 : index
    %125 = vector.load %arg4[%c0_195, %c6_196] : memref<16x18xf32, #tpu.memory_space<vmem>>, vector<16x6xf32>
    tpu.vector_store %arg4[%c0_195, %c6_196], %124 {strides = array<i32>} : memref<16x18xf32, #tpu.memory_space<vmem>>, vector<16x6xf32>,
    %c0_197 = arith.constant 0 : index
    %c2_198 = arith.constant 2 : index
    %c0_199 = arith.constant 0 : index
    %c0_200 = arith.constant 0 : index
    %126 = vector.load %arg1[%c0_197, %c2_198, %c0_199, %c0_200] : memref<4x4x8x8xbf16, #tpu.memory_space<vmem>>, vector<1x1x8x6xbf16>
    %127 = vector.shape_cast %126 : vector<1x1x8x6xbf16> to vector<8x6xbf16>
    %c0_201 = arith.constant 0 : index
    %c0_202 = arith.constant 0 : index
    %128 = vector.load %arg5[%c0_201, %c0_202] : memref<32x24xbf16, #tpu.memory_space<vmem>>, vector<8x6xbf16>
    tpu.vector_store %arg5[%c0_201, %c0_202], %127 {strides = array<i32>} : memref<32x24xbf16, #tpu.memory_space<vmem>>, vector<8x6xbf16>,
    %c1_203 = arith.constant 1 : index
    %c2_204 = arith.constant 2 : index
    %c0_205 = arith.constant 0 : index
    %c0_206 = arith.constant 0 : index
    %129 = vector.load %arg1[%c1_203, %c2_204, %c0_205, %c0_206] : memref<4x4x8x8xbf16, #tpu.memory_space<vmem>>, vector<1x1x8x6xbf16>
    %130 = vector.shape_cast %129 : vector<1x1x8x6xbf16> to vector<8x6xbf16>
    %c8_207 = arith.constant 8 : index
    %c0_208 = arith.constant 0 : index
    %131 = vector.load %arg5[%c8_207, %c0_208] : memref<32x24xbf16, #tpu.memory_space<vmem>>, vector<8x6xbf16>
    tpu.vector_store %arg5[%c8_207, %c0_208], %130 {strides = array<i32>} : memref<32x24xbf16, #tpu.memory_space<vmem>>, vector<8x6xbf16>,
    %c2_209 = arith.constant 2 : index
    %c2_210 = arith.constant 2 : index
    %c0_211 = arith.constant 0 : index
    %c0_212 = arith.constant 0 : index
    %132 = vector.load %arg1[%c2_209, %c2_210, %c0_211, %c0_212] : memref<4x4x8x8xbf16, #tpu.memory_space<vmem>>, vector<1x1x8x6xbf16>
    %133 = vector.shape_cast %132 : vector<1x1x8x6xbf16> to vector<8x6xbf16>
    %c16_213 = arith.constant 16 : index
    %c0_214 = arith.constant 0 : index
    %134 = vector.load %arg5[%c16_213, %c0_214] : memref<32x24xbf16, #tpu.memory_space<vmem>>, vector<8x6xbf16>
    tpu.vector_store %arg5[%c16_213, %c0_214], %133 {strides = array<i32>} : memref<32x24xbf16, #tpu.memory_space<vmem>>, vector<8x6xbf16>,
    %c3_215 = arith.constant 3 : index
    %c2_216 = arith.constant 2 : index
    %c0_217 = arith.constant 0 : index
    %c0_218 = arith.constant 0 : index
    %135 = vector.load %arg1[%c3_215, %c2_216, %c0_217, %c0_218] : memref<4x4x8x8xbf16, #tpu.memory_space<vmem>>, vector<1x1x8x6xbf16>
    %136 = vector.shape_cast %135 : vector<1x1x8x6xbf16> to vector<8x6xbf16>
    %c24_219 = arith.constant 24 : index
    %c0_220 = arith.constant 0 : index
    %137 = vector.load %arg5[%c24_219, %c0_220] : memref<32x24xbf16, #tpu.memory_space<vmem>>, vector<8x6xbf16>
    tpu.vector_store %arg5[%c24_219, %c0_220], %136 {strides = array<i32>} : memref<32x24xbf16, #tpu.memory_space<vmem>>, vector<8x6xbf16>,
    %c1_221 = arith.constant 1 : index
    %c2_222 = arith.constant 2 : index
    %c0_223 = arith.constant 0 : index
    %c0_224 = arith.constant 0 : index
    %138 = vector.load %arg1[%c1_221, %c2_222, %c0_223, %c0_224] : memref<4x4x8x8xbf16, #tpu.memory_space<vmem>>, vector<1x1x8x6xbf16>
    %139 = vector.shape_cast %138 : vector<1x1x8x6xbf16> to vector<8x6xbf16>
    %c0_225 = arith.constant 0 : index
    %c6_226 = arith.constant 6 : index
    %140 = vector.load %arg5[%c0_225, %c6_226] : memref<32x24xbf16, #tpu.memory_space<vmem>>, vector<8x6xbf16>
    tpu.vector_store %arg5[%c0_225, %c6_226], %139 {strides = array<i32>} : memref<32x24xbf16, #tpu.memory_space<vmem>>, vector<8x6xbf16>,
    %c0_227 = arith.constant 0 : index
    %c2_228 = arith.constant 2 : index
    %c0_229 = arith.constant 0 : index
    %c2_230 = arith.constant 2 : index
    %141 = vector.load %arg1[%c0_227, %c2_228, %c0_229, %c2_230] : memref<4x4x8x8xbf16, #tpu.memory_space<vmem>>, vector<1x1x8x6xbf16>
    %142 = vector.shape_cast %141 : vector<1x1x8x6xbf16> to vector<8x6xbf16>
    %c8_231 = arith.constant 8 : index
    %c6_232 = arith.constant 6 : index
    %143 = vector.load %arg5[%c8_231, %c6_232] : memref<32x24xbf16, #tpu.memory_space<vmem>>, vector<8x6xbf16>
    tpu.vector_store %arg5[%c8_231, %c6_232], %142 {strides = array<i32>} : memref<32x24xbf16, #tpu.memory_space<vmem>>, vector<8x6xbf16>,
    %c3_233 = arith.constant 3 : index
    %c2_234 = arith.constant 2 : index
    %c0_235 = arith.constant 0 : index
    %c0_236 = arith.constant 0 : index
    %144 = vector.load %arg1[%c3_233, %c2_234, %c0_235, %c0_236] : memref<4x4x8x8xbf16, #tpu.memory_space<vmem>>, vector<1x1x8x6xbf16>
    %145 = vector.shape_cast %144 : vector<1x1x8x6xbf16> to vector<8x6xbf16>
    %c16_237 = arith.constant 16 : index
    %c6_238 = arith.constant 6 : index
    %146 = vector.load %arg5[%c16_237, %c6_238] : memref<32x24xbf16, #tpu.memory_space<vmem>>, vector<8x6xbf16>
    tpu.vector_store %arg5[%c16_237, %c6_238], %145 {strides = array<i32>} : memref<32x24xbf16, #tpu.memory_space<vmem>>, vector<8x6xbf16>,
    %c2_239 = arith.constant 2 : index
    %c2_240 = arith.constant 2 : index
    %c0_241 = arith.constant 0 : index
    %c2_242 = arith.constant 2 : index
    %147 = vector.load %arg1[%c2_239, %c2_240, %c0_241, %c2_242] : memref<4x4x8x8xbf16, #tpu.memory_space<vmem>>, vector<1x1x8x6xbf16>
    %148 = vector.shape_cast %147 : vector<1x1x8x6xbf16> to vector<8x6xbf16>
    %c24_243 = arith.constant 24 : index
    %c6_244 = arith.constant 6 : index
    %149 = vector.load %arg5[%c24_243, %c6_244] : memref<32x24xbf16, #tpu.memory_space<vmem>>, vector<8x6xbf16>
    tpu.vector_store %arg5[%c24_243, %c6_244], %148 {strides = array<i32>} : memref<32x24xbf16, #tpu.memory_space<vmem>>, vector<8x6xbf16>,
    %c2_245 = arith.constant 2 : index
    %c2_246 = arith.constant 2 : index
    %c0_247 = arith.constant 0 : index
    %c0_248 = arith.constant 0 : index
    %150 = vector.load %arg1[%c2_245, %c2_246, %c0_247, %c0_248] : memref<4x4x8x8xbf16, #tpu.memory_space<vmem>>, vector<1x1x8x6xbf16>
    %151 = vector.shape_cast %150 : vector<1x1x8x6xbf16> to vector<8x6xbf16>
    %c0_249 = arith.constant 0 : index
    %c12_250 = arith.constant 12 : index
    %152 = vector.load %arg5[%c0_249, %c12_250] : memref<32x24xbf16, #tpu.memory_space<vmem>>, vector<8x6xbf16>
    tpu.vector_store %arg5[%c0_249, %c12_250], %151 {strides = array<i32>} : memref<32x24xbf16, #tpu.memory_space<vmem>>, vector<8x6xbf16>,
    %c3_251 = arith.constant 3 : index
    %c2_252 = arith.constant 2 : index
    %c0_253 = arith.constant 0 : index
    %c0_254 = arith.constant 0 : index
    %153 = vector.load %arg1[%c3_251, %c2_252, %c0_253, %c0_254] : memref<4x4x8x8xbf16, #tpu.memory_space<vmem>>, vector<1x1x8x6xbf16>
    %154 = vector.shape_cast %153 : vector<1x1x8x6xbf16> to vector<8x6xbf16>
    %c8_255 = arith.constant 8 : index
    %c12_256 = arith.constant 12 : index
    %155 = vector.load %arg5[%c8_255, %c12_256] : memref<32x24xbf16, #tpu.memory_space<vmem>>, vector<8x6xbf16>
    tpu.vector_store %arg5[%c8_255, %c12_256], %154 {strides = array<i32>} : memref<32x24xbf16, #tpu.memory_space<vmem>>, vector<8x6xbf16>,
    %c0_257 = arith.constant 0 : index
    %c3_258 = arith.constant 3 : index
    %c0_259 = arith.constant 0 : index
    %c0_260 = arith.constant 0 : index
    %156 = vector.load %arg1[%c0_257, %c3_258, %c0_259, %c0_260] : memref<4x4x8x8xbf16, #tpu.memory_space<vmem>>, vector<1x1x8x6xbf16>
    %157 = vector.shape_cast %156 : vector<1x1x8x6xbf16> to vector<8x6xbf16>
    %c16_261 = arith.constant 16 : index
    %c12_262 = arith.constant 12 : index
    %158 = vector.load %arg5[%c16_261, %c12_262] : memref<32x24xbf16, #tpu.memory_space<vmem>>, vector<8x6xbf16>
    tpu.vector_store %arg5[%c16_261, %c12_262], %157 {strides = array<i32>} : memref<32x24xbf16, #tpu.memory_space<vmem>>, vector<8x6xbf16>,
    %c1_263 = arith.constant 1 : index
    %c3_264 = arith.constant 3 : index
    %c0_265 = arith.constant 0 : index
    %c0_266 = arith.constant 0 : index
    %159 = vector.load %arg1[%c1_263, %c3_264, %c0_265, %c0_266] : memref<4x4x8x8xbf16, #tpu.memory_space<vmem>>, vector<1x1x8x6xbf16>
    %160 = vector.shape_cast %159 : vector<1x1x8x6xbf16> to vector<8x6xbf16>
    %c24_267 = arith.constant 24 : index
    %c12_268 = arith.constant 12 : index
    %161 = vector.load %arg5[%c24_267, %c12_268] : memref<32x24xbf16, #tpu.memory_space<vmem>>, vector<8x6xbf16>
    tpu.vector_store %arg5[%c24_267, %c12_268], %160 {strides = array<i32>} : memref<32x24xbf16, #tpu.memory_space<vmem>>, vector<8x6xbf16>,
    %c3_269 = arith.constant 3 : index
    %c2_270 = arith.constant 2 : index
    %c0_271 = arith.constant 0 : index
    %c0_272 = arith.constant 0 : index
    %162 = vector.load %arg1[%c3_269, %c2_270, %c0_271, %c0_272] : memref<4x4x8x8xbf16, #tpu.memory_space<vmem>>, vector<1x1x8x6xbf16>
    %163 = vector.shape_cast %162 : vector<1x1x8x6xbf16> to vector<8x6xbf16>
    %c0_273 = arith.constant 0 : index
    %c18_274 = arith.constant 18 : index
    %164 = vector.load %arg5[%c0_273, %c18_274] : memref<32x24xbf16, #tpu.memory_space<vmem>>, vector<8x6xbf16>
    tpu.vector_store %arg5[%c0_273, %c18_274], %163 {strides = array<i32>} : memref<32x24xbf16, #tpu.memory_space<vmem>>, vector<8x6xbf16>,
    %c2_275 = arith.constant 2 : index
    %c2_276 = arith.constant 2 : index
    %c0_277 = arith.constant 0 : index
    %c2_278 = arith.constant 2 : index
    %165 = vector.load %arg1[%c2_275, %c2_276, %c0_277, %c2_278] : memref<4x4x8x8xbf16, #tpu.memory_space<vmem>>, vector<1x1x8x6xbf16>
    %166 = vector.shape_cast %165 : vector<1x1x8x6xbf16> to vector<8x6xbf16>
    %c8_279 = arith.constant 8 : index
    %c18_280 = arith.constant 18 : index
    %167 = vector.load %arg5[%c8_279, %c18_280] : memref<32x24xbf16, #tpu.memory_space<vmem>>, vector<8x6xbf16>
    tpu.vector_store %arg5[%c8_279, %c18_280], %166 {strides = array<i32>} : memref<32x24xbf16, #tpu.memory_space<vmem>>, vector<8x6xbf16>,
    %c1_281 = arith.constant 1 : index
    %c3_282 = arith.constant 3 : index
    %c0_283 = arith.constant 0 : index
    %c0_284 = arith.constant 0 : index
    %168 = vector.load %arg1[%c1_281, %c3_282, %c0_283, %c0_284] : memref<4x4x8x8xbf16, #tpu.memory_space<vmem>>, vector<1x1x8x6xbf16>
    %169 = vector.shape_cast %168 : vector<1x1x8x6xbf16> to vector<8x6xbf16>
    %c16_285 = arith.constant 16 : index
    %c18_286 = arith.constant 18 : index
    %170 = vector.load %arg5[%c16_285, %c18_286] : memref<32x24xbf16, #tpu.memory_space<vmem>>, vector<8x6xbf16>
    tpu.vector_store %arg5[%c16_285, %c18_286], %169 {strides = array<i32>} : memref<32x24xbf16, #tpu.memory_space<vmem>>, vector<8x6xbf16>,
    %c0_287 = arith.constant 0 : index
    %c3_288 = arith.constant 3 : index
    %c0_289 = arith.constant 0 : index
    %c2_290 = arith.constant 2 : index
    %171 = vector.load %arg1[%c0_287, %c3_288, %c0_289, %c2_290] : memref<4x4x8x8xbf16, #tpu.memory_space<vmem>>, vector<1x1x8x6xbf16>
    %172 = vector.shape_cast %171 : vector<1x1x8x6xbf16> to vector<8x6xbf16>
    %c24_291 = arith.constant 24 : index
    %c18_292 = arith.constant 18 : index
    %173 = vector.load %arg5[%c24_291, %c18_292] : memref<32x24xbf16, #tpu.memory_space<vmem>>, vector<8x6xbf16>
    tpu.vector_store %arg5[%c24_291, %c18_292], %172 {strides = array<i32>} : memref<32x24xbf16, #tpu.memory_space<vmem>>, vector<8x6xbf16>,
    %c0_293 = arith.constant 0 : index
    %c0_294 = arith.constant 0 : index
    %174 = vector.load %arg5[%c0_293, %c0_294] : memref<32x24xbf16, #tpu.memory_space<vmem>>, vector<32x24xbf16>
    %cst_295 = arith.constant dense<0.000000e+00> : vector<16x24xf32>
    %175 = tpu.matmul %0, %174, %cst_295 {dimension_numbers = #tpu.dot_dimension_numbers<[1], [0], [0], [1], [0, 0, 1, 1], [], []>} : vector<16x32xbf16>, vector<32x24xbf16>, vector<16x24xf32> -> vector<16x24xf32>
    %176 = vector.extract_strided_slice %175 {offsets = [0, 0], sizes = [16, 6], strides = [1, 1]} : vector<16x24xf32> to vector<16x6xf32>
    %177 = vector.extract_strided_slice %175 {offsets = [0, 6], sizes = [16, 6], strides = [1, 1]} : vector<16x24xf32> to vector<16x6xf32>
    %178 = arith.maximumf %176, %177 : vector<16x6xf32>
    %179 = vector.extract_strided_slice %175 {offsets = [0, 12], sizes = [16, 6], strides = [1, 1]} : vector<16x24xf32> to vector<16x6xf32>
    %180 = arith.maximumf %178, %179 : vector<16x6xf32>
    %181 = vector.extract_strided_slice %175 {offsets = [0, 18], sizes = [16, 6], strides = [1, 1]} : vector<16x24xf32> to vector<16x6xf32>
    %182 = arith.maximumf %180, %181 : vector<16x6xf32>
    %183 = vector.broadcast %1 : vector<16x1xf32> to vector<16x6xf32>
    %184 = arith.addf %182, %183 : vector<16x6xf32>
    %cst_296 = arith.constant 0.000000e+00 : f32
    %185 = vector.broadcast %cst_296 : f32 to vector<16x6xf32>
    %186 = arith.maximumf %184, %185 : vector<16x6xf32>
    %c0_297 = arith.constant 0 : index
    %c12_298 = arith.constant 12 : index
    %187 = vector.load %arg4[%c0_297, %c12_298] : memref<16x18xf32, #tpu.memory_space<vmem>>, vector<16x6xf32>
    tpu.vector_store %arg4[%c0_297, %c12_298], %186 {strides = array<i32>} : memref<16x18xf32, #tpu.memory_space<vmem>>, vector<16x6xf32>,
    return
  }
  func.func @transform_0(%arg0: i32) -> (i32, i32, i32, i32) {
    %c0_i32 = arith.constant 0 : i32
    %c0_i32_0 = arith.constant 0 : i32
    %c0_i32_1 = arith.constant 0 : i32
    %c0_i32_2 = arith.constant 0 : i32
    %c0_i32_3 = arith.constant 0 : i32
    return %c0_i32, %c0_i32_0, %c0_i32_1, %c0_i32_2 : i32, i32, i32, i32
  }
  func.func @transform_1(%arg0: i32) -> (i32, i32) {
    %c0_i32 = arith.constant 0 : i32
    %c0_i32_0 = arith.constant 0 : i32
    return %arg0, %c0_i32 : i32, i32
  }
  func.func @transform_2(%arg0: i32) -> (i32, i32) {
    %c0_i32 = arith.constant 0 : i32
    %c0_i32_0 = arith.constant 0 : i32
    return %arg0, %c0_i32 : i32, i32
  }
  func.func @transform_3(%arg0: i32) -> (i32, i32) {
    %c0_i32 = arith.constant 0 : i32
    %c0_i32_0 = arith.constant 0 : i32
    return %arg0, %c0_i32 : i32, i32
  }
}

</mosaic_0001>

<llo_original>
// kernel: network_with_xblock.3
$region0: #{network_with_xblock.3}
  #allocation0 [shape = 'u32[]', space=smem, size = 0x4, offset = 0x4, fixed_abs, tag = 'smem constant byte address 0x4 - core index']
  #allocation1 [shape = 'u32[144,128]{1,0:T(1,128)}', space=vmem, size = 0x12000, scoped, tag = 'internal scratch']
  #allocation2 [shape = 'bf16[32,24]{1,0:T(16,128)(2,1)}', space=vmem, size = 0x2000, scoped, tag = 'scratch operand']
  %s0 = inlined_call_operand.vmem [shape: bf16[4,4,8,8], index: 0, kind: input, shape index: {}]
  %s1 = inlined_call_operand.vmem [shape: bf16[16,32], index: 1, kind: input, shape index: {}]
  %s2 = inlined_call_operand.vmem [shape: f32[16,1], index: 2, kind: input, shape index: {}]
  %s3 = inlined_call_operand.vmem [shape: f32[16,18], index: 3, kind: output, shape index: {}]
  %s4 = sld [smem:[#allocation0]]
  $region22: #{network_with_xblock.3} parent=0
    _
  %s6 = ssub.s32 1, %s4
  %s7 = scalar_select 0, %s6, %s4
  // Predicated region
  $region2: #{network_with_xblock.3} parent=0 // pred_check
    _
  $region3: #{network_with_xblock.3} parent=0 // pred_check_branch
    %9 = sbr.rel (0) target = $region5
  $region4: #{network_with_xblock.3} parent=0 // pred_region
    _
  $region5: #{network_with_xblock.3} parent=0 // pred_fallthru
    _
  // Predicated region
  $region6: #{network_with_xblock.3} parent=0 // pred_check
    _
  $region7: #{network_with_xblock.3} parent=0 // pred_check_branch
    %11 = sbr.rel (0) target = $region9
  $region8: #{network_with_xblock.3} parent=0 // pred_region
    _
  $region9: #{network_with_xblock.3} parent=0 // pred_fallthru
    _
  // Predicated region
  $region10: #{network_with_xblock.3} parent=0 // pred_check
    _
  $region11: #{network_with_xblock.3} parent=0 // pred_check_branch
    %13 = sbr.rel (0) target = $region13
  $region12: #{network_with_xblock.3} parent=0 // pred_region
    _
  $region13: #{network_with_xblock.3} parent=0 // pred_fallthru
    _
  %v15 = vld [vmem:[%s1] sm:$0xf]
  %v16 = vld [vmem:[%s1 + $0x4] sm:$0xf]
  %v17 = vld [vmem:[%s2] sm:$0xff]
  %v18 = vld [vmem:[%s2 + $0x8] sm:$0xff]
  %v19 = vld [vmem:[%s0] sm:$0xf]
  %vm20 = vcmask 44032
  %21 = vst.msk [vmem:[#allocation2] sm:$0xf] %vm20, %v19
  %s22 = scalar_lea.vmem %s0, 16
  %v23 = vld [vmem:[%s22] sm:$0xf]
  %v25 = vunpack.c.l.b16 %v23
  %v26 = vpack.c.b16 %v25, %v25
  %vm28 = vcmask 48132
  %29 = vst.msk [vmem:[#allocation2] sm:$0xf0] %vm28, %v26
  %s30 = scalar_lea.vmem %s0, 32
  %v31 = vld [vmem:[%s30] sm:$0xf]
  %32 = vst.msk [vmem:[#allocation2 + $0x8] sm:$0xf] %vm20, %v31
  %s33 = scalar_lea.vmem %s0, 48
  %v34 = vld [vmem:[%s33] sm:$0xf]
  %v36 = vunpack.c.l.b16 %v34
  %v37 = vpack.c.b16 %v36, %v36
  %39 = vst.msk [vmem:[#allocation2 + $0x8] sm:$0xf0] %vm28, %v37
  %v40 = vld [vmem:[%s22] sm:$0xf]
  %v42 = vunpack.c.l.b16 %v40
  %v43 = vpack.c.b16 %v42, %v42
  %44 = vrot.lane.b32.xlu0 %v43, 6
  %v45 = vpop.permute.xlu0 %44
  %vm47 = vcmask 93232
  %48 = vst.msk [vmem:[#allocation2] sm:$0xf] %vm47, %v45
  %v49 = vld [vmem:[%s0] sm:$0xf]
  %v51 = vunpack.c.l.b16 %v49
  %v52 = vpack.c.b16 %v51, %v51
  %53 = vrot.lane.b32.xlu0 %v52, 4
  %v54 = vpop.permute.xlu0 %53
  %vm56 = vcmask 97332
  %57 = vst.msk [vmem:[#allocation2] sm:$0xf0] %vm56, %v54
  %v58 = vld [vmem:[%s33] sm:$0xf]
  %v60 = vunpack.c.l.b16 %v58
  %v61 = vpack.c.b16 %v60, %v60
  %62 = vrot.lane.b32.xlu0 %v61, 6
  %v63 = vpop.permute.xlu0 %62
  %65 = vst.msk [vmem:[#allocation2 + $0x8] sm:$0xf] %vm47, %v63
  %v66 = vld [vmem:[%s30] sm:$0xf]
  %v68 = vunpack.c.l.b16 %v66
  %v69 = vpack.c.b16 %v68, %v68
  %70 = vrot.lane.b32.xlu0 %v69, 4
  %v71 = vpop.permute.xlu0 %70
  %73 = vst.msk [vmem:[#allocation2 + $0x8] sm:$0xf0] %vm56, %v71
  %v74 = vld [vmem:[%s30] sm:$0xf]
  %v76 = vunpack.c.l.b16 %v74
  %v77 = vpack.c.b16 %v76, %v76
  %78 = vrot.lane.b32.xlu0 %v77, 12
  %v79 = vpop.permute.xlu0 %78
  %vm81 = vcmask 142432
  %82 = vst.msk [vmem:[#allocation2] sm:$0xf] %vm81, %v79
  %v83 = vld [vmem:[%s33] sm:$0xf]
  %v85 = vunpack.c.l.b16 %v83
  %v86 = vpack.c.b16 %v85, %v85
  %87 = vrot.lane.b32.xlu0 %v86, 12
  %v88 = vpop.permute.xlu0 %87
  %vm90 = vcmask 146532
  %91 = vst.msk [vmem:[#allocation2] sm:$0xf0] %vm90, %v88
  %s92 = scalar_lea.vmem %s0, 4
  %v93 = vld [vmem:[%s92] sm:$0xf]
  %v95 = vunpack.c.l.b16 %v93
  %v96 = vpack.c.b16 %v95, %v95
  %97 = vrot.lane.b32.xlu0 %v96, 12
  %v98 = vpop.permute.xlu0 %97
  %100 = vst.msk [vmem:[#allocation2 + $0x8] sm:$0xf] %vm81, %v98
  %s101 = scalar_lea.vmem %s0, 20
  %v102 = vld [vmem:[%s101] sm:$0xf]
  %v104 = vunpack.c.l.b16 %v102
  %v105 = vpack.c.b16 %v104, %v104
  %106 = vrot.lane.b32.xlu0 %v105, 12
  %v107 = vpop.permute.xlu0 %106
  %109 = vst.msk [vmem:[#allocation2 + $0x8] sm:$0xf0] %vm90, %v107
  %v110 = vld [vmem:[%s33] sm:$0xf]
  %v112 = vunpack.c.l.b16 %v110
  %v113 = vpack.c.b16 %v112, %v112
  %114 = vrot.lane.b32.xlu0 %v113, 18
  %v115 = vpop.permute.xlu0 %114
  %vm117 = vcmask 191632
  %118 = vst.msk [vmem:[#allocation2] sm:$0xf] %vm117, %v115
  %v119 = vld [vmem:[%s30] sm:$0xf]
  %v121 = vunpack.c.l.b16 %v119
  %v122 = vpack.c.b16 %v121, %v121
  %123 = vrot.lane.b32.xlu0 %v122, 16
  %v124 = vpop.permute.xlu0 %123
  %vm126 = vcmask 195732
  %127 = vst.msk [vmem:[#allocation2] sm:$0xf0] %vm126, %v124
  %v128 = vld [vmem:[%s101] sm:$0xf]
  %v130 = vunpack.c.l.b16 %v128
  %v131 = vpack.c.b16 %v130, %v130
  %132 = vrot.lane.b32.xlu0 %v131, 18
  %v133 = vpop.permute.xlu0 %132
  %135 = vst.msk [vmem:[#allocation2 + $0x8] sm:$0xf] %vm117, %v133
  %v136 = vld [vmem:[%s92] sm:$0xf]
  %v138 = vunpack.c.l.b16 %v136
  %v139 = vpack.c.b16 %v138, %v138
  %140 = vrot.lane.b32.xlu0 %v139, 16
  %v141 = vpop.permute.xlu0 %140
  %143 = vst.msk [vmem:[#allocation2 + $0x8] sm:$0xf0] %vm126, %v141
  %v144 = vld [vmem:[#allocation2] sm:$0xff]
  %v145 = vld [vmem:[#allocation2 + $0x8] sm:$0xff]
  %v148 = vunpack.c.l.b16 %v15
  %v149 = vunpack.c.l.b16 %v16
  %v150 = vpack.c.b16 %v149, %v148
  %vm151 = vcmask 261120
  %v153 = vsel %vm151, %v150, 0
  %155 = vmatprep.subr.bf16.mxu0 0
  %156 = vmatpush1.bf16.msra.mxu0 %v144
  %157 = vmatprep.subr.bf16.mxu0 0
  %158 = vmatpush1.bf16.msra.mxu0 %v145
  %159 = vmatprep.subr.bf16.mxu0 0
  %160 = vmatpush1.bf16.msra.mxu0 0
  %161 = vmatprep.subr.bf16.mxu0 0
  %162 = vmatpush1.bf16.msra.mxu0 0
  %163 = vmatprep.subr.bf16.mxu0 0
  %164 = vmatpush1.bf16.msra.mxu0 0
  %165 = vmatprep.subr.bf16.mxu0 0
  %166 = vmatpush1.bf16.msra.mxu0 0
  %167 = vmatprep.subr.bf16.mxu0 0
  %168 = vmatpush1.bf16.msra.mxu0 0
  %169 = vmatprep.subr.bf16.mxu0 0
  %170 = vmatpush1.bf16.msra.mxu0 0
  %171 = vmatprep.subr.bf16.mxu0 0
  %172 = vmatpush1.bf16.msra.mxu0 0
  %173 = vmatprep.subr.bf16.mxu0 0
  %174 = vmatpush1.bf16.msra.mxu0 0
  %175 = vmatprep.subr.bf16.mxu0 0
  %176 = vmatpush1.bf16.msra.mxu0 0
  %177 = vmatprep.subr.bf16.mxu0 0
  %178 = vmatpush1.bf16.msra.mxu0 0
  %179 = vmatprep.subr.bf16.mxu0 0
  %180 = vmatpush1.bf16.msra.mxu0 0
  %181 = vmatprep.subr.bf16.mxu0 0
  %182 = vmatpush1.bf16.msra.mxu0 0
  %183 = vmatprep.subr.bf16.mxu0 0
  %184 = vmatpush1.bf16.msra.mxu0 0
  %185 = vmatprep.subr.bf16.mxu0 0
  %186 = vmatpush1.bf16.msra.mxu0 0
  %187 = vmatprep.mubr.bf16.mxu0 0
  %188 = vmatmul.mubr.bf16.gmra.mrb[0].mxu0 %v153
  %v189 = vpop.f32.mrb[0].mxu0
  %v190 = vadd.f32 0.0, %v189
  %v191 = vpop.f32.mrb[0].mxu0
  %v192 = vpop.f32.mrb[0].mxu0
  %v193 = vadd.f32 0.0, %v192
  %v194 = vpop.f32.mrb[0].mxu0
  %195 = vdwg.mxu0
  %198 = vrot.lane.b32.xlu0 %v190, 122
  %v199 = vpop.permute.xlu0 %198
  %200 = vrot.lane.b32.xlu0 %v193, 122
  %v201 = vpop.permute.xlu0 %200
  %v204 = vmax.f32 %v190, %v199
  %v205 = vmax.f32 %v193, %v201
  %206 = vrot.lane.b32.xlu0 %v190, 116
  %v207 = vpop.permute.xlu0 %206
  %208 = vrot.lane.b32.xlu0 %v193, 116
  %v209 = vpop.permute.xlu0 %208
  %v212 = vmax.f32 %v204, %v207
  %v213 = vmax.f32 %v205, %v209
  %214 = vrot.lane.b32.xlu0 %v190, 110
  %v215 = vpop.permute.xlu0 %214
  %216 = vrot.lane.b32.xlu0 %v193, 110
  %v217 = vpop.permute.xlu0 %216
  %v220 = vmax.f32 %v212, %v215
  %v221 = vmax.f32 %v213, %v217
  %223 = vset.pattern.permute.xlu0 0
  %224 = vperm.xlu0 %223, %v17
  %v225 = vpop.permute.xlu0 %224
  %228 = vset.pattern.permute.xlu0 0
  %229 = vperm.xlu0 %228, %v18
  %v230 = vpop.permute.xlu0 %229
  %v232 = vadd.f32 %v220, %v225
  %v233 = vadd.f32 %v221, %v230
  %v234 = vmax.f32 %v232, 0.0
  %v235 = vmax.f32 %v233, 0.0
  %vm236 = vcmask 48128
  %237 = vst.msk [vmem:[%s3] sm:$0xff] %vm236, %v234
  %238 = vst.msk [vmem:[%s3 + $0x8] sm:$0xff] %vm236, %v235
  %v239 = vld [vmem:[%s92] sm:$0xf]
  %240 = vst.msk [vmem:[#allocation2] sm:$0xf] %vm20, %v239
  %v241 = vld [vmem:[%s101] sm:$0xf]
  %v243 = vunpack.c.l.b16 %v241
  %v244 = vpack.c.b16 %v243, %v243
  %246 = vst.msk [vmem:[#allocation2] sm:$0xf0] %vm28, %v244
  %s247 = scalar_lea.vmem %s0, 36
  %v248 = vld [vmem:[%s247] sm:$0xf]
  %249 = vst.msk [vmem:[#allocation2 + $0x8] sm:$0xf] %vm20, %v248
  %s250 = scalar_lea.vmem %s0, 52
  %v251 = vld [vmem:[%s250] sm:$0xf]
  %v253 = vunpack.c.l.b16 %v251
  %v254 = vpack.c.b16 %v253, %v253
  %256 = vst.msk [vmem:[#allocation2 + $0x8] sm:$0xf0] %vm28, %v254
  %v257 = vld [vmem:[%s101] sm:$0xf]
  %v259 = vunpack.c.l.b16 %v257
  %v260 = vpack.c.b16 %v259, %v259
  %261 = vrot.lane.b32.xlu0 %v260, 6
  %v262 = vpop.permute.xlu0 %261
  %264 = vst.msk [vmem:[#allocation2] sm:$0xf] %vm47, %v262
  %v265 = vld [vmem:[%s92] sm:$0xf]
  %v267 = vunpack.c.l.b16 %v265
  %v268 = vpack.c.b16 %v267, %v267
  %269 = vrot.lane.b32.xlu0 %v268, 4
  %v270 = vpop.permute.xlu0 %269
  %272 = vst.msk [vmem:[#allocation2] sm:$0xf0] %vm56, %v270
  %v273 = vld [vmem:[%s250] sm:$0xf]
  %v275 = vunpack.c.l.b16 %v273
  %v276 = vpack.c.b16 %v275, %v275
  %277 = vrot.lane.b32.xlu0 %v276, 6
  %v278 = vpop.permute.xlu0 %277
  %280 = vst.msk [vmem:[#allocation2 + $0x8] sm:$0xf] %vm47, %v278
  %v281 = vld [vmem:[%s247] sm:$0xf]
  %v283 = vunpack.c.l.b16 %v281
  %v284 = vpack.c.b16 %v283, %v283
  %285 = vrot.lane.b32.xlu0 %v284, 4
  %v286 = vpop.permute.xlu0 %285
  %288 = vst.msk [vmem:[#allocation2 + $0x8] sm:$0xf0] %vm56, %v286
  %v289 = vld [vmem:[%s247] sm:$0xf]
  %v291 = vunpack.c.l.b16 %v289
  %v292 = vpack.c.b16 %v291, %v291
  %293 = vrot.lane.b32.xlu0 %v292, 12
  %v294 = vpop.permute.xlu0 %293
  %296 = vst.msk [vmem:[#allocation2] sm:$0xf] %vm81, %v294
  %v297 = vld [vmem:[%s250] sm:$0xf]
  %v299 = vunpack.c.l.b16 %v297
  %v300 = vpack.c.b16 %v299, %v299
  %301 = vrot.lane.b32.xlu0 %v300, 12
  %v302 = vpop.permute.xlu0 %301
  %304 = vst.msk [vmem:[#allocation2] sm:$0xf0] %vm90, %v302
  %s305 = scalar_lea.vmem %s0, 8
  %v306 = vld [vmem:[%s305] sm:$0xf]
  %v308 = vunpack.c.l.b16 %v306
  %v309 = vpack.c.b16 %v308, %v308
  %310 = vrot.lane.b32.xlu0 %v309, 12
  %v311 = vpop.permute.xlu0 %310
  %313 = vst.msk [vmem:[#allocation2 + $0x8] sm:$0xf] %vm81, %v311
  %s314 = scalar_lea.vmem %s0, 24
  %v315 = vld [vmem:[%s314] sm:$0xf]
  %v317 = vunpack.c.l.b16 %v315
  %v318 = vpack.c.b16 %v317, %v317
  %319 = vrot.lane.b32.xlu0 %v318, 12
  %v320 = vpop.permute.xlu0 %319
  %322 = vst.msk [vmem:[#allocation2 + $0x8] sm:$0xf0] %vm90, %v320
  %v323 = vld [vmem:[%s250] sm:$0xf]
  %v325 = vunpack.c.l.b16 %v323
  %v326 = vpack.c.b16 %v325, %v325
  %327 = vrot.lane.b32.xlu0 %v326, 18
  %v328 = vpop.permute.xlu0 %327
  %330 = vst.msk [vmem:[#allocation2] sm:$0xf] %vm117, %v328
  %v331 = vld [vmem:[%s247] sm:$0xf]
  %v333 = vunpack.c.l.b16 %v331
  %v334 = vpack.c.b16 %v333, %v333
  %335 = vrot.lane.b32.xlu0 %v334, 16
  %v336 = vpop.permute.xlu0 %335
  %338 = vst.msk [vmem:[#allocation2] sm:$0xf0] %vm126, %v336
  %v339 = vld [vmem:[%s314] sm:$0xf]
  %v341 = vunpack.c.l.b16 %v339
  %v342 = vpack.c.b16 %v341, %v341
  %343 = vrot.lane.b32.xlu0 %v342, 18
  %v344 = vpop.permute.xlu0 %343
  %346 = vst.msk [vmem:[#allocation2 + $0x8] sm:$0xf] %vm117, %v344
  %v347 = vld [vmem:[%s305] sm:$0xf]
  %v349 = vunpack.c.l.b16 %v347
  %v350 = vpack.c.b16 %v349, %v349
  %351 = vrot.lane.b32.xlu0 %v350, 16
  %v352 = vpop.permute.xlu0 %351
  %354 = vst.msk [vmem:[#allocation2 + $0x8] sm:$0xf0] %vm126, %v352
  %v355 = vld [vmem:[#allocation2] sm:$0xff]
  %v356 = vld [vmem:[#allocation2 + $0x8] sm:$0xff]
  %357 = vmatprep.subr.bf16.mxu0 0
  %358 = vmatpush1.bf16.msra.mxu0 %v355
  %359 = vmatprep.subr.bf16.mxu0 0
  %360 = vmatpush1.bf16.msra.mxu0 %v356
  %361 = vmatprep.subr.bf16.mxu0 0
  %362 = vmatpush1.bf16.msra.mxu0 0
  %363 = vmatprep.subr.bf16.mxu0 0
  %364 = vmatpush1.bf16.msra.mxu0 0
  %365 = vmatprep.subr.bf16.mxu0 0
  %366 = vmatpush1.bf16.msra.mxu0 0
  %367 = vmatprep.subr.bf16.mxu0 0
  %368 = vmatpush1.bf16.msra.mxu0 0
  %369 = vmatprep.subr.bf16.mxu0 0
  %370 = vmatpush1.bf16.msra.mxu0 0
  %371 = vmatprep.subr.bf16.mxu0 0
  %372 = vmatpush1.bf16.msra.mxu0 0
  %373 = vmatprep.subr.bf16.mxu0 0
  %374 = vmatpush1.bf16.msra.mxu0 0
  %375 = vmatprep.subr.bf16.mxu0 0
  %376 = vmatpush1.bf16.msra.mxu0 0
  %377 = vmatprep.subr.bf16.mxu0 0
  %378 = vmatpush1.bf16.msra.mxu0 0
  %379 = vmatprep.subr.bf16.mxu0 0
  %380 = vmatpush1.bf16.msra.mxu0 0
  %381 = vmatprep.subr.bf16.mxu0 0
  %382 = vmatpush1.bf16.msra.mxu0 0
  %383 = vmatprep.subr.bf16.mxu0 0
  %384 = vmatpush1.bf16.msra.mxu0 0
  %385 = vmatprep.subr.bf16.mxu0 0
  %386 = vmatpush1.bf16.msra.mxu0 0
  %387 = vmatprep.subr.bf16.mxu0 0
  %388 = vmatpush1.bf16.msra.mxu0 0
  %389 = vmatprep.mubr.bf16.mxu0 0
  %390 = vmatmul.mubr.bf16.gmra.mrb[0].mxu0 %v153
  %v391 = vpop.f32.mrb[0].mxu0
  %v392 = vadd.f32 0.0, %v391
  %v393 = vpop.f32.mrb[0].mxu0
  %v394 = vpop.f32.mrb[0].mxu0
  %v395 = vadd.f32 0.0, %v394
  %v396 = vpop.f32.mrb[0].mxu0
  %397 = vdwg.mxu0
  %400 = vrot.lane.b32.xlu0 %v392, 122
  %v401 = vpop.permute.xlu0 %400
  %402 = vrot.lane.b32.xlu0 %v395, 122
  %v403 = vpop.permute.xlu0 %402
  %v406 = vmax.f32 %v392, %v401
  %v407 = vmax.f32 %v395, %v403
  %408 = vrot.lane.b32.xlu0 %v392, 116
  %v409 = vpop.permute.xlu0 %408
  %410 = vrot.lane.b32.xlu0 %v395, 116
  %v411 = vpop.permute.xlu0 %410
  %v414 = vmax.f32 %v406, %v409
  %v415 = vmax.f32 %v407, %v411
  %416 = vrot.lane.b32.xlu0 %v392, 110
  %v417 = vpop.permute.xlu0 %416
  %418 = vrot.lane.b32.xlu0 %v395, 110
  %v419 = vpop.permute.xlu0 %418
  %v422 = vmax.f32 %v414, %v417
  %v423 = vmax.f32 %v415, %v419
  %v424 = vadd.f32 %v422, %v225
  %v425 = vadd.f32 %v423, %v230
  %v426 = vmax.f32 %v424, 0.0
  %v427 = vmax.f32 %v425, 0.0
  %430 = vrot.lane.b32.xlu0 %v426, 6
  %v431 = vpop.permute.xlu0 %430
  %432 = vrot.lane.b32.xlu0 %v427, 6
  %v433 = vpop.permute.xlu0 %432
  %vm436 = vcmask 97328
  %437 = vst.msk [vmem:[%s3] sm:$0xff] %vm436, %v431
  %438 = vst.msk [vmem:[%s3 + $0x8] sm:$0xff] %vm436, %v433
  %v439 = vld [vmem:[%s305] sm:$0xf]
  %440 = vst.msk [vmem:[#allocation2] sm:$0xf] %vm20, %v439
  %v441 = vld [vmem:[%s314] sm:$0xf]
  %v443 = vunpack.c.l.b16 %v441
  %v444 = vpack.c.b16 %v443, %v443
  %446 = vst.msk [vmem:[#allocation2] sm:$0xf0] %vm28, %v444
  %s447 = scalar_lea.vmem %s0, 40
  %v448 = vld [vmem:[%s447] sm:$0xf]
  %449 = vst.msk [vmem:[#allocation2 + $0x8] sm:$0xf] %vm20, %v448
  %s450 = scalar_lea.vmem %s0, 56
  %v451 = vld [vmem:[%s450] sm:$0xf]
  %v453 = vunpack.c.l.b16 %v451
  %v454 = vpack.c.b16 %v453, %v453
  %456 = vst.msk [vmem:[#allocation2 + $0x8] sm:$0xf0] %vm28, %v454
  %v457 = vld [vmem:[%s314] sm:$0xf]
  %v459 = vunpack.c.l.b16 %v457
  %v460 = vpack.c.b16 %v459, %v459
  %461 = vrot.lane.b32.xlu0 %v460, 6
  %v462 = vpop.permute.xlu0 %461
  %464 = vst.msk [vmem:[#allocation2] sm:$0xf] %vm47, %v462
  %v465 = vld [vmem:[%s305] sm:$0xf]
  %v467 = vunpack.c.l.b16 %v465
  %v468 = vpack.c.b16 %v467, %v467
  %469 = vrot.lane.b32.xlu0 %v468, 4
  %v470 = vpop.permute.xlu0 %469
  %472 = vst.msk [vmem:[#allocation2] sm:$0xf0] %vm56, %v470
  %v473 = vld [vmem:[%s450] sm:$0xf]
  %v475 = vunpack.c.l.b16 %v473
  %v476 = vpack.c.b16 %v475, %v475
  %477 = vrot.lane.b32.xlu0 %v476, 6
  %v478 = vpop.permute.xlu0 %477
  %480 = vst.msk [vmem:[#allocation2 + $0x8] sm:$0xf] %vm47, %v478
  %v481 = vld [vmem:[%s447] sm:$0xf]
  %v483 = vunpack.c.l.b16 %v481
  %v484 = vpack.c.b16 %v483, %v483
  %485 = vrot.lane.b32.xlu0 %v484, 4
  %v486 = vpop.permute.xlu0 %485
  %488 = vst.msk [vmem:[#allocation2 + $0x8] sm:$0xf0] %vm56, %v486
  %v489 = vld [vmem:[%s447] sm:$0xf]
  %v491 = vunpack.c.l.b16 %v489
  %v492 = vpack.c.b16 %v491, %v491
  %493 = vrot.lane.b32.xlu0 %v492, 12
  %v494 = vpop.permute.xlu0 %493
  %496 = vst.msk [vmem:[#allocation2] sm:$0xf] %vm81, %v494
  %v497 = vld [vmem:[%s450] sm:$0xf]
  %v499 = vunpack.c.l.b16 %v497
  %v500 = vpack.c.b16 %v499, %v499
  %501 = vrot.lane.b32.xlu0 %v500, 12
  %v502 = vpop.permute.xlu0 %501
  %504 = vst.msk [vmem:[#allocation2] sm:$0xf0] %vm90, %v502
  %s505 = scalar_lea.vmem %s0, 12
  %v506 = vld [vmem:[%s505] sm:$0xf]
  %v508 = vunpack.c.l.b16 %v506
  %v509 = vpack.c.b16 %v508, %v508
  %510 = vrot.lane.b32.xlu0 %v509, 12
  %v511 = vpop.permute.xlu0 %510
  %513 = vst.msk [vmem:[#allocation2 + $0x8] sm:$0xf] %vm81, %v511
  %s514 = scalar_lea.vmem %s0, 28
  %v515 = vld [vmem:[%s514] sm:$0xf]
  %v517 = vunpack.c.l.b16 %v515
  %v518 = vpack.c.b16 %v517, %v517
  %519 = vrot.lane.b32.xlu0 %v518, 12
  %v520 = vpop.permute.xlu0 %519
  %522 = vst.msk [vmem:[#allocation2 + $0x8] sm:$0xf0] %vm90, %v520
  %v523 = vld [vmem:[%s450] sm:$0xf]
  %v525 = vunpack.c.l.b16 %v523
  %v526 = vpack.c.b16 %v525, %v525
  %527 = vrot.lane.b32.xlu0 %v526, 18
  %v528 = vpop.permute.xlu0 %527
  %530 = vst.msk [vmem:[#allocation2] sm:$0xf] %vm117, %v528
  %v531 = vld [vmem:[%s447] sm:$0xf]
  %v533 = vunpack.c.l.b16 %v531
  %v534 = vpack.c.b16 %v533, %v533
  %535 = vrot.lane.b32.xlu0 %v534, 16
  %v536 = vpop.permute.xlu0 %535
  %538 = vst.msk [vmem:[#allocation2] sm:$0xf0] %vm126, %v536
  %v539 = vld [vmem:[%s514] sm:$0xf]
  %v541 = vunpack.c.l.b16 %v539
  %v542 = vpack.c.b16 %v541, %v541
  %543 = vrot.lane.b32.xlu0 %v542, 18
  %v544 = vpop.permute.xlu0 %543
  %546 = vst.msk [vmem:[#allocation2 + $0x8] sm:$0xf] %vm117, %v544
  %v547 = vld [vmem:[%s505] sm:$0xf]
  %v549 = vunpack.c.l.b16 %v547
  %v550 = vpack.c.b16 %v549, %v549
  %551 = vrot.lane.b32.xlu0 %v550, 16
  %v552 = vpop.permute.xlu0 %551
  %554 = vst.msk [vmem:[#allocation2 + $0x8] sm:$0xf0] %vm126, %v552
  %v555 = vld [vmem:[#allocation2] sm:$0xff]
  %v556 = vld [vmem:[#allocation2 + $0x8] sm:$0xff]
  %557 = vmatprep.subr.bf16.mxu0 0
  %558 = vmatpush1.bf16.msra.mxu0 %v555
  %559 = vmatprep.subr.bf16.mxu0 0
  %560 = vmatpush1.bf16.msra.mxu0 %v556
  %561 = vmatprep.subr.bf16.mxu0 0
  %562 = vmatpush1.bf16.msra.mxu0 0
  %563 = vmatprep.subr.bf16.mxu0 0
  %564 = vmatpush1.bf16.msra.mxu0 0
  %565 = vmatprep.subr.bf16.mxu0 0
  %566 = vmatpush1.bf16.msra.mxu0 0
  %567 = vmatprep.subr.bf16.mxu0 0
  %568 = vmatpush1.bf16.msra.mxu0 0
  %569 = vmatprep.subr.bf16.mxu0 0
  %570 = vmatpush1.bf16.msra.mxu0 0
  %571 = vmatprep.subr.bf16.mxu0 0
  %572 = vmatpush1.bf16.msra.mxu0 0
  %573 = vmatprep.subr.bf16.mxu0 0
  %574 = vmatpush1.bf16.msra.mxu0 0
  %575 = vmatprep.subr.bf16.mxu0 0
  %576 = vmatpush1.bf16.msra.mxu0 0
  %577 = vmatprep.subr.bf16.mxu0 0
  %578 = vmatpush1.bf16.msra.mxu0 0
  %579 = vmatprep.subr.bf16.mxu0 0
  %580 = vmatpush1.bf16.msra.mxu0 0
  %581 = vmatprep.subr.bf16.mxu0 0
  %582 = vmatpush1.bf16.msra.mxu0 0
  %583 = vmatprep.subr.bf16.mxu0 0
  %584 = vmatpush1.bf16.msra.mxu0 0
  %585 = vmatprep.subr.bf16.mxu0 0
  %586 = vmatpush1.bf16.msra.mxu0 0
  %587 = vmatprep.subr.bf16.mxu0 0
  %588 = vmatpush1.bf16.msra.mxu0 0
  %589 = vmatprep.mubr.bf16.mxu0 0
  %590 = vmatmul.mubr.bf16.gmra.mrb[0].mxu0 %v153
  %v591 = vpop.f32.mrb[0].mxu0
  %v592 = vadd.f32 0.0, %v591
  %v593 = vpop.f32.mrb[0].mxu0
  %v594 = vpop.f32.mrb[0].mxu0
  %v595 = vadd.f32 0.0, %v594
  %v596 = vpop.f32.mrb[0].mxu0
  %597 = vdwg.mxu0
  %600 = vrot.lane.b32.xlu0 %v592, 122
  %v601 = vpop.permute.xlu0 %600
  %602 = vrot.lane.b32.xlu0 %v595, 122
  %v603 = vpop.permute.xlu0 %602
  %v606 = vmax.f32 %v592, %v601
  %v607 = vmax.f32 %v595, %v603
  %608 = vrot.lane.b32.xlu0 %v592, 116
  %v609 = vpop.permute.xlu0 %608
  %610 = vrot.lane.b32.xlu0 %v595, 116
  %v611 = vpop.permute.xlu0 %610
  %v614 = vmax.f32 %v606, %v609
  %v615 = vmax.f32 %v607, %v611
  %616 = vrot.lane.b32.xlu0 %v592, 110
  %v617 = vpop.permute.xlu0 %616
  %618 = vrot.lane.b32.xlu0 %v595, 110
  %v619 = vpop.permute.xlu0 %618
  %v622 = vmax.f32 %v614, %v617
  %v623 = vmax.f32 %v615, %v619
  %v624 = vadd.f32 %v622, %v225
  %v625 = vadd.f32 %v623, %v230
  %v626 = vmax.f32 %v624, 0.0
  %v627 = vmax.f32 %v625, 0.0
  %630 = vrot.lane.b32.xlu0 %v626, 12
  %v631 = vpop.permute.xlu0 %630
  %632 = vrot.lane.b32.xlu0 %v627, 12
  %v633 = vpop.permute.xlu0 %632
  %vm636 = vcmask 146528
  %637 = vst.msk [vmem:[%s3] sm:$0xff] %vm636, %v631
  %638 = vst.msk [vmem:[%s3 + $0x8] sm:$0xff] %vm636, %v633
  // Predicated region
  $region14: #{network_with_xblock.3} parent=0 // pred_check
    _
  $region15: #{network_with_xblock.3} parent=0 // pred_check_branch
    %640 = sbr.rel (0) target = $region17
  $region16: #{network_with_xblock.3} parent=0 // pred_region
    _
  $region17: #{network_with_xblock.3} parent=0 // pred_fallthru
    _
  // Predicated region
  $region18: #{network_with_xblock.3} parent=0 // pred_check
    _
  $region19: #{network_with_xblock.3} parent=0 // pred_check_branch
    %642 = sbr.rel (0) target = $region21
  $region20: #{network_with_xblock.3} parent=0 // pred_region
    _
  $region21: #{network_with_xblock.3} parent=0 // pred_fallthru
    _

// kernel: network_with_xblock.2
$region0: #{network_with_xblock.2}
  #allocation0 [shape = 'u32[]', space=smem, size = 0x4, offset = 0x4, fixed_abs, tag = 'smem constant byte address 0x4 - core index']
  #allocation1 [shape = 'u32[144,128]{1,0:T(1,128)}', space=vmem, size = 0x12000, scoped, tag = 'internal scratch']
  #allocation2 [shape = 'bf16[16,56]{1,0:T(16,128)(2,1)}', space=vmem, size = 0x1000, scoped, tag = 'scratch operand']
  %s0 = inlined_call_operand.vmem [shape: bf16[4,8,4,16], index: 0, kind: input, shape index: {}]
  %s1 = inlined_call_operand.vmem [shape: bf16[8,16], index: 1, kind: input, shape index: {}]
  %s2 = inlined_call_operand.vmem [shape: f32[8,1], index: 2, kind: input, shape index: {}]
  %s3 = inlined_call_operand.vmem [shape: bf16[8,98], index: 3, kind: output, shape index: {}]
  %s4 = sld [smem:[#allocation0]]
  $region22: #{network_with_xblock.2} parent=0
    _
  %s6 = ssub.s32 1, %s4
  %s7 = scalar_select 0, %s6, %s4
  // Predicated region
  $region2: #{network_with_xblock.2} parent=0 // pred_check
    _
  $region3: #{network_with_xblock.2} parent=0 // pred_check_branch
    %9 = sbr.rel (0) target = $region5
  $region4: #{network_with_xblock.2} parent=0 // pred_region
    _
  $region5: #{network_with_xblock.2} parent=0 // pred_fallthru
    _
  // Predicated region
  $region6: #{network_with_xblock.2} parent=0 // pred_check
    _
  $region7: #{network_with_xblock.2} parent=0 // pred_check_branch
    %11 = sbr.rel (0) target = $region9
  $region8: #{network_with_xblock.2} parent=0 // pred_region
    _
  $region9: #{network_with_xblock.2} parent=0 // pred_fallthru
    _
  // Predicated region
  $region10: #{network_with_xblock.2} parent=0 // pred_check
    _
  $region11: #{network_with_xblock.2} parent=0 // pred_check_branch
    %13 = sbr.rel (0) target = $region13
  $region12: #{network_with_xblock.2} parent=0 // pred_region
    _
  $region13: #{network_with_xblock.2} parent=0 // pred_fallthru
    _
  %v15 = vld [vmem:[%s1] sm:$0xf]
  %v16 = vld [vmem:[%s2] sm:$0xff]
  %v17 = vld [vmem:[%s0] sm:$0x3]
  %vm18 = vcmask 107520
  %19 = vst.msk [vmem:[#allocation2] sm:$0x3] %vm18, %v17
  %s20 = scalar_lea.vmem %s0, 16
  %v21 = vld [vmem:[%s20] sm:$0x3]
  %v23 = vcombine.low %v21, %v21
  %v25 = vunpack.c.l.s4 1983009808
  %v26 = vunpack.c.0.s8 %v25
  %v27 = vlaneseq
  %v28 = vshrl.u32 %v27, 7
  %v29 = vsub.s32 %v26, %v28
  %v30 = vrot.slane %v23, %v29
  %vm32 = vcmask 109570
  %33 = vst.msk [vmem:[#allocation2] sm:$0xc] %vm32, %v30
  %s34 = scalar_lea.vmem %s0, 32
  %v35 = vld [vmem:[%s34] sm:$0x3]
  %v38 = vunpack.c.l.s4 1983009808
  %v39 = vunpack.c.0.s8 %v38
  %v40 = vlaneseq
  %v41 = vshrl.u32 %v40, 7
  %v42 = vsub.s32 %v39, %v41
  %v43 = vrot.slane %v35, %v42
  %v44 = vcombine.low %v43, %v43
  %vm46 = vcmask 111620
  %47 = vst.msk [vmem:[#allocation2] sm:$0x30] %vm46, %v44
  %s48 = scalar_lea.vmem %s0, 48
  %v49 = vld [vmem:[%s48] sm:$0x3]
  %v51 = vcombine.low %v49, %v49
  %v53 = vunpack.c.l.s4 1983009808
  %v54 = vunpack.c.0.s8 %v53
  %v55 = vlaneseq
  %v56 = vshrl.u32 %v55, 7
  %v57 = vsub.s32 %v54, %v56
  %v58 = vrot.slane %v51, %v57
  %v59 = vcombine.low %v58, %v58
  %vm61 = vcmask 113670
  %62 = vst.msk [vmem:[#allocation2] sm:$0xc0] %vm61, %v59
  %v63 = vld [vmem:[%s20] sm:$0x3]
  %v66 = vunpack.c.l.s4 1983009808
  %v67 = vunpack.c.0.s8 %v66
  %v68 = vlaneseq
  %v69 = vshrl.u32 %v68, 7
  %v70 = vsub.s32 %v67, %v69
  %v71 = vrot.slane %v63, %v70
  %72 = vrot.lane.b32.xlu0 %v71, 14
  %v73 = vpop.permute.xlu0 %72
  %vm75 = vcmask 222320
  %76 = vst.msk [vmem:[#allocation2] sm:$0x3] %vm75, %v73
  %v77 = vld [vmem:[%s0] sm:$0x3]
  %v79 = vcombine.low %v77, %v77
  %v81 = vunpack.c.l.s4 1983009808
  %v82 = vunpack.c.0.s8 %v81
  %v83 = vlaneseq
  %v84 = vshrl.u32 %v83, 7
  %v85 = vsub.s32 %v82, %v84
  %v86 = vrot.slane %v79, %v85
  %87 = vrot.lane.b32.xlu0 %v86, 12
  %v88 = vpop.permute.xlu0 %87
  %vm90 = vcmask 224370
  %91 = vst.msk [vmem:[#allocation2] sm:$0xc] %vm90, %v88
  %v92 = vld [vmem:[%s48] sm:$0x3]
  %v95 = vunpack.c.l.s4 1983009808
  %v96 = vunpack.c.0.s8 %v95
  %v97 = vlaneseq
  %v98 = vshrl.u32 %v97, 7
  %v99 = vsub.s32 %v96, %v98
  %v100 = vrot.slane %v92, %v99
  %v101 = vcombine.low %v100, %v100
  %102 = vrot.lane.b32.xlu0 %v101, 14
  %v103 = vpop.permute.xlu0 %102
  %vm105 = vcmask 226420
  %106 = vst.msk [vmem:[#allocation2] sm:$0x30] %vm105, %v103
  %v107 = vld [vmem:[%s34] sm:$0x3]
  %v109 = vcombine.low %v107, %v107
  %v111 = vunpack.c.l.s4 1983009808
  %v112 = vunpack.c.0.s8 %v111
  %v113 = vlaneseq
  %v114 = vshrl.u32 %v113, 7
  %v115 = vsub.s32 %v112, %v114
  %v116 = vrot.slane %v109, %v115
  %v117 = vcombine.low %v116, %v116
  %118 = vrot.lane.b32.xlu0 %v117, 12
  %v119 = vpop.permute.xlu0 %118
  %vm121 = vcmask 228470
  %122 = vst.msk [vmem:[#allocation2] sm:$0xc0] %vm121, %v119
  %v123 = vld [vmem:[%s34] sm:$0x3]
  %v126 = vunpack.c.l.s4 1983009808
  %v127 = vunpack.c.0.s8 %v126
  %v128 = vlaneseq
  %v129 = vshrl.u32 %v128, 7
  %v130 = vsub.s32 %v127, %v129
  %v131 = vrot.slane %v123, %v130
  %132 = vrot.lane.b32.xlu0 %v131, 28
  %v133 = vpop.permute.xlu0 %132
  %vm135 = vcmask 337120
  %136 = vst.msk [vmem:[#allocation2] sm:$0x3] %vm135, %v133
  %v137 = vld [vmem:[%s48] sm:$0x3]
  %v139 = vcombine.low %v137, %v137
  %v141 = vunpack.c.l.s4 1983009808
  %v142 = vunpack.c.0.s8 %v141
  %v143 = vlaneseq
  %v144 = vshrl.u32 %v143, 7
  %v145 = vsub.s32 %v142, %v144
  %v146 = vrot.slane %v139, %v145
  %147 = vrot.lane.b32.xlu0 %v146, 28
  %v148 = vpop.permute.xlu0 %147
  %vm150 = vcmask 339170
  %151 = vst.msk [vmem:[#allocation2] sm:$0xc] %vm150, %v148
  %s152 = scalar_lea.vmem %s0, 2
  %v153 = vld [vmem:[%s152] sm:$0x3]
  %v156 = vunpack.c.l.s4 1983009808
  %v157 = vunpack.c.0.s8 %v156
  %v158 = vlaneseq
  %v159 = vshrl.u32 %v158, 7
  %v160 = vsub.s32 %v157, %v159
  %v161 = vrot.slane %v153, %v160
  %v162 = vcombine.low %v161, %v161
  %163 = vrot.lane.b32.xlu0 %v162, 28
  %v164 = vpop.permute.xlu0 %163
  %vm166 = vcmask 341220
  %167 = vst.msk [vmem:[#allocation2] sm:$0x30] %vm166, %v164
  %s168 = scalar_lea.vmem %s0, 18
  %v169 = vld [vmem:[%s168] sm:$0x3]
  %v171 = vcombine.low %v169, %v169
  %v173 = vunpack.c.l.s4 1983009808
  %v174 = vunpack.c.0.s8 %v173
  %v175 = vlaneseq
  %v176 = vshrl.u32 %v175, 7
  %v177 = vsub.s32 %v174, %v176
  %v178 = vrot.slane %v171, %v177
  %v179 = vcombine.low %v178, %v178
  %180 = vrot.lane.b32.xlu0 %v179, 28
  %v181 = vpop.permute.xlu0 %180
  %vm183 = vcmask 343270
  %184 = vst.msk [vmem:[#allocation2] sm:$0xc0] %vm183, %v181
  %v185 = vld [vmem:[%s48] sm:$0x3]
  %v188 = vunpack.c.l.s4 1983009808
  %v189 = vunpack.c.0.s8 %v188
  %v190 = vlaneseq
  %v191 = vshrl.u32 %v190, 7
  %v192 = vsub.s32 %v189, %v191
  %v193 = vrot.slane %v185, %v192
  %194 = vrot.lane.b32.xlu0 %v193, 42
  %v195 = vpop.permute.xlu0 %194
  %vm197 = vcmask 451920
  %198 = vst.msk [vmem:[#allocation2] sm:$0x3] %vm197, %v195
  %v199 = vld [vmem:[%s34] sm:$0x3]
  %v201 = vcombine.low %v199, %v199
  %v203 = vunpack.c.l.s4 1983009808
  %v204 = vunpack.c.0.s8 %v203
  %v205 = vlaneseq
  %v206 = vshrl.u32 %v205, 7
  %v207 = vsub.s32 %v204, %v206
  %v208 = vrot.slane %v201, %v207
  %209 = vrot.lane.b32.xlu0 %v208, 40
  %v210 = vpop.permute.xlu0 %209
  %vm212 = vcmask 453970
  %213 = vst.msk [vmem:[#allocation2] sm:$0xc] %vm212, %v210
  %v214 = vld [vmem:[%s168] sm:$0x3]
  %v217 = vunpack.c.l.s4 1983009808
  %v218 = vunpack.c.0.s8 %v217
  %v219 = vlaneseq
  %v220 = vshrl.u32 %v219, 7
  %v221 = vsub.s32 %v218, %v220
  %v222 = vrot.slane %v214, %v221
  %v223 = vcombine.low %v222, %v222
  %224 = vrot.lane.b32.xlu0 %v223, 42
  %v225 = vpop.permute.xlu0 %224
  %vm227 = vcmask 456020
  %228 = vst.msk [vmem:[#allocation2] sm:$0x30] %vm227, %v225
  %v229 = vld [vmem:[%s152] sm:$0x3]
  %v231 = vcombine.low %v229, %v229
  %v233 = vunpack.c.l.s4 1983009808
  %v234 = vunpack.c.0.s8 %v233
  %v235 = vlaneseq
  %v236 = vshrl.u32 %v235, 7
  %v237 = vsub.s32 %v234, %v236
  %v238 = vrot.slane %v231, %v237
  %v239 = vcombine.low %v238, %v238
  %240 = vrot.lane.b32.xlu0 %v239, 40
  %v241 = vpop.permute.xlu0 %240
  %vm243 = vcmask 458070
  %244 = vst.msk [vmem:[#allocation2] sm:$0xc0] %vm243, %v241
  %v245 = vld [vmem:[#allocation2] sm:$0xff]
  %vm246 = vcmask 130048
  %v248 = vsel %vm246, %v15, 0
  %250 = vmatprep.subr.bf16.mxu0 0
  %251 = vmatpush1.bf16.msra.mxu0 %v245
  %252 = vmatprep.subr.bf16.mxu0 0
  %253 = vmatpush1.bf16.msra.mxu0 0
  %254 = vmatprep.subr.bf16.mxu0 0
  %255 = vmatpush1.bf16.msra.mxu0 0
  %256 = vmatprep.subr.bf16.mxu0 0
  %257 = vmatpush1.bf16.msra.mxu0 0
  %258 = vmatprep.subr.bf16.mxu0 0
  %259 = vmatpush1.bf16.msra.mxu0 0
  %260 = vmatprep.subr.bf16.mxu0 0
  %261 = vmatpush1.bf16.msra.mxu0 0
  %262 = vmatprep.subr.bf16.mxu0 0
  %263 = vmatpush1.bf16.msra.mxu0 0
  %264 = vmatprep.subr.bf16.mxu0 0
  %265 = vmatpush1.bf16.msra.mxu0 0
  %266 = vmatprep.subr.bf16.mxu0 0
  %267 = vmatpush1.bf16.msra.mxu0 0
  %268 = vmatprep.subr.bf16.mxu0 0
  %269 = vmatpush1.bf16.msra.mxu0 0
  %270 = vmatprep.subr.bf16.mxu0 0
  %271 = vmatpush1.bf16.msra.mxu0 0
  %272 = vmatprep.subr.bf16.mxu0 0
  %273 = vmatpush1.bf16.msra.mxu0 0
  %274 = vmatprep.subr.bf16.mxu0 0
  %275 = vmatpush1.bf16.msra.mxu0 0
  %276 = vmatprep.subr.bf16.mxu0 0
  %277 = vmatpush1.bf16.msra.mxu0 0
  %278 = vmatprep.subr.bf16.mxu0 0
  %279 = vmatpush1.bf16.msra.mxu0 0
  %280 = vmatprep.subr.bf16.mxu0 0
  %281 = vmatpush1.bf16.msra.mxu0 0
  %282 = vmatprep.mubr.bf16.mxu0 0
  %283 = vmatmul.mubr.bf16.gmra.mrb[0].mxu0 %v248
  %v284 = vpop.f32.mrb[0].mxu0
  %v285 = vadd.f32 0.0, %v284
  %v286 = vpop.f32.mrb[0].mxu0
  %v287 = vpop.f32.mrb[0].mxu0
  %v288 = vpop.f32.mrb[0].mxu0
  %289 = vdwg.mxu0
  %291 = vrot.lane.b32.xlu0 %v285, 114
  %v292 = vpop.permute.xlu0 %291
  %v294 = vmax.f32 %v285, %v292
  %295 = vrot.lane.b32.xlu0 %v285, 100
  %v296 = vpop.permute.xlu0 %295
  %v298 = vmax.f32 %v294, %v296
  %299 = vrot.lane.b32.xlu0 %v285, 86
  %v300 = vpop.permute.xlu0 %299
  %v302 = vmax.f32 %v298, %v300
  %304 = vset.pattern.permute.xlu0 0
  %305 = vperm.xlu0 %304, %v16
  %v306 = vpop.permute.xlu0 %305
  %v308 = vadd.f32 %v302, %v306
  %v309 = vmax.f32 %v308, 0.0
  %v310 = vpack.c.bf16 %v309, %v309
  %vm311 = vcmask 109568
  %312 = vst.msk [vmem:[%s3] sm:$0xf] %vm311, %v310
  %v313 = vld [vmem:[%s152] sm:$0x3]
  %314 = vst.msk [vmem:[#allocation2] sm:$0x3] %vm18, %v313
  %v315 = vld [vmem:[%s168] sm:$0x3]
  %v317 = vcombine.low %v315, %v315
  %v319 = vunpack.c.l.s4 1983009808
  %v320 = vunpack.c.0.s8 %v319
  %v321 = vlaneseq
  %v322 = vshrl.u32 %v321, 7
  %v323 = vsub.s32 %v320, %v322
  %v324 = vrot.slane %v317, %v323
  %326 = vst.msk [vmem:[#allocation2] sm:$0xc] %vm32, %v324
  %s327 = scalar_lea.vmem %s0, 34
  %v328 = vld [vmem:[%s327] sm:$0x3]
  %v331 = vunpack.c.l.s4 1983009808
  %v332 = vunpack.c.0.s8 %v331
  %v333 = vlaneseq
  %v334 = vshrl.u32 %v333, 7
  %v335 = vsub.s32 %v332, %v334
  %v336 = vrot.slane %v328, %v335
  %v337 = vcombine.low %v336, %v336
  %339 = vst.msk [vmem:[#allocation2] sm:$0x30] %vm46, %v337
  %s340 = scalar_lea.vmem %s0, 50
  %v341 = vld [vmem:[%s340] sm:$0x3]
  %v343 = vcombine.low %v341, %v341
  %v345 = vunpack.c.l.s4 1983009808
  %v346 = vunpack.c.0.s8 %v345
  %v347 = vlaneseq
  %v348 = vshrl.u32 %v347, 7
  %v349 = vsub.s32 %v346, %v348
  %v350 = vrot.slane %v343, %v349
  %v351 = vcombine.low %v350, %v350
  %353 = vst.msk [vmem:[#allocation2] sm:$0xc0] %vm61, %v351
  %v354 = vld [vmem:[%s168] sm:$0x3]
  %v357 = vunpack.c.l.s4 1983009808
  %v358 = vunpack.c.0.s8 %v357
  %v359 = vlaneseq
  %v360 = vshrl.u32 %v359, 7
  %v361 = vsub.s32 %v358, %v360
  %v362 = vrot.slane %v354, %v361
  %363 = vrot.lane.b32.xlu0 %v362, 14
  %v364 = vpop.permute.xlu0 %363
  %366 = vst.msk [vmem:[#allocation2] sm:$0x3] %vm75, %v364
  %v367 = vld [vmem:[%s152] sm:$0x3]
  %v369 = vcombine.low %v367, %v367
  %v371 = vunpack.c.l.s4 1983009808
  %v372 = vunpack.c.0.s8 %v371
  %v373 = vlaneseq
  %v374 = vshrl.u32 %v373, 7
  %v375 = vsub.s32 %v372, %v374
  %v376 = vrot.slane %v369, %v375
  %377 = vrot.lane.b32.xlu0 %v376, 12
  %v378 = vpop.permute.xlu0 %377
  %380 = vst.msk [vmem:[#allocation2] sm:$0xc] %vm90, %v378
  %v381 = vld [vmem:[%s340] sm:$0x3]
  %v384 = vunpack.c.l.s4 1983009808
  %v385 = vunpack.c.0.s8 %v384
  %v386 = vlaneseq
  %v387 = vshrl.u32 %v386, 7
  %v388 = vsub.s32 %v385, %v387
  %v389 = vrot.slane %v381, %v388
  %v390 = vcombine.low %v389, %v389
  %391 = vrot.lane.b32.xlu0 %v390, 14
  %v392 = vpop.permute.xlu0 %391
  %394 = vst.msk [vmem:[#allocation2] sm:$0x30] %vm105, %v392
  %v395 = vld [vmem:[%s327] sm:$0x3]
  %v397 = vcombine.low %v395, %v395
  %v399 = vunpack.c.l.s4 1983009808
  %v400 = vunpack.c.0.s8 %v399
  %v401 = vlaneseq
  %v402 = vshrl.u32 %v401, 7
  %v403 = vsub.s32 %v400, %v402
  %v404 = vrot.slane %v397, %v403
  %v405 = vcombine.low %v404, %v404
  %406 = vrot.lane.b32.xlu0 %v405, 12
  %v407 = vpop.permute.xlu0 %406
  %409 = vst.msk [vmem:[#allocation2] sm:$0xc0] %vm121, %v407
  %v410 = vld [vmem:[%s327] sm:$0x3]
  %v413 = vunpack.c.l.s4 1983009808
  %v414 = vunpack.c.0.s8 %v413
  %v415 = vlaneseq
  %v416 = vshrl.u32 %v415, 7
  %v417 = vsub.s32 %v414, %v416
  %v418 = vrot.slane %v410, %v417
  %419 = vrot.lane.b32.xlu0 %v418, 28
  %v420 = vpop.permute.xlu0 %419
  %422 = vst.msk [vmem:[#allocation2] sm:$0x3] %vm135, %v420
  %v423 = vld [vmem:[%s340] sm:$0x3]
  %v425 = vcombine.low %v423, %v423
  %v427 = vunpack.c.l.s4 1983009808
  %v428 = vunpack.c.0.s8 %v427
  %v429 = vlaneseq
  %v430 = vshrl.u32 %v429, 7
  %v431 = vsub.s32 %v428, %v430
  %v432 = vrot.slane %v425, %v431
  %433 = vrot.lane.b32.xlu0 %v432, 28
  %v434 = vpop.permute.xlu0 %433
  %436 = vst.msk [vmem:[#allocation2] sm:$0xc] %vm150, %v434
  %s437 = scalar_lea.vmem %s0, 4
  %v438 = vld [vmem:[%s437] sm:$0x3]
  %v441 = vunpack.c.l.s4 1983009808
  %v442 = vunpack.c.0.s8 %v441
  %v443 = vlaneseq
  %v444 = vshrl.u32 %v443, 7
  %v445 = vsub.s32 %v442, %v444
  %v446 = vrot.slane %v438, %v445
  %v447 = vcombine.low %v446, %v446
  %448 = vrot.lane.b32.xlu0 %v447, 28
  %v449 = vpop.permute.xlu0 %448
  %451 = vst.msk [vmem:[#allocation2] sm:$0x30] %vm166, %v449
  %s452 = scalar_lea.vmem %s0, 20
  %v453 = vld [vmem:[%s452] sm:$0x3]
  %v455 = vcombine.low %v453, %v453
  %v457 = vunpack.c.l.s4 1983009808
  %v458 = vunpack.c.0.s8 %v457
  %v459 = vlaneseq
  %v460 = vshrl.u32 %v459, 7
  %v461 = vsub.s32 %v458, %v460
  %v462 = vrot.slane %v455, %v461
  %v463 = vcombine.low %v462, %v462
  %464 = vrot.lane.b32.xlu0 %v463, 28
  %v465 = vpop.permute.xlu0 %464
  %467 = vst.msk [vmem:[#allocation2] sm:$0xc0] %vm183, %v465
  %v468 = vld [vmem:[%s340] sm:$0x3]
  %v471 = vunpack.c.l.s4 1983009808
  %v472 = vunpack.c.0.s8 %v471
  %v473 = vlaneseq
  %v474 = vshrl.u32 %v473, 7
  %v475 = vsub.s32 %v472, %v474
  %v476 = vrot.slane %v468, %v475
  %477 = vrot.lane.b32.xlu0 %v476, 42
  %v478 = vpop.permute.xlu0 %477
  %480 = vst.msk [vmem:[#allocation2] sm:$0x3] %vm197, %v478
  %v481 = vld [vmem:[%s327] sm:$0x3]
  %v483 = vcombine.low %v481, %v481
  %v485 = vunpack.c.l.s4 1983009808
  %v486 = vunpack.c.0.s8 %v485
  %v487 = vlaneseq
  %v488 = vshrl.u32 %v487, 7
  %v489 = vsub.s32 %v486, %v488
  %v490 = vrot.slane %v483, %v489
  %491 = vrot.lane.b32.xlu0 %v490, 40
  %v492 = vpop.permute.xlu0 %491
  %494 = vst.msk [vmem:[#allocation2] sm:$0xc] %vm212, %v492
  %v495 = vld [vmem:[%s452] sm:$0x3]
  %v498 = vunpack.c.l.s4 1983009808
  %v499 = vunpack.c.0.s8 %v498
  %v500 = vlaneseq
  %v501 = vshrl.u32 %v500, 7
  %v502 = vsub.s32 %v499, %v501
  %v503 = vrot.slane %v495, %v502
  %v504 = vcombine.low %v503, %v503
  %505 = vrot.lane.b32.xlu0 %v504, 42
  %v506 = vpop.permute.xlu0 %505
  %508 = vst.msk [vmem:[#allocation2] sm:$0x30] %vm227, %v506
  %v509 = vld [vmem:[%s437] sm:$0x3]
  %v511 = vcombine.low %v509, %v509
  %v513 = vunpack.c.l.s4 1983009808
  %v514 = vunpack.c.0.s8 %v513
  %v515 = vlaneseq
  %v516 = vshrl.u32 %v515, 7
  %v517 = vsub.s32 %v514, %v516
  %v518 = vrot.slane %v511, %v517
  %v519 = vcombine.low %v518, %v518
  %520 = vrot.lane.b32.xlu0 %v519, 40
  %v521 = vpop.permute.xlu0 %520
  %523 = vst.msk [vmem:[#allocation2] sm:$0xc0] %vm243, %v521
  %v524 = vld [vmem:[#allocation2] sm:$0xff]
  %525 = vmatprep.subr.bf16.mxu0 0
  %526 = vmatpush1.bf16.msra.mxu0 %v524
  %527 = vmatprep.subr.bf16.mxu0 0
  %528 = vmatpush1.bf16.msra.mxu0 0
  %529 = vmatprep.subr.bf16.mxu0 0
  %530 = vmatpush1.bf16.msra.mxu0 0
  %531 = vmatprep.subr.bf16.mxu0 0
  %532 = vmatpush1.bf16.msra.mxu0 0
  %533 = vmatprep.subr.bf16.mxu0 0
  %534 = vmatpush1.bf16.msra.mxu0 0
  %535 = vmatprep.subr.bf16.mxu0 0
  %536 = vmatpush1.bf16.msra.mxu0 0
  %537 = vmatprep.subr.bf16.mxu0 0
  %538 = vmatpush1.bf16.msra.mxu0 0
  %539 = vmatprep.subr.bf16.mxu0 0
  %540 = vmatpush1.bf16.msra.mxu0 0
  %541 = vmatprep.subr.bf16.mxu0 0
  %542 = vmatpush1.bf16.msra.mxu0 0
  %543 = vmatprep.subr.bf16.mxu0 0
  %544 = vmatpush1.bf16.msra.mxu0 0
  %545 = vmatprep.subr.bf16.mxu0 0
  %546 = vmatpush1.bf16.msra.mxu0 0
  %547 = vmatprep.subr.bf16.mxu0 0
  %548 = vmatpush1.bf16.msra.mxu0 0
  %549 = vmatprep.subr.bf16.mxu0 0
  %550 = vmatpush1.bf16.msra.mxu0 0
  %551 = vmatprep.subr.bf16.mxu0 0
  %552 = vmatpush1.bf16.msra.mxu0 0
  %553 = vmatprep.subr.bf16.mxu0 0
  %554 = vmatpush1.bf16.msra.mxu0 0
  %555 = vmatprep.subr.bf16.mxu0 0
  %556 = vmatpush1.bf16.msra.mxu0 0
  %557 = vmatprep.mubr.bf16.mxu0 0
  %558 = vmatmul.mubr.bf16.gmra.mrb[0].mxu0 %v248
  %v559 = vpop.f32.mrb[0].mxu0
  %v560 = vadd.f32 0.0, %v559
  %v561 = vpop.f32.mrb[0].mxu0
  %v562 = vpop.f32.mrb[0].mxu0
  %v563 = vpop.f32.mrb[0].mxu0
  %564 = vdwg.mxu0
  %566 = vrot.lane.b32.xlu0 %v560, 114
  %v567 = vpop.permute.xlu0 %566
  %v569 = vmax.f32 %v560, %v567
  %570 = vrot.lane.b32.xlu0 %v560, 100
  %v571 = vpop.permute.xlu0 %570
  %v573 = vmax.f32 %v569, %v571
  %574 = vrot.lane.b32.xlu0 %v560, 86
  %v575 = vpop.permute.xlu0 %574
  %v577 = vmax.f32 %v573, %v575
  %v578 = vadd.f32 %v577, %v306
  %v579 = vmax.f32 %v578, 0.0
  %v580 = vpack.c.bf16 %v579, %v579
  %v582 = vunpack.c.l.b16 %v580
  %v583 = vpack.c.b16 %v582, %v582
  %584 = vrot.lane.b32.xlu0 %v583, 14
  %v585 = vpop.permute.xlu0 %584
  %vm587 = vcmask 224368
  %588 = vst.msk [vmem:[%s3] sm:$0xf] %vm587, %v585
  %v589 = vld [vmem:[%s437] sm:$0x3]
  %590 = vst.msk [vmem:[#allocation2] sm:$0x3] %vm18, %v589
  %v591 = vld [vmem:[%s452] sm:$0x3]
  %v593 = vcombine.low %v591, %v591
  %v595 = vunpack.c.l.s4 1983009808
  %v596 = vunpack.c.0.s8 %v595
  %v597 = vlaneseq
  %v598 = vshrl.u32 %v597, 7
  %v599 = vsub.s32 %v596, %v598
  %v600 = vrot.slane %v593, %v599
  %602 = vst.msk [vmem:[#allocation2] sm:$0xc] %vm32, %v600
  %s603 = scalar_lea.vmem %s0, 36
  %v604 = vld [vmem:[%s603] sm:$0x3]
  %v607 = vunpack.c.l.s4 1983009808
  %v608 = vunpack.c.0.s8 %v607
  %v609 = vlaneseq
  %v610 = vshrl.u32 %v609, 7
  %v611 = vsub.s32 %v608, %v610
  %v612 = vrot.slane %v604, %v611
  %v613 = vcombine.low %v612, %v612
  %615 = vst.msk [vmem:[#allocation2] sm:$0x30] %vm46, %v613
  %s616 = scalar_lea.vmem %s0, 52
  %v617 = vld [vmem:[%s616] sm:$0x3]
  %v619 = vcombine.low %v617, %v617
  %v621 = vunpack.c.l.s4 1983009808
  %v622 = vunpack.c.0.s8 %v621
  %v623 = vlaneseq
  %v624 = vshrl.u32 %v623, 7
  %v625 = vsub.s32 %v622, %v624
  %v626 = vrot.slane %v619, %v625
  %v627 = vcombine.low %v626, %v626
  %629 = vst.msk [vmem:[#allocation2] sm:$0xc0] %vm61, %v627
  %v630 = vld [vmem:[%s452] sm:$0x3]
  %v633 = vunpack.c.l.s4 1983009808
  %v634 = vunpack.c.0.s8 %v633
  %v635 = vlaneseq
  %v636 = vshrl.u32 %v635, 7
  %v637 = vsub.s32 %v634, %v636
  %v638 = vrot.slane %v630, %v637
  %639 = vrot.lane.b32.xlu0 %v638, 14
  %v640 = vpop.permute.xlu0 %639
  %642 = vst.msk [vmem:[#allocation2] sm:$0x3] %vm75, %v640
  %v643 = vld [vmem:[%s437] sm:$0x3]
  %v645 = vcombine.low %v643, %v643
  %v647 = vunpack.c.l.s4 1983009808
  %v648 = vunpack.c.0.s8 %v647
  %v649 = vlaneseq
  %v650 = vshrl.u32 %v649, 7
  %v651 = vsub.s32 %v648, %v650
  %v652 = vrot.slane %v645, %v651
  %653 = vrot.lane.b32.xlu0 %v652, 12
  %v654 = vpop.permute.xlu0 %653
  %656 = vst.msk [vmem:[#allocation2] sm:$0xc] %vm90, %v654
  %v657 = vld [vmem:[%s616] sm:$0x3]
  %v660 = vunpack.c.l.s4 1983009808
  %v661 = vunpack.c.0.s8 %v660
  %v662 = vlaneseq
  %v663 = vshrl.u32 %v662, 7
  %v664 = vsub.s32 %v661, %v663
  %v665 = vrot.slane %v657, %v664
  %v666 = vcombine.low %v665, %v665
  %667 = vrot.lane.b32.xlu0 %v666, 14
  %v668 = vpop.permute.xlu0 %667
  %670 = vst.msk [vmem:[#allocation2] sm:$0x30] %vm105, %v668
  %v671 = vld [vmem:[%s603] sm:$0x3]
  %v673 = vcombine.low %v671, %v671
  %v675 = vunpack.c.l.s4 1983009808
  %v676 = vunpack.c.0.s8 %v675
  %v677 = vlaneseq
  %v678 = vshrl.u32 %v677, 7
  %v679 = vsub.s32 %v676, %v678
  %v680 = vrot.slane %v673, %v679
  %v681 = vcombine.low %v680, %v680
  %682 = vrot.lane.b32.xlu0 %v681, 12
  %v683 = vpop.permute.xlu0 %682
  %685 = vst.msk [vmem:[#allocation2] sm:$0xc0] %vm121, %v683
  %v686 = vld [vmem:[%s603] sm:$0x3]
  %v689 = vunpack.c.l.s4 1983009808
  %v690 = vunpack.c.0.s8 %v689
  %v691 = vlaneseq
  %v692 = vshrl.u32 %v691, 7
  %v693 = vsub.s32 %v690, %v692
  %v694 = vrot.slane %v686, %v693
  %695 = vrot.lane.b32.xlu0 %v694, 28
  %v696 = vpop.permute.xlu0 %695
  %698 = vst.msk [vmem:[#allocation2] sm:$0x3] %vm135, %v696
  %v699 = vld [vmem:[%s616] sm:$0x3]
  %v701 = vcombine.low %v699, %v699
  %v703 = vunpack.c.l.s4 1983009808
  %v704 = vunpack.c.0.s8 %v703
  %v705 = vlaneseq
  %v706 = vshrl.u32 %v705, 7
  %v707 = vsub.s32 %v704, %v706
  %v708 = vrot.slane %v701, %v707
  %709 = vrot.lane.b32.xlu0 %v708, 28
  %v710 = vpop.permute.xlu0 %709
  %712 = vst.msk [vmem:[#allocation2] sm:$0xc] %vm150, %v710
  %s713 = scalar_lea.vmem %s0, 6
  %v714 = vld [vmem:[%s713] sm:$0x3]
  %v717 = vunpack.c.l.s4 1983009808
  %v718 = vunpack.c.0.s8 %v717
  %v719 = vlaneseq
  %v720 = vshrl.u32 %v719, 7
  %v721 = vsub.s32 %v718, %v720
  %v722 = vrot.slane %v714, %v721
  %v723 = vcombine.low %v722, %v722
  %724 = vrot.lane.b32.xlu0 %v723, 28
  %v725 = vpop.permute.xlu0 %724
  %727 = vst.msk [vmem:[#allocation2] sm:$0x30] %vm166, %v725
  %s728 = scalar_lea.vmem %s0, 22
  %v729 = vld [vmem:[%s728] sm:$0x3]
  %v731 = vcombine.low %v729, %v729
  %v733 = vunpack.c.l.s4 1983009808
  %v734 = vunpack.c.0.s8 %v733
  %v735 = vlaneseq
  %v736 = vshrl.u32 %v735, 7
  %v737 = vsub.s32 %v734, %v736
  %v738 = vrot.slane %v731, %v737
  %v739 = vcombine.low %v738, %v738
  %740 = vrot.lane.b32.xlu0 %v739, 28
  %v741 = vpop.permute.xlu0 %740
  %743 = vst.msk [vmem:[#allocation2] sm:$0xc0] %vm183, %v741
  %v744 = vld [vmem:[%s616] sm:$0x3]
  %v747 = vunpack.c.l.s4 1983009808
  %v748 = vunpack.c.0.s8 %v747
  %v749 = vlaneseq
  %v750 = vshrl.u32 %v749, 7
  %v751 = vsub.s32 %v748, %v750
  %v752 = vrot.slane %v744, %v751
  %753 = vrot.lane.b32.xlu0 %v752, 42
  %v754 = vpop.permute.xlu0 %753
  %756 = vst.msk [vmem:[#allocation2] sm:$0x3] %vm197, %v754
  %v757 = vld [vmem:[%s603] sm:$0x3]
  %v759 = vcombine.low %v757, %v757
  %v761 = vunpack.c.l.s4 1983009808
  %v762 = vunpack.c.0.s8 %v761
  %v763 = vlaneseq
  %v764 = vshrl.u32 %v763, 7
  %v765 = vsub.s32 %v762, %v764
  %v766 = vrot.slane %v759, %v765
  %767 = vrot.lane.b32.xlu0 %v766, 40
  %v768 = vpop.permute.xlu0 %767
  %770 = vst.msk [vmem:[#allocation2] sm:$0xc] %vm212, %v768
  %v771 = vld [vmem:[%s728] sm:$0x3]
  %v774 = vunpack.c.l.s4 1983009808
  %v775 = vunpack.c.0.s8 %v774
  %v776 = vlaneseq
  %v777 = vshrl.u32 %v776, 7
  %v778 = vsub.s32 %v775, %v777
  %v779 = vrot.slane %v771, %v778
  %v780 = vcombine.low %v779, %v779
  %781 = vrot.lane.b32.xlu0 %v780, 42
  %v782 = vpop.permute.xlu0 %781
  %784 = vst.msk [vmem:[#allocation2] sm:$0x30] %vm227, %v782
  %v785 = vld [vmem:[%s713] sm:$0x3]
  %v787 = vcombine.low %v785, %v785
  %v789 = vunpack.c.l.s4 1983009808
  %v790 = vunpack.c.0.s8 %v789
  %v791 = vlaneseq
  %v792 = vshrl.u32 %v791, 7
  %v793 = vsub.s32 %v790, %v792
  %v794 = vrot.slane %v787, %v793
  %v795 = vcombine.low %v794, %v794
  %796 = vrot.lane.b32.xlu0 %v795, 40
  %v797 = vpop.permute.xlu0 %796
  %799 = vst.msk [vmem:[#allocation2] sm:$0xc0] %vm243, %v797
  %v800 = vld [vmem:[#allocation2] sm:$0xff]
  %801 = vmatprep.subr.bf16.mxu0 0
  %802 = vmatpush1.bf16.msra.mxu0 %v800
  %803 = vmatprep.subr.bf16.mxu0 0
  %804 = vmatpush1.bf16.msra.mxu0 0
  %805 = vmatprep.subr.bf16.mxu0 0
  %806 = vmatpush1.bf16.msra.mxu0 0
  %807 = vmatprep.subr.bf16.mxu0 0
  %808 = vmatpush1.bf16.msra.mxu0 0
  %809 = vmatprep.subr.bf16.mxu0 0
  %810 = vmatpush1.bf16.msra.mxu0 0
  %811 = vmatprep.subr.bf16.mxu0 0
  %812 = vmatpush1.bf16.msra.mxu0 0
  %813 = vmatprep.subr.bf16.mxu0 0
  %814 = vmatpush1.bf16.msra.mxu0 0
  %815 = vmatprep.subr.bf16.mxu0 0
  %816 = vmatpush1.bf16.msra.mxu0 0
  %817 = vmatprep.subr.bf16.mxu0 0
  %818 = vmatpush1.bf16.msra.mxu0 0
  %819 = vmatprep.subr.bf16.mxu0 0
  %820 = vmatpush1.bf16.msra.mxu0 0
  %821 = vmatprep.subr.bf16.mxu0 0
  %822 = vmatpush1.bf16.msra.mxu0 0
  %823 = vmatprep.subr.bf16.mxu0 0
  %824 = vmatpush1.bf16.msra.mxu0 0
  %825 = vmatprep.subr.bf16.mxu0 0
  %826 = vmatpush1.bf16.msra.mxu0 0
  %827 = vmatprep.subr.bf16.mxu0 0
  %828 = vmatpush1.bf16.msra.mxu0 0
  %829 = vmatprep.subr.bf16.mxu0 0
  %830 = vmatpush1.bf16.msra.mxu0 0
  %831 = vmatprep.subr.bf16.mxu0 0
  %832 = vmatpush1.bf16.msra.mxu0 0
  %833 = vmatprep.mubr.bf16.mxu0 0
  %834 = vmatmul.mubr.bf16.gmra.mrb[0].mxu0 %v248
  %v835 = vpop.f32.mrb[0].mxu0
  %v836 = vadd.f32 0.0, %v835
  %v837 = vpop.f32.mrb[0].mxu0
  %v838 = vpop.f32.mrb[0].mxu0
  %v839 = vpop.f32.mrb[0].mxu0
  %840 = vdwg.mxu0
  %842 = vrot.lane.b32.xlu0 %v836, 114
  %v843 = vpop.permute.xlu0 %842
  %v845 = vmax.f32 %v836, %v843
  %846 = vrot.lane.b32.xlu0 %v836, 100
  %v847 = vpop.permute.xlu0 %846
  %v849 = vmax.f32 %v845, %v847
  %850 = vrot.lane.b32.xlu0 %v836, 86
  %v851 = vpop.permute.xlu0 %850
  %v853 = vmax.f32 %v849, %v851
  %v854 = vadd.f32 %v853, %v306
  %v855 = vmax.f32 %v854, 0.0
  %v856 = vpack.c.bf16 %v855, %v855
  %v858 = vunpack.c.l.b16 %v856
  %v859 = vpack.c.b16 %v858, %v858
  %860 = vrot.lane.b32.xlu0 %v859, 28
  %v861 = vpop.permute.xlu0 %860
  %vm863 = vcmask 339168
  %864 = vst.msk [vmem:[%s3] sm:$0xf] %vm863, %v861
  %v865 = vld [vmem:[%s713] sm:$0x3]
  %866 = vst.msk [vmem:[#allocation2] sm:$0x3] %vm18, %v865
  %v867 = vld [vmem:[%s728] sm:$0x3]
  %v869 = vcombine.low %v867, %v867
  %v871 = vunpack.c.l.s4 1983009808
  %v872 = vunpack.c.0.s8 %v871
  %v873 = vlaneseq
  %v874 = vshrl.u32 %v873, 7
  %v875 = vsub.s32 %v872, %v874
  %v876 = vrot.slane %v869, %v875
  %878 = vst.msk [vmem:[#allocation2] sm:$0xc] %vm32, %v876
  %s879 = scalar_lea.vmem %s0, 38
  %v880 = vld [vmem:[%s879] sm:$0x3]
  %v883 = vunpack.c.l.s4 1983009808
  %v884 = vunpack.c.0.s8 %v883
  %v885 = vlaneseq
  %v886 = vshrl.u32 %v885, 7
  %v887 = vsub.s32 %v884, %v886
  %v888 = vrot.slane %v880, %v887
  %v889 = vcombine.low %v888, %v888
  %891 = vst.msk [vmem:[#allocation2] sm:$0x30] %vm46, %v889
  %s892 = scalar_lea.vmem %s0, 54
  %v893 = vld [vmem:[%s892] sm:$0x3]
  %v895 = vcombine.low %v893, %v893
  %v897 = vunpack.c.l.s4 1983009808
  %v898 = vunpack.c.0.s8 %v897
  %v899 = vlaneseq
  %v900 = vshrl.u32 %v899, 7
  %v901 = vsub.s32 %v898, %v900
  %v902 = vrot.slane %v895, %v901
  %v903 = vcombine.low %v902, %v902
  %905 = vst.msk [vmem:[#allocation2] sm:$0xc0] %vm61, %v903
  %v906 = vld [vmem:[%s728] sm:$0x3]
  %v909 = vunpack.c.l.s4 1983009808
  %v910 = vunpack.c.0.s8 %v909
  %v911 = vlaneseq
  %v912 = vshrl.u32 %v911, 7
  %v913 = vsub.s32 %v910, %v912
  %v914 = vrot.slane %v906, %v913
  %915 = vrot.lane.b32.xlu0 %v914, 14
  %v916 = vpop.permute.xlu0 %915
  %918 = vst.msk [vmem:[#allocation2] sm:$0x3] %vm75, %v916
  %v919 = vld [vmem:[%s713] sm:$0x3]
  %v921 = vcombine.low %v919, %v919
  %v923 = vunpack.c.l.s4 1983009808
  %v924 = vunpack.c.0.s8 %v923
  %v925 = vlaneseq
  %v926 = vshrl.u32 %v925, 7
  %v927 = vsub.s32 %v924, %v926
  %v928 = vrot.slane %v921, %v927
  %929 = vrot.lane.b32.xlu0 %v928, 12
  %v930 = vpop.permute.xlu0 %929
  %932 = vst.msk [vmem:[#allocation2] sm:$0xc] %vm90, %v930
  %v933 = vld [vmem:[%s892] sm:$0x3]
  %v936 = vunpack.c.l.s4 1983009808
  %v937 = vunpack.c.0.s8 %v936
  %v938 = vlaneseq
  %v939 = vshrl.u32 %v938, 7
  %v940 = vsub.s32 %v937, %v939
  %v941 = vrot.slane %v933, %v940
  %v942 = vcombine.low %v941, %v941
  %943 = vrot.lane.b32.xlu0 %v942, 14
  %v944 = vpop.permute.xlu0 %943
  %946 = vst.msk [vmem:[#allocation2] sm:$0x30] %vm105, %v944
  %v947 = vld [vmem:[%s879] sm:$0x3]
  %v949 = vcombine.low %v947, %v947
  %v951 = vunpack.c.l.s4 1983009808
  %v952 = vunpack.c.0.s8 %v951
  %v953 = vlaneseq
  %v954 = vshrl.u32 %v953, 7
  %v955 = vsub.s32 %v952, %v954
  %v956 = vrot.slane %v949, %v955
  %v957 = vcombine.low %v956, %v956
  %958 = vrot.lane.b32.xlu0 %v957, 12
  %v959 = vpop.permute.xlu0 %958
  %961 = vst.msk [vmem:[#allocation2] sm:$0xc0] %vm121, %v959
  %v962 = vld [vmem:[%s879] sm:$0x3]
  %v965 = vunpack.c.l.s4 1983009808
  %v966 = vunpack.c.0.s8 %v965
  %v967 = vlaneseq
  %v968 = vshrl.u32 %v967, 7
  %v969 = vsub.s32 %v966, %v968
  %v970 = vrot.slane %v962, %v969
  %971 = vrot.lane.b32.xlu0 %v970, 28
  %v972 = vpop.permute.xlu0 %971
  %974 = vst.msk [vmem:[#allocation2] sm:$0x3] %vm135, %v972
  %v975 = vld [vmem:[%s892] sm:$0x3]
  %v977 = vcombine.low %v975, %v975
  %v979 = vunpack.c.l.s4 1983009808
  %v980 = vunpack.c.0.s8 %v979
  %v981 = vlaneseq
  %v982 = vshrl.u32 %v981, 7
  %v983 = vsub.s32 %v980, %v982
  %v984 = vrot.slane %v977, %v983
  %985 = vrot.lane.b32.xlu0 %v984, 28
  %v986 = vpop.permute.xlu0 %985
  %988 = vst.msk [vmem:[#allocation2] sm:$0xc] %vm150, %v986
  %s989 = scalar_lea.vmem %s0, 8
  %v990 = vld [vmem:[%s989] sm:$0x3]
  %v993 = vunpack.c.l.s4 1983009808
  %v994 = vunpack.c.0.s8 %v993
  %v995 = vlaneseq
  %v996 = vshrl.u32 %v995, 7
  %v997 = vsub.s32 %v994, %v996
  %v998 = vrot.slane %v990, %v997
  %v999 = vcombine.low %v998, %v998
  %1000 = vrot.lane.b32.xlu0 %v999, 28
  %v1001 = vpop.permute.xlu0 %1000
  %1003 = vst.msk [vmem:[#allocation2] sm:$0x30] %vm166, %v1001
  %s1004 = scalar_lea.vmem %s0, 24
  %v1005 = vld [vmem:[%s1004] sm:$0x3]
  %v1007 = vcombine.low %v1005, %v1005
  %v1009 = vunpack.c.l.s4 1983009808
  %v1010 = vunpack.c.0.s8 %v1009
  %v1011 = vlaneseq
  %v1012 = vshrl.u32 %v1011, 7
  %v1013 = vsub.s32 %v1010, %v1012
  %v1014 = vrot.slane %v1007, %v1013
  %v1015 = vcombine.low %v1014, %v1014
  %1016 = vrot.lane.b32.xlu0 %v1015, 28
  %v1017 = vpop.permute.xlu0 %1016
  %1019 = vst.msk [vmem:[#allocation2] sm:$0xc0] %vm183, %v1017
  %v1020 = vld [vmem:[%s892] sm:$0x3]
  %v1023 = vunpack.c.l.s4 1983009808
  %v1024 = vunpack.c.0.s8 %v1023
  %v1025 = vlaneseq
  %v1026 = vshrl.u32 %v1025, 7
  %v1027 = vsub.s32 %v1024, %v1026
  %v1028 = vrot.slane %v1020, %v1027
  %1029 = vrot.lane.b32.xlu0 %v1028, 42
  %v1030 = vpop.permute.xlu0 %1029
  %1032 = vst.msk [vmem:[#allocation2] sm:$0x3] %vm197, %v1030
  %v1033 = vld [vmem:[%s879] sm:$0x3]
  %v1035 = vcombine.low %v1033, %v1033
  %v1037 = vunpack.c.l.s4 1983009808
  %v1038 = vunpack.c.0.s8 %v1037
  %v1039 = vlaneseq
  %v1040 = vshrl.u32 %v1039, 7
  %v1041 = vsub.s32 %v1038, %v1040
  %v1042 = vrot.slane %v1035, %v1041
  %1043 = vrot.lane.b32.xlu0 %v1042, 40
  %v1044 = vpop.permute.xlu0 %1043
  %1046 = vst.msk [vmem:[#allocation2] sm:$0xc] %vm212, %v1044
  %v1047 = vld [vmem:[%s1004] sm:$0x3]
  %v1050 = vunpack.c.l.s4 1983009808
  %v1051 = vunpack.c.0.s8 %v1050
  %v1052 = vlaneseq
  %v1053 = vshrl.u32 %v1052, 7
  %v1054 = vsub.s32 %v1051, %v1053
  %v1055 = vrot.slane %v1047, %v1054
  %v1056 = vcombine.low %v1055, %v1055
  %1057 = vrot.lane.b32.xlu0 %v1056, 42
  %v1058 = vpop.permute.xlu0 %1057
  %1060 = vst.msk [vmem:[#allocation2] sm:$0x30] %vm227, %v1058
  %v1061 = vld [vmem:[%s989] sm:$0x3]
  %v1063 = vcombine.low %v1061, %v1061
  %v1065 = vunpack.c.l.s4 1983009808
  %v1066 = vunpack.c.0.s8 %v1065
  %v1067 = vlaneseq
  %v1068 = vshrl.u32 %v1067, 7
  %v1069 = vsub.s32 %v1066, %v1068
  %v1070 = vrot.slane %v1063, %v1069
  %v1071 = vcombine.low %v1070, %v1070
  %1072 = vrot.lane.b32.xlu0 %v1071, 40
  %v1073 = vpop.permute.xlu0 %1072
  %1075 = vst.msk [vmem:[#allocation2] sm:$0xc0] %vm243, %v1073
  %v1076 = vld [vmem:[#allocation2] sm:$0xff]
  %1077 = vmatprep.subr.bf16.mxu0 0
  %1078 = vmatpush1.bf16.msra.mxu0 %v1076
  %1079 = vmatprep.subr.bf16.mxu0 0
  %1080 = vmatpush1.bf16.msra.mxu0 0
  %1081 = vmatprep.subr.bf16.mxu0 0
  %1082 = vmatpush1.bf16.msra.mxu0 0
  %1083 = vmatprep.subr.bf16.mxu0 0
  %1084 = vmatpush1.bf16.msra.mxu0 0
  %1085 = vmatprep.subr.bf16.mxu0 0
  %1086 = vmatpush1.bf16.msra.mxu0 0
  %1087 = vmatprep.subr.bf16.mxu0 0
  %1088 = vmatpush1.bf16.msra.mxu0 0
  %1089 = vmatprep.subr.bf16.mxu0 0
  %1090 = vmatpush1.bf16.msra.mxu0 0
  %1091 = vmatprep.subr.bf16.mxu0 0
  %1092 = vmatpush1.bf16.msra.mxu0 0
  %1093 = vmatprep.subr.bf16.mxu0 0
  %1094 = vmatpush1.bf16.msra.mxu0 0
  %1095 = vmatprep.subr.bf16.mxu0 0
  %1096 = vmatpush1.bf16.msra.mxu0 0
  %1097 = vmatprep.subr.bf16.mxu0 0
  %1098 = vmatpush1.bf16.msra.mxu0 0
  %1099 = vmatprep.subr.bf16.mxu0 0
  %1100 = vmatpush1.bf16.msra.mxu0 0
  %1101 = vmatprep.subr.bf16.mxu0 0
  %1102 = vmatpush1.bf16.msra.mxu0 0
  %1103 = vmatprep.subr.bf16.mxu0 0
  %1104 = vmatpush1.bf16.msra.mxu0 0
  %1105 = vmatprep.subr.bf16.mxu0 0
  %1106 = vmatpush1.bf16.msra.mxu0 0
  %1107 = vmatprep.subr.bf16.mxu0 0
  %1108 = vmatpush1.bf16.msra.mxu0 0
  %1109 = vmatprep.mubr.bf16.mxu0 0
  %1110 = vmatmul.mubr.bf16.gmra.mrb[0].mxu0 %v248
  %v1111 = vpop.f32.mrb[0].mxu0
  %v1112 = vadd.f32 0.0, %v1111
  %v1113 = vpop.f32.mrb[0].mxu0
  %v1114 = vpop.f32.mrb[0].mxu0
  %v1115 = vpop.f32.mrb[0].mxu0
  %1116 = vdwg.mxu0
  %1118 = vrot.lane.b32.xlu0 %v1112, 114
  %v1119 = vpop.permute.xlu0 %1118
  %v1121 = vmax.f32 %v1112, %v1119
  %1122 = vrot.lane.b32.xlu0 %v1112, 100
  %v1123 = vpop.permute.xlu0 %1122
  %v1125 = vmax.f32 %v1121, %v1123
  %1126 = vrot.lane.b32.xlu0 %v1112, 86
  %v1127 = vpop.permute.xlu0 %1126
  %v1129 = vmax.f32 %v1125, %v1127
  %v1130 = vadd.f32 %v1129, %v306
  %v1131 = vmax.f32 %v1130, 0.0
  %v1132 = vpack.c.bf16 %v1131, %v1131
  %v1134 = vunpack.c.l.b16 %v1132
  %v1135 = vpack.c.b16 %v1134, %v1134
  %1136 = vrot.lane.b32.xlu0 %v1135, 42
  %v1137 = vpop.permute.xlu0 %1136
  %vm1139 = vcmask 453968
  %1140 = vst.msk [vmem:[%s3] sm:$0xf] %vm1139, %v1137
  %v1141 = vld [vmem:[%s989] sm:$0x3]
  %1142 = vst.msk [vmem:[#allocation2] sm:$0x3] %vm18, %v1141
  %v1143 = vld [vmem:[%s1004] sm:$0x3]
  %v1145 = vcombine.low %v1143, %v1143
  %v1147 = vunpack.c.l.s4 1983009808
  %v1148 = vunpack.c.0.s8 %v1147
  %v1149 = vlaneseq
  %v1150 = vshrl.u32 %v1149, 7
  %v1151 = vsub.s32 %v1148, %v1150
  %v1152 = vrot.slane %v1145, %v1151
  %1154 = vst.msk [vmem:[#allocation2] sm:$0xc] %vm32, %v1152
  %s1155 = scalar_lea.vmem %s0, 40
  %v1156 = vld [vmem:[%s1155] sm:$0x3]
  %v1159 = vunpack.c.l.s4 1983009808
  %v1160 = vunpack.c.0.s8 %v1159
  %v1161 = vlaneseq
  %v1162 = vshrl.u32 %v1161, 7
  %v1163 = vsub.s32 %v1160, %v1162
  %v1164 = vrot.slane %v1156, %v1163
  %v1165 = vcombine.low %v1164, %v1164
  %1167 = vst.msk [vmem:[#allocation2] sm:$0x30] %vm46, %v1165
  %s1168 = scalar_lea.vmem %s0, 56
  %v1169 = vld [vmem:[%s1168] sm:$0x3]
  %v1171 = vcombine.low %v1169, %v1169
  %v1173 = vunpack.c.l.s4 1983009808
  %v1174 = vunpack.c.0.s8 %v1173
  %v1175 = vlaneseq
  %v1176 = vshrl.u32 %v1175, 7
  %v1177 = vsub.s32 %v1174, %v1176
  %v1178 = vrot.slane %v1171, %v1177
  %v1179 = vcombine.low %v1178, %v1178
  %1181 = vst.msk [vmem:[#allocation2] sm:$0xc0] %vm61, %v1179
  %v1182 = vld [vmem:[%s1004] sm:$0x3]
  %v1185 = vunpack.c.l.s4 1983009808
  %v1186 = vunpack.c.0.s8 %v1185
  %v1187 = vlaneseq
  %v1188 = vshrl.u32 %v1187, 7
  %v1189 = vsub.s32 %v1186, %v1188
  %v1190 = vrot.slane %v1182, %v1189
  %1191 = vrot.lane.b32.xlu0 %v1190, 14
  %v1192 = vpop.permute.xlu0 %1191
  %1194 = vst.msk [vmem:[#allocation2] sm:$0x3] %vm75, %v1192
  %v1195 = vld [vmem:[%s989] sm:$0x3]
  %v1197 = vcombine.low %v1195, %v1195
  %v1199 = vunpack.c.l.s4 1983009808
  %v1200 = vunpack.c.0.s8 %v1199
  %v1201 = vlaneseq
  %v1202 = vshrl.u32 %v1201, 7
  %v1203 = vsub.s32 %v1200, %v1202
  %v1204 = vrot.slane %v1197, %v1203
  %1205 = vrot.lane.b32.xlu0 %v1204, 12
  %v1206 = vpop.permute.xlu0 %1205
  %1208 = vst.msk [vmem:[#allocation2] sm:$0xc] %vm90, %v1206
  %v1209 = vld [vmem:[%s1168] sm:$0x3]
  %v1212 = vunpack.c.l.s4 1983009808
  %v1213 = vunpack.c.0.s8 %v1212
  %v1214 = vlaneseq
  %v1215 = vshrl.u32 %v1214, 7
  %v1216 = vsub.s32 %v1213, %v1215
  %v1217 = vrot.slane %v1209, %v1216
  %v1218 = vcombine.low %v1217, %v1217
  %1219 = vrot.lane.b32.xlu0 %v1218, 14
  %v1220 = vpop.permute.xlu0 %1219
  %1222 = vst.msk [vmem:[#allocation2] sm:$0x30] %vm105, %v1220
  %v1223 = vld [vmem:[%s1155] sm:$0x3]
  %v1225 = vcombine.low %v1223, %v1223
  %v1227 = vunpack.c.l.s4 1983009808
  %v1228 = vunpack.c.0.s8 %v1227
  %v1229 = vlaneseq
  %v1230 = vshrl.u32 %v1229, 7
  %v1231 = vsub.s32 %v1228, %v1230
  %v1232 = vrot.slane %v1225, %v1231
  %v1233 = vcombine.low %v1232, %v1232
  %1234 = vrot.lane.b32.xlu0 %v1233, 12
  %v1235 = vpop.permute.xlu0 %1234
  %1237 = vst.msk [vmem:[#allocation2] sm:$0xc0] %vm121, %v1235
  %v1238 = vld [vmem:[%s1155] sm:$0x3]
  %v1241 = vunpack.c.l.s4 1983009808
  %v1242 = vunpack.c.0.s8 %v1241
  %v1243 = vlaneseq
  %v1244 = vshrl.u32 %v1243, 7
  %v1245 = vsub.s32 %v1242, %v1244
  %v1246 = vrot.slane %v1238, %v1245
  %1247 = vrot.lane.b32.xlu0 %v1246, 28
  %v1248 = vpop.permute.xlu0 %1247
  %1250 = vst.msk [vmem:[#allocation2] sm:$0x3] %vm135, %v1248
  %v1251 = vld [vmem:[%s1168] sm:$0x3]
  %v1253 = vcombine.low %v1251, %v1251
  %v1255 = vunpack.c.l.s4 1983009808
  %v1256 = vunpack.c.0.s8 %v1255
  %v1257 = vlaneseq
  %v1258 = vshrl.u32 %v1257, 7
  %v1259 = vsub.s32 %v1256, %v1258
  %v1260 = vrot.slane %v1253, %v1259
  %1261 = vrot.lane.b32.xlu0 %v1260, 28
  %v1262 = vpop.permute.xlu0 %1261
  %1264 = vst.msk [vmem:[#allocation2] sm:$0xc] %vm150, %v1262
  %s1265 = scalar_lea.vmem %s0, 10
  %v1266 = vld [vmem:[%s1265] sm:$0x3]
  %v1269 = vunpack.c.l.s4 1983009808
  %v1270 = vunpack.c.0.s8 %v1269
  %v1271 = vlaneseq
  %v1272 = vshrl.u32 %v1271, 7
  %v1273 = vsub.s32 %v1270, %v1272
  %v1274 = vrot.slane %v1266, %v1273
  %v1275 = vcombine.low %v1274, %v1274
  %1276 = vrot.lane.b32.xlu0 %v1275, 28
  %v1277 = vpop.permute.xlu0 %1276
  %1279 = vst.msk [vmem:[#allocation2] sm:$0x30] %vm166, %v1277
  %s1280 = scalar_lea.vmem %s0, 26
  %v1281 = vld [vmem:[%s1280] sm:$0x3]
  %v1283 = vcombine.low %v1281, %v1281
  %v1285 = vunpack.c.l.s4 1983009808
  %v1286 = vunpack.c.0.s8 %v1285
  %v1287 = vlaneseq
  %v1288 = vshrl.u32 %v1287, 7
  %v1289 = vsub.s32 %v1286, %v1288
  %v1290 = vrot.slane %v1283, %v1289
  %v1291 = vcombine.low %v1290, %v1290
  %1292 = vrot.lane.b32.xlu0 %v1291, 28
  %v1293 = vpop.permute.xlu0 %1292
  %1295 = vst.msk [vmem:[#allocation2] sm:$0xc0] %vm183, %v1293
  %v1296 = vld [vmem:[%s1168] sm:$0x3]
  %v1299 = vunpack.c.l.s4 1983009808
  %v1300 = vunpack.c.0.s8 %v1299
  %v1301 = vlaneseq
  %v1302 = vshrl.u32 %v1301, 7
  %v1303 = vsub.s32 %v1300, %v1302
  %v1304 = vrot.slane %v1296, %v1303
  %1305 = vrot.lane.b32.xlu0 %v1304, 42
  %v1306 = vpop.permute.xlu0 %1305
  %1308 = vst.msk [vmem:[#allocation2] sm:$0x3] %vm197, %v1306
  %v1309 = vld [vmem:[%s1155] sm:$0x3]
  %v1311 = vcombine.low %v1309, %v1309
  %v1313 = vunpack.c.l.s4 1983009808
  %v1314 = vunpack.c.0.s8 %v1313
  %v1315 = vlaneseq
  %v1316 = vshrl.u32 %v1315, 7
  %v1317 = vsub.s32 %v1314, %v1316
  %v1318 = vrot.slane %v1311, %v1317
  %1319 = vrot.lane.b32.xlu0 %v1318, 40
  %v1320 = vpop.permute.xlu0 %1319
  %1322 = vst.msk [vmem:[#allocation2] sm:$0xc] %vm212, %v1320
  %v1323 = vld [vmem:[%s1280] sm:$0x3]
  %v1326 = vunpack.c.l.s4 1983009808
  %v1327 = vunpack.c.0.s8 %v1326
  %v1328 = vlaneseq
  %v1329 = vshrl.u32 %v1328, 7
  %v1330 = vsub.s32 %v1327, %v1329
  %v1331 = vrot.slane %v1323, %v1330
  %v1332 = vcombine.low %v1331, %v1331
  %1333 = vrot.lane.b32.xlu0 %v1332, 42
  %v1334 = vpop.permute.xlu0 %1333
  %1336 = vst.msk [vmem:[#allocation2] sm:$0x30] %vm227, %v1334
  %v1337 = vld [vmem:[%s1265] sm:$0x3]
  %v1339 = vcombine.low %v1337, %v1337
  %v1341 = vunpack.c.l.s4 1983009808
  %v1342 = vunpack.c.0.s8 %v1341
  %v1343 = vlaneseq
  %v1344 = vshrl.u32 %v1343, 7
  %v1345 = vsub.s32 %v1342, %v1344
  %v1346 = vrot.slane %v1339, %v1345
  %v1347 = vcombine.low %v1346, %v1346
  %1348 = vrot.lane.b32.xlu0 %v1347, 40
  %v1349 = vpop.permute.xlu0 %1348
  %1351 = vst.msk [vmem:[#allocation2] sm:$0xc0] %vm243, %v1349
  %v1352 = vld [vmem:[#allocation2] sm:$0xff]
  %1353 = vmatprep.subr.bf16.mxu0 0
  %1354 = vmatpush1.bf16.msra.mxu0 %v1352
  %1355 = vmatprep.subr.bf16.mxu0 0
  %1356 = vmatpush1.bf16.msra.mxu0 0
  %1357 = vmatprep.subr.bf16.mxu0 0
  %1358 = vmatpush1.bf16.msra.mxu0 0
  %1359 = vmatprep.subr.bf16.mxu0 0
  %1360 = vmatpush1.bf16.msra.mxu0 0
  %1361 = vmatprep.subr.bf16.mxu0 0
  %1362 = vmatpush1.bf16.msra.mxu0 0
  %1363 = vmatprep.subr.bf16.mxu0 0
  %1364 = vmatpush1.bf16.msra.mxu0 0
  %1365 = vmatprep.subr.bf16.mxu0 0
  %1366 = vmatpush1.bf16.msra.mxu0 0
  %1367 = vmatprep.subr.bf16.mxu0 0
  %1368 = vmatpush1.bf16.msra.mxu0 0
  %1369 = vmatprep.subr.bf16.mxu0 0
  %1370 = vmatpush1.bf16.msra.mxu0 0
  %1371 = vmatprep.subr.bf16.mxu0 0
  %1372 = vmatpush1.bf16.msra.mxu0 0
  %1373 = vmatprep.subr.bf16.mxu0 0
  %1374 = vmatpush1.bf16.msra.mxu0 0
  %1375 = vmatprep.subr.bf16.mxu0 0
  %1376 = vmatpush1.bf16.msra.mxu0 0
  %1377 = vmatprep.subr.bf16.mxu0 0
  %1378 = vmatpush1.bf16.msra.mxu0 0
  %1379 = vmatprep.subr.bf16.mxu0 0
  %1380 = vmatpush1.bf16.msra.mxu0 0
  %1381 = vmatprep.subr.bf16.mxu0 0
  %1382 = vmatpush1.bf16.msra.mxu0 0
  %1383 = vmatprep.subr.bf16.mxu0 0
  %1384 = vmatpush1.bf16.msra.mxu0 0
  %1385 = vmatprep.mubr.bf16.mxu0 0
  %1386 = vmatmul.mubr.bf16.gmra.mrb[0].mxu0 %v248
  %v1387 = vpop.f32.mrb[0].mxu0
  %v1388 = vadd.f32 0.0, %v1387
  %v1389 = vpop.f32.mrb[0].mxu0
  %v1390 = vpop.f32.mrb[0].mxu0
  %v1391 = vpop.f32.mrb[0].mxu0
  %1392 = vdwg.mxu0
  %1394 = vrot.lane.b32.xlu0 %v1388, 114
  %v1395 = vpop.permute.xlu0 %1394
  %v1397 = vmax.f32 %v1388, %v1395
  %1398 = vrot.lane.b32.xlu0 %v1388, 100
  %v1399 = vpop.permute.xlu0 %1398
  %v1401 = vmax.f32 %v1397, %v1399
  %1402 = vrot.lane.b32.xlu0 %v1388, 86
  %v1403 = vpop.permute.xlu0 %1402
  %v1405 = vmax.f32 %v1401, %v1403
  %v1406 = vadd.f32 %v1405, %v306
  %v1407 = vmax.f32 %v1406, 0.0
  %v1408 = vpack.c.bf16 %v1407, %v1407
  %v1410 = vunpack.c.l.b16 %v1408
  %v1411 = vpack.c.b16 %v1410, %v1410
  %1412 = vrot.lane.b32.xlu0 %v1411, 56
  %v1413 = vpop.permute.xlu0 %1412
  %vm1415 = vcmask 568768
  %1416 = vst.msk [vmem:[%s3] sm:$0xf] %vm1415, %v1413
  %v1417 = vld [vmem:[%s1265] sm:$0x3]
  %1418 = vst.msk [vmem:[#allocation2] sm:$0x3] %vm18, %v1417
  %v1419 = vld [vmem:[%s1280] sm:$0x3]
  %v1421 = vcombine.low %v1419, %v1419
  %v1423 = vunpack.c.l.s4 1983009808
  %v1424 = vunpack.c.0.s8 %v1423
  %v1425 = vlaneseq
  %v1426 = vshrl.u32 %v1425, 7
  %v1427 = vsub.s32 %v1424, %v1426
  %v1428 = vrot.slane %v1421, %v1427
  %1430 = vst.msk [vmem:[#allocation2] sm:$0xc] %vm32, %v1428
  %s1431 = scalar_lea.vmem %s0, 42
  %v1432 = vld [vmem:[%s1431] sm:$0x3]
  %v1435 = vunpack.c.l.s4 1983009808
  %v1436 = vunpack.c.0.s8 %v1435
  %v1437 = vlaneseq
  %v1438 = vshrl.u32 %v1437, 7
  %v1439 = vsub.s32 %v1436, %v1438
  %v1440 = vrot.slane %v1432, %v1439
  %v1441 = vcombine.low %v1440, %v1440
  %1443 = vst.msk [vmem:[#allocation2] sm:$0x30] %vm46, %v1441
  %s1444 = scalar_lea.vmem %s0, 58
  %v1445 = vld [vmem:[%s1444] sm:$0x3]
  %v1447 = vcombine.low %v1445, %v1445
  %v1449 = vunpack.c.l.s4 1983009808
  %v1450 = vunpack.c.0.s8 %v1449
  %v1451 = vlaneseq
  %v1452 = vshrl.u32 %v1451, 7
  %v1453 = vsub.s32 %v1450, %v1452
  %v1454 = vrot.slane %v1447, %v1453
  %v1455 = vcombine.low %v1454, %v1454
  %1457 = vst.msk [vmem:[#allocation2] sm:$0xc0] %vm61, %v1455
  %v1458 = vld [vmem:[%s1280] sm:$0x3]
  %v1461 = vunpack.c.l.s4 1983009808
  %v1462 = vunpack.c.0.s8 %v1461
  %v1463 = vlaneseq
  %v1464 = vshrl.u32 %v1463, 7
  %v1465 = vsub.s32 %v1462, %v1464
  %v1466 = vrot.slane %v1458, %v1465
  %1467 = vrot.lane.b32.xlu0 %v1466, 14
  %v1468 = vpop.permute.xlu0 %1467
  %1470 = vst.msk [vmem:[#allocation2] sm:$0x3] %vm75, %v1468
  %v1471 = vld [vmem:[%s1265] sm:$0x3]
  %v1473 = vcombine.low %v1471, %v1471
  %v1475 = vunpack.c.l.s4 1983009808
  %v1476 = vunpack.c.0.s8 %v1475
  %v1477 = vlaneseq
  %v1478 = vshrl.u32 %v1477, 7
  %v1479 = vsub.s32 %v1476, %v1478
  %v1480 = vrot.slane %v1473, %v1479
  %1481 = vrot.lane.b32.xlu0 %v1480, 12
  %v1482 = vpop.permute.xlu0 %1481
  %1484 = vst.msk [vmem:[#allocation2] sm:$0xc] %vm90, %v1482
  %v1485 = vld [vmem:[%s1444] sm:$0x3]
  %v1488 = vunpack.c.l.s4 1983009808
  %v1489 = vunpack.c.0.s8 %v1488
  %v1490 = vlaneseq
  %v1491 = vshrl.u32 %v1490, 7
  %v1492 = vsub.s32 %v1489, %v1491
  %v1493 = vrot.slane %v1485, %v1492
  %v1494 = vcombine.low %v1493, %v1493
  %1495 = vrot.lane.b32.xlu0 %v1494, 14
  %v1496 = vpop.permute.xlu0 %1495
  %1498 = vst.msk [vmem:[#allocation2] sm:$0x30] %vm105, %v1496
  %v1499 = vld [vmem:[%s1431] sm:$0x3]
  %v1501 = vcombine.low %v1499, %v1499
  %v1503 = vunpack.c.l.s4 1983009808
  %v1504 = vunpack.c.0.s8 %v1503
  %v1505 = vlaneseq
  %v1506 = vshrl.u32 %v1505, 7
  %v1507 = vsub.s32 %v1504, %v1506
  %v1508 = vrot.slane %v1501, %v1507
  %v1509 = vcombine.low %v1508, %v1508
  %1510 = vrot.lane.b32.xlu0 %v1509, 12
  %v1511 = vpop.permute.xlu0 %1510
  %1513 = vst.msk [vmem:[#allocation2] sm:$0xc0] %vm121, %v1511
  %v1514 = vld [vmem:[%s1431] sm:$0x3]
  %v1517 = vunpack.c.l.s4 1983009808
  %v1518 = vunpack.c.0.s8 %v1517
  %v1519 = vlaneseq
  %v1520 = vshrl.u32 %v1519, 7
  %v1521 = vsub.s32 %v1518, %v1520
  %v1522 = vrot.slane %v1514, %v1521
  %1523 = vrot.lane.b32.xlu0 %v1522, 28
  %v1524 = vpop.permute.xlu0 %1523
  %1526 = vst.msk [vmem:[#allocation2] sm:$0x3] %vm135, %v1524
  %v1527 = vld [vmem:[%s1444] sm:$0x3]
  %v1529 = vcombine.low %v1527, %v1527
  %v1531 = vunpack.c.l.s4 1983009808
  %v1532 = vunpack.c.0.s8 %v1531
  %v1533 = vlaneseq
  %v1534 = vshrl.u32 %v1533, 7
  %v1535 = vsub.s32 %v1532, %v1534
  %v1536 = vrot.slane %v1529, %v1535
  %1537 = vrot.lane.b32.xlu0 %v1536, 28
  %v1538 = vpop.permute.xlu0 %1537
  %1540 = vst.msk [vmem:[#allocation2] sm:$0xc] %vm150, %v1538
  %s1541 = scalar_lea.vmem %s0, 12
  %v1542 = vld [vmem:[%s1541] sm:$0x3]
  %v1545 = vunpack.c.l.s4 1983009808
  %v1546 = vunpack.c.0.s8 %v1545
  %v1547 = vlaneseq
  %v1548 = vshrl.u32 %v1547, 7
  %v1549 = vsub.s32 %v1546, %v1548
  %v1550 = vrot.slane %v1542, %v1549
  %v1551 = vcombine.low %v1550, %v1550
  %1552 = vrot.lane.b32.xlu0 %v1551, 28
  %v1553 = vpop.permute.xlu0 %1552
  %1555 = vst.msk [vmem:[#allocation2] sm:$0x30] %vm166, %v1553
  %s1556 = scalar_lea.vmem %s0, 28
  %v1557 = vld [vmem:[%s1556] sm:$0x3]
  %v1559 = vcombine.low %v1557, %v1557
  %v1561 = vunpack.c.l.s4 1983009808
  %v1562 = vunpack.c.0.s8 %v1561
  %v1563 = vlaneseq
  %v1564 = vshrl.u32 %v1563, 7
  %v1565 = vsub.s32 %v1562, %v1564
  %v1566 = vrot.slane %v1559, %v1565
  %v1567 = vcombine.low %v1566, %v1566
  %1568 = vrot.lane.b32.xlu0 %v1567, 28
  %v1569 = vpop.permute.xlu0 %1568
  %1571 = vst.msk [vmem:[#allocation2] sm:$0xc0] %vm183, %v1569
  %v1572 = vld [vmem:[%s1444] sm:$0x3]
  %v1575 = vunpack.c.l.s4 1983009808
  %v1576 = vunpack.c.0.s8 %v1575
  %v1577 = vlaneseq
  %v1578 = vshrl.u32 %v1577, 7
  %v1579 = vsub.s32 %v1576, %v1578
  %v1580 = vrot.slane %v1572, %v1579
  %1581 = vrot.lane.b32.xlu0 %v1580, 42
  %v1582 = vpop.permute.xlu0 %1581
  %1584 = vst.msk [vmem:[#allocation2] sm:$0x3] %vm197, %v1582
  %v1585 = vld [vmem:[%s1431] sm:$0x3]
  %v1587 = vcombine.low %v1585, %v1585
  %v1589 = vunpack.c.l.s4 1983009808
  %v1590 = vunpack.c.0.s8 %v1589
  %v1591 = vlaneseq
  %v1592 = vshrl.u32 %v1591, 7
  %v1593 = vsub.s32 %v1590, %v1592
  %v1594 = vrot.slane %v1587, %v1593
  %1595 = vrot.lane.b32.xlu0 %v1594, 40
  %v1596 = vpop.permute.xlu0 %1595
  %1598 = vst.msk [vmem:[#allocation2] sm:$0xc] %vm212, %v1596
  %v1599 = vld [vmem:[%s1556] sm:$0x3]
  %v1602 = vunpack.c.l.s4 1983009808
  %v1603 = vunpack.c.0.s8 %v1602
  %v1604 = vlaneseq
  %v1605 = vshrl.u32 %v1604, 7
  %v1606 = vsub.s32 %v1603, %v1605
  %v1607 = vrot.slane %v1599, %v1606
  %v1608 = vcombine.low %v1607, %v1607
  %1609 = vrot.lane.b32.xlu0 %v1608, 42
  %v1610 = vpop.permute.xlu0 %1609
  %1612 = vst.msk [vmem:[#allocation2] sm:$0x30] %vm227, %v1610
  %v1613 = vld [vmem:[%s1541] sm:$0x3]
  %v1615 = vcombine.low %v1613, %v1613
  %v1617 = vunpack.c.l.s4 1983009808
  %v1618 = vunpack.c.0.s8 %v1617
  %v1619 = vlaneseq
  %v1620 = vshrl.u32 %v1619, 7
  %v1621 = vsub.s32 %v1618, %v1620
  %v1622 = vrot.slane %v1615, %v1621
  %v1623 = vcombine.low %v1622, %v1622
  %1624 = vrot.lane.b32.xlu0 %v1623, 40
  %v1625 = vpop.permute.xlu0 %1624
  %1627 = vst.msk [vmem:[#allocation2] sm:$0xc0] %vm243, %v1625
  %v1628 = vld [vmem:[#allocation2] sm:$0xff]
  %1629 = vmatprep.subr.bf16.mxu0 0
  %1630 = vmatpush1.bf16.msra.mxu0 %v1628
  %1631 = vmatprep.subr.bf16.mxu0 0
  %1632 = vmatpush1.bf16.msra.mxu0 0
  %1633 = vmatprep.subr.bf16.mxu0 0
  %1634 = vmatpush1.bf16.msra.mxu0 0
  %1635 = vmatprep.subr.bf16.mxu0 0
  %1636 = vmatpush1.bf16.msra.mxu0 0
  %1637 = vmatprep.subr.bf16.mxu0 0
  %1638 = vmatpush1.bf16.msra.mxu0 0
  %1639 = vmatprep.subr.bf16.mxu0 0
  %1640 = vmatpush1.bf16.msra.mxu0 0
  %1641 = vmatprep.subr.bf16.mxu0 0
  %1642 = vmatpush1.bf16.msra.mxu0 0
  %1643 = vmatprep.subr.bf16.mxu0 0
  %1644 = vmatpush1.bf16.msra.mxu0 0
  %1645 = vmatprep.subr.bf16.mxu0 0
  %1646 = vmatpush1.bf16.msra.mxu0 0
  %1647 = vmatprep.subr.bf16.mxu0 0
  %1648 = vmatpush1.bf16.msra.mxu0 0
  %1649 = vmatprep.subr.bf16.mxu0 0
  %1650 = vmatpush1.bf16.msra.mxu0 0
  %1651 = vmatprep.subr.bf16.mxu0 0
  %1652 = vmatpush1.bf16.msra.mxu0 0
  %1653 = vmatprep.subr.bf16.mxu0 0
  %1654 = vmatpush1.bf16.msra.mxu0 0
  %1655 = vmatprep.subr.bf16.mxu0 0
  %1656 = vmatpush1.bf16.msra.mxu0 0
  %1657 = vmatprep.subr.bf16.mxu0 0
  %1658 = vmatpush1.bf16.msra.mxu0 0
  %1659 = vmatprep.subr.bf16.mxu0 0
  %1660 = vmatpush1.bf16.msra.mxu0 0
  %1661 = vmatprep.mubr.bf16.mxu0 0
  %1662 = vmatmul.mubr.bf16.gmra.mrb[0].mxu0 %v248
  %v1663 = vpop.f32.mrb[0].mxu0
  %v1664 = vadd.f32 0.0, %v1663
  %v1665 = vpop.f32.mrb[0].mxu0
  %v1666 = vpop.f32.mrb[0].mxu0
  %v1667 = vpop.f32.mrb[0].mxu0
  %1668 = vdwg.mxu0
  %1670 = vrot.lane.b32.xlu0 %v1664, 114
  %v1671 = vpop.permute.xlu0 %1670
  %v1673 = vmax.f32 %v1664, %v1671
  %1674 = vrot.lane.b32.xlu0 %v1664, 100
  %v1675 = vpop.permute.xlu0 %1674
  %v1677 = vmax.f32 %v1673, %v1675
  %1678 = vrot.lane.b32.xlu0 %v1664, 86
  %v1679 = vpop.permute.xlu0 %1678
  %v1681 = vmax.f32 %v1677, %v1679
  %v1682 = vadd.f32 %v1681, %v306
  %v1683 = vmax.f32 %v1682, 0.0
  %v1684 = vpack.c.bf16 %v1683, %v1683
  %v1686 = vunpack.c.l.b16 %v1684
  %v1687 = vpack.c.b16 %v1686, %v1686
  %1688 = vrot.lane.b32.xlu0 %v1687, 70
  %v1689 = vpop.permute.xlu0 %1688
  %vm1691 = vcmask 683568
  %1692 = vst.msk [vmem:[%s3] sm:$0xf] %vm1691, %v1689
  %v1693 = vld [vmem:[%s1541] sm:$0x3]
  %1694 = vst.msk [vmem:[#allocation2] sm:$0x3] %vm18, %v1693
  %v1695 = vld [vmem:[%s1556] sm:$0x3]
  %v1697 = vcombine.low %v1695, %v1695
  %v1699 = vunpack.c.l.s4 1983009808
  %v1700 = vunpack.c.0.s8 %v1699
  %v1701 = vlaneseq
  %v1702 = vshrl.u32 %v1701, 7
  %v1703 = vsub.s32 %v1700, %v1702
  %v1704 = vrot.slane %v1697, %v1703
  %1706 = vst.msk [vmem:[#allocation2] sm:$0xc] %vm32, %v1704
  %s1707 = scalar_lea.vmem %s0, 44
  %v1708 = vld [vmem:[%s1707] sm:$0x3]
  %v1711 = vunpack.c.l.s4 1983009808
  %v1712 = vunpack.c.0.s8 %v1711
  %v1713 = vlaneseq
  %v1714 = vshrl.u32 %v1713, 7
  %v1715 = vsub.s32 %v1712, %v1714
  %v1716 = vrot.slane %v1708, %v1715
  %v1717 = vcombine.low %v1716, %v1716
  %1719 = vst.msk [vmem:[#allocation2] sm:$0x30] %vm46, %v1717
  %s1720 = scalar_lea.vmem %s0, 60
  %v1721 = vld [vmem:[%s1720] sm:$0x3]
  %v1723 = vcombine.low %v1721, %v1721
  %v1725 = vunpack.c.l.s4 1983009808
  %v1726 = vunpack.c.0.s8 %v1725
  %v1727 = vlaneseq
  %v1728 = vshrl.u32 %v1727, 7
  %v1729 = vsub.s32 %v1726, %v1728
  %v1730 = vrot.slane %v1723, %v1729
  %v1731 = vcombine.low %v1730, %v1730
  %1733 = vst.msk [vmem:[#allocation2] sm:$0xc0] %vm61, %v1731
  %v1734 = vld [vmem:[%s1556] sm:$0x3]
  %v1737 = vunpack.c.l.s4 1983009808
  %v1738 = vunpack.c.0.s8 %v1737
  %v1739 = vlaneseq
  %v1740 = vshrl.u32 %v1739, 7
  %v1741 = vsub.s32 %v1738, %v1740
  %v1742 = vrot.slane %v1734, %v1741
  %1743 = vrot.lane.b32.xlu0 %v1742, 14
  %v1744 = vpop.permute.xlu0 %1743
  %1746 = vst.msk [vmem:[#allocation2] sm:$0x3] %vm75, %v1744
  %v1747 = vld [vmem:[%s1541] sm:$0x3]
  %v1749 = vcombine.low %v1747, %v1747
  %v1751 = vunpack.c.l.s4 1983009808
  %v1752 = vunpack.c.0.s8 %v1751
  %v1753 = vlaneseq
  %v1754 = vshrl.u32 %v1753, 7
  %v1755 = vsub.s32 %v1752, %v1754
  %v1756 = vrot.slane %v1749, %v1755
  %1757 = vrot.lane.b32.xlu0 %v1756, 12
  %v1758 = vpop.permute.xlu0 %1757
  %1760 = vst.msk [vmem:[#allocation2] sm:$0xc] %vm90, %v1758
  %v1761 = vld [vmem:[%s1720] sm:$0x3]
  %v1764 = vunpack.c.l.s4 1983009808
  %v1765 = vunpack.c.0.s8 %v1764
  %v1766 = vlaneseq
  %v1767 = vshrl.u32 %v1766, 7
  %v1768 = vsub.s32 %v1765, %v1767
  %v1769 = vrot.slane %v1761, %v1768
  %v1770 = vcombine.low %v1769, %v1769
  %1771 = vrot.lane.b32.xlu0 %v1770, 14
  %v1772 = vpop.permute.xlu0 %1771
  %1774 = vst.msk [vmem:[#allocation2] sm:$0x30] %vm105, %v1772
  %v1775 = vld [vmem:[%s1707] sm:$0x3]
  %v1777 = vcombine.low %v1775, %v1775
  %v1779 = vunpack.c.l.s4 1983009808
  %v1780 = vunpack.c.0.s8 %v1779
  %v1781 = vlaneseq
  %v1782 = vshrl.u32 %v1781, 7
  %v1783 = vsub.s32 %v1780, %v1782
  %v1784 = vrot.slane %v1777, %v1783
  %v1785 = vcombine.low %v1784, %v1784
  %1786 = vrot.lane.b32.xlu0 %v1785, 12
  %v1787 = vpop.permute.xlu0 %1786
  %1789 = vst.msk [vmem:[#allocation2] sm:$0xc0] %vm121, %v1787
  %v1790 = vld [vmem:[%s1707] sm:$0x3]
  %v1793 = vunpack.c.l.s4 1983009808
  %v1794 = vunpack.c.0.s8 %v1793
  %v1795 = vlaneseq
  %v1796 = vshrl.u32 %v1795, 7
  %v1797 = vsub.s32 %v1794, %v1796
  %v1798 = vrot.slane %v1790, %v1797
  %1799 = vrot.lane.b32.xlu0 %v1798, 28
  %v1800 = vpop.permute.xlu0 %1799
  %1802 = vst.msk [vmem:[#allocation2] sm:$0x3] %vm135, %v1800
  %v1803 = vld [vmem:[%s1720] sm:$0x3]
  %v1805 = vcombine.low %v1803, %v1803
  %v1807 = vunpack.c.l.s4 1983009808
  %v1808 = vunpack.c.0.s8 %v1807
  %v1809 = vlaneseq
  %v1810 = vshrl.u32 %v1809, 7
  %v1811 = vsub.s32 %v1808, %v1810
  %v1812 = vrot.slane %v1805, %v1811
  %1813 = vrot.lane.b32.xlu0 %v1812, 28
  %v1814 = vpop.permute.xlu0 %1813
  %1816 = vst.msk [vmem:[#allocation2] sm:$0xc] %vm150, %v1814
  %s1817 = scalar_lea.vmem %s0, 14
  %v1818 = vld [vmem:[%s1817] sm:$0x3]
  %v1821 = vunpack.c.l.s4 1983009808
  %v1822 = vunpack.c.0.s8 %v1821
  %v1823 = vlaneseq
  %v1824 = vshrl.u32 %v1823, 7
  %v1825 = vsub.s32 %v1822, %v1824
  %v1826 = vrot.slane %v1818, %v1825
  %v1827 = vcombine.low %v1826, %v1826
  %1828 = vrot.lane.b32.xlu0 %v1827, 28
  %v1829 = vpop.permute.xlu0 %1828
  %1831 = vst.msk [vmem:[#allocation2] sm:$0x30] %vm166, %v1829
  %s1832 = scalar_lea.vmem %s0, 30
  %v1833 = vld [vmem:[%s1832] sm:$0x3]
  %v1835 = vcombine.low %v1833, %v1833
  %v1837 = vunpack.c.l.s4 1983009808
  %v1838 = vunpack.c.0.s8 %v1837
  %v1839 = vlaneseq
  %v1840 = vshrl.u32 %v1839, 7
  %v1841 = vsub.s32 %v1838, %v1840
  %v1842 = vrot.slane %v1835, %v1841
  %v1843 = vcombine.low %v1842, %v1842
  %1844 = vrot.lane.b32.xlu0 %v1843, 28
  %v1845 = vpop.permute.xlu0 %1844
  %1847 = vst.msk [vmem:[#allocation2] sm:$0xc0] %vm183, %v1845
  %v1848 = vld [vmem:[%s1720] sm:$0x3]
  %v1851 = vunpack.c.l.s4 1983009808
  %v1852 = vunpack.c.0.s8 %v1851
  %v1853 = vlaneseq
  %v1854 = vshrl.u32 %v1853, 7
  %v1855 = vsub.s32 %v1852, %v1854
  %v1856 = vrot.slane %v1848, %v1855
  %1857 = vrot.lane.b32.xlu0 %v1856, 42
  %v1858 = vpop.permute.xlu0 %1857
  %1860 = vst.msk [vmem:[#allocation2] sm:$0x3] %vm197, %v1858
  %v1861 = vld [vmem:[%s1707] sm:$0x3]
  %v1863 = vcombine.low %v1861, %v1861
  %v1865 = vunpack.c.l.s4 1983009808
  %v1866 = vunpack.c.0.s8 %v1865
  %v1867 = vlaneseq
  %v1868 = vshrl.u32 %v1867, 7
  %v1869 = vsub.s32 %v1866, %v1868
  %v1870 = vrot.slane %v1863, %v1869
  %1871 = vrot.lane.b32.xlu0 %v1870, 40
  %v1872 = vpop.permute.xlu0 %1871
  %1874 = vst.msk [vmem:[#allocation2] sm:$0xc] %vm212, %v1872
  %v1875 = vld [vmem:[%s1832] sm:$0x3]
  %v1878 = vunpack.c.l.s4 1983009808
  %v1879 = vunpack.c.0.s8 %v1878
  %v1880 = vlaneseq
  %v1881 = vshrl.u32 %v1880, 7
  %v1882 = vsub.s32 %v1879, %v1881
  %v1883 = vrot.slane %v1875, %v1882
  %v1884 = vcombine.low %v1883, %v1883
  %1885 = vrot.lane.b32.xlu0 %v1884, 42
  %v1886 = vpop.permute.xlu0 %1885
  %1888 = vst.msk [vmem:[#allocation2] sm:$0x30] %vm227, %v1886
  %v1889 = vld [vmem:[%s1817] sm:$0x3]
  %v1891 = vcombine.low %v1889, %v1889
  %v1893 = vunpack.c.l.s4 1983009808
  %v1894 = vunpack.c.0.s8 %v1893
  %v1895 = vlaneseq
  %v1896 = vshrl.u32 %v1895, 7
  %v1897 = vsub.s32 %v1894, %v1896
  %v1898 = vrot.slane %v1891, %v1897
  %v1899 = vcombine.low %v1898, %v1898
  %1900 = vrot.lane.b32.xlu0 %v1899, 40
  %v1901 = vpop.permute.xlu0 %1900
  %1903 = vst.msk [vmem:[#allocation2] sm:$0xc0] %vm243, %v1901
  %v1904 = vld [vmem:[#allocation2] sm:$0xff]
  %1905 = vmatprep.subr.bf16.mxu0 0
  %1906 = vmatpush1.bf16.msra.mxu0 %v1904
  %1907 = vmatprep.subr.bf16.mxu0 0
  %1908 = vmatpush1.bf16.msra.mxu0 0
  %1909 = vmatprep.subr.bf16.mxu0 0
  %1910 = vmatpush1.bf16.msra.mxu0 0
  %1911 = vmatprep.subr.bf16.mxu0 0
  %1912 = vmatpush1.bf16.msra.mxu0 0
  %1913 = vmatprep.subr.bf16.mxu0 0
  %1914 = vmatpush1.bf16.msra.mxu0 0
  %1915 = vmatprep.subr.bf16.mxu0 0
  %1916 = vmatpush1.bf16.msra.mxu0 0
  %1917 = vmatprep.subr.bf16.mxu0 0
  %1918 = vmatpush1.bf16.msra.mxu0 0
  %1919 = vmatprep.subr.bf16.mxu0 0
  %1920 = vmatpush1.bf16.msra.mxu0 0
  %1921 = vmatprep.subr.bf16.mxu0 0
  %1922 = vmatpush1.bf16.msra.mxu0 0
  %1923 = vmatprep.subr.bf16.mxu0 0
  %1924 = vmatpush1.bf16.msra.mxu0 0
  %1925 = vmatprep.subr.bf16.mxu0 0
  %1926 = vmatpush1.bf16.msra.mxu0 0
  %1927 = vmatprep.subr.bf16.mxu0 0
  %1928 = vmatpush1.bf16.msra.mxu0 0
  %1929 = vmatprep.subr.bf16.mxu0 0
  %1930 = vmatpush1.bf16.msra.mxu0 0
  %1931 = vmatprep.subr.bf16.mxu0 0
  %1932 = vmatpush1.bf16.msra.mxu0 0
  %1933 = vmatprep.subr.bf16.mxu0 0
  %1934 = vmatpush1.bf16.msra.mxu0 0
  %1935 = vmatprep.subr.bf16.mxu0 0
  %1936 = vmatpush1.bf16.msra.mxu0 0
  %1937 = vmatprep.mubr.bf16.mxu0 0
  %1938 = vmatmul.mubr.bf16.gmra.mrb[0].mxu0 %v248
  %v1939 = vpop.f32.mrb[0].mxu0
  %v1940 = vadd.f32 0.0, %v1939
  %v1941 = vpop.f32.mrb[0].mxu0
  %v1942 = vpop.f32.mrb[0].mxu0
  %v1943 = vpop.f32.mrb[0].mxu0
  %1944 = vdwg.mxu0
  %1946 = vrot.lane.b32.xlu0 %v1940, 114
  %v1947 = vpop.permute.xlu0 %1946
  %v1949 = vmax.f32 %v1940, %v1947
  %1950 = vrot.lane.b32.xlu0 %v1940, 100
  %v1951 = vpop.permute.xlu0 %1950
  %v1953 = vmax.f32 %v1949, %v1951
  %1954 = vrot.lane.b32.xlu0 %v1940, 86
  %v1955 = vpop.permute.xlu0 %1954
  %v1957 = vmax.f32 %v1953, %v1955
  %v1958 = vadd.f32 %v1957, %v306
  %v1959 = vmax.f32 %v1958, 0.0
  %v1960 = vpack.c.bf16 %v1959, %v1959
  %v1962 = vunpack.c.l.b16 %v1960
  %v1963 = vpack.c.b16 %v1962, %v1962
  %1964 = vrot.lane.b32.xlu0 %v1963, 84
  %v1965 = vpop.permute.xlu0 %1964
  %vm1967 = vcmask 798368
  %1968 = vst.msk [vmem:[%s3] sm:$0xf] %vm1967, %v1965
  // Predicated region
  $region14: #{network_with_xblock.2} parent=0 // pred_check
    _
  $region15: #{network_with_xblock.2} parent=0 // pred_check_branch
    %1970 = sbr.rel (0) target = $region17
  $region16: #{network_with_xblock.2} parent=0 // pred_region
    _
  $region17: #{network_with_xblock.2} parent=0 // pred_fallthru
    _
  // Predicated region
  $region18: #{network_with_xblock.2} parent=0 // pred_check
    _
  $region19: #{network_with_xblock.2} parent=0 // pred_check_branch
    %1972 = sbr.rel (0) target = $region21
  $region20: #{network_with_xblock.2} parent=0 // pred_region
    _
  $region21: #{network_with_xblock.2} parent=0 // pred_fallthru
    _

</llo_original>
